<compile_context>
chip_gen: v6e
topology: v6e:2x2x1
jax: 0.10.0
libtpu: 0.0.40
codegen_flags: <defaults>
</compile_context>

<pallas_src>
import jax
import jax.numpy as jnp
from jax import lax
from jax.experimental import pallas as pl
from jax.experimental.pallas import tpu as pltpu


# ----------------------------------------------------------------------------
# Fused LeNet forward kernel (one grid step == one image)
# ----------------------------------------------------------------------------
def _lenet_kernel(x_ref,                       # (1, 32, 32)  zero-padded image
                  w1_ref, b1_ref,              # (5, 32, 168), (1, 168)
                  l1_ref, r1_ref,              # (2, 14, 28), (2, 168, 84)
                  w2_ref, b2_ref,              # (5, 84, 160), (1, 160)
                  l2_ref, r2_ref,              # (2, 5, 10),  (2, 160, 80)
                  wfc1_ref, bfc1_ref,          # (5, 80, 120), (1, 120)
                  wfc2_ref, bfc2_ref,          # (120, 84), (1, 84)
                  wfc3_ref, bfc3_ref,          # (84, 10),  (1, 10)
                  out_ref):                    # (1, 1, 10)
    f32 = jnp.float32

    def mm(a, b):
        return jnp.dot(a, b, preferred_element_type=f32)

    def pool2x2(a, l_ref, r_ref):
        # max over the 4 pool corners; the 0/1 selection matmuls also re-pack
        # the result into the next layer's wide (rows=H, lanes=W*C) layout.
        corners = []
        for p in range(2):
            rows = mm(l_ref[p], a)
            for q in range(2):
                corners.append(mm(rows, r_ref[q]))
        return jnp.maximum(jnp.maximum(corners[0], corners[1]),
                           jnp.maximum(corners[2], corners[3]))

    x = x_ref[0]                                           # (32, 32)

    # conv1 (1->6, 5x5, pad 2) + bias + ReLU; wide layout [oh, ow*6 + co]
    a1 = jnp.zeros((28, 168), f32)
    for dy in range(5):
        a1 = a1 + mm(x[dy:dy + 28, :], w1_ref[dy])
    a1 = jnp.maximum(a1 + b1_ref[...], 0.0)                # (28, 168)

    # 2x2/2 max-pool -> [h, w*6 + c]
    x1 = pool2x2(a1, l1_ref, r1_ref)                       # (14, 84)

    # conv2 (6->16, 5x5, valid) + bias + ReLU; wide layout [oh, ow*16 + co]
    a2 = jnp.zeros((10, 160), f32)
    for dy in range(5):
        a2 = a2 + mm(x1[dy:dy + 10, :], w2_ref[dy])
    a2 = jnp.maximum(a2 + b2_ref[...], 0.0)                # (10, 160)

    # 2x2/2 max-pool -> [m, n*16 + co]
    x2 = pool2x2(a2, l2_ref, r2_ref)                       # (5, 80)

    # fc1: contract over both dims of x2 row by row (avoids any in-kernel
    # flatten; fc1 weight rows were pre-permuted to this layout).
    h = bfc1_ref[...]                                      # (1, 120)
    for m in range(5):
        h = h + mm(x2[m:m + 1, :], wfc1_ref[m])
    h = jnp.maximum(h, 0.0)

    h = jnp.maximum(mm(h, wfc2_ref[...]) + bfc2_ref[...], 0.0)   # (1, 84)
    out_ref[0] = mm(h, wfc3_ref[...]) + bfc3_ref[...]            # (1, 10)


# ----------------------------------------------------------------------------
# Wrapper
# ----------------------------------------------------------------------------
_WEIGHT_KEYS = ("w1", "b1", "l1", "r1", "w2", "b2", "l2", "r2",
                "wfc1", "bfc1", "wfc2", "bfc2", "wfc3", "bfc3")


def lenet_forward(x_nchw, prep):
    """Forward pass of the PyTorch `Net`. x_nchw: (B, 1, 28, 28) float32."""
    B = x_nchw.shape[0]
    x = x_nchw.reshape(B, 28, 28).astype(jnp.float32)
    xp = jnp.pad(x, ((0, 0), (2, 2), (2, 2)))              # (B, 32, 32)

    weights = [prep[k] for k in _WEIGHT_KEYS]

    def resident(a):                                       # full block, loaded once
        nd = a.ndim
        return pl.BlockSpec(a.shape, lambda b, _nd=nd: (0,) * _nd)

    out = pl.pallas_call(
        _lenet_kernel,
        out_shape=jax.ShapeDtypeStruct((B, 1, 10), jnp.float32),
        grid=(B,),
        in_specs=[pl.BlockSpec((1, 32, 32), lambda b: (b, 0, 0))]
                 + [resident(w) for w in weights],
        out_specs=pl.BlockSpec((1, 1, 10), lambda b: (b, 0, 0)),
        compiler_params=pltpu.CompilerParams(
            dimension_semantics=("parallel",),
            vmem_limit_bytes=32 * 1024 * 1024,
        ),
    )(xp, *weights)
    return out.reshape(B, 10)


# ----------------------------------------------------------------------------
# One-time re-layout of torch-style parameters into kernel form
# ----------------------------------------------------------------------------
def prepare_params(params):
    f32 = jnp.float32

    # conv1: banded weight per dy: (32, 28*6); [v, ow*6+co] = w1[co,0,dy,v-ow]
    w1 = params["conv1_w"].astype(f32)                     # (6, 1, 5, 5)
    w1k = jnp.transpose(w1[:, 0], (1, 2, 0))               # (5, 5, 6)  [dy,dx,co]
    v = jnp.arange(32)[:, None]
    ow = jnp.arange(28)[None, :]
    d = v - ow
    m1 = ((d >= 0) & (d <= 4)).astype(f32)[..., None]      # (32, 28, 1)
    di = jnp.clip(d, 0, 4)
    w1band = jnp.stack(
        [(w1k[dy][di] * m1).reshape(32, 168) for dy in range(5)])   # (5, 32, 168)
    b1w = jnp.tile(params["conv1_b"].astype(f32), 28)[None, :]      # (1, 168)

    # conv2: banded weight per dy: (14*6, 10*16)
    w2 = params["conv2_w"].astype(f32)                     # (16, 6, 5, 5)
    w2k = jnp.transpose(w2, (2, 3, 1, 0))                  # (5, 5, 6, 16) [dy,dx,ci,co]
    wp = jnp.arange(14)[:, None]
    ow2 = jnp.arange(10)[None, :]
    d2 = wp - ow2
    m2 = ((d2 >= 0) & (d2 <= 4)).astype(f32)[..., None, None]       # (14, 10, 1, 1)
    di2 = jnp.clip(d2, 0, 4)

    def band2(dy):
        t = w2k[dy][di2] * m2                              # (14, 10, 6, 16)
        return jnp.transpose(t, (0, 2, 1, 3)).reshape(84, 160)

    w2band = jnp.stack([band2(dy) for dy in range(5)])     # (5, 84, 160)
    b2w = jnp.tile(params["conv2_b"].astype(f32), 10)[None, :]      # (1, 160)

    # 2x2 max-pool selection matrices (0/1)
    def row_sel(no, ni, p):                                # [m, u] = (u == 2m+p)
        return (jnp.arange(ni)[None, :] ==
                (2 * jnp.arange(no) + p)[:, None]).astype(f32)

    def col_sel(ni, no, g, q):                             # channel-grouped columns
        j = jnp.arange(ni)[:, None]
        l = jnp.arange(no)[None, :]
        return (((j % g) == (l % g)) &
                ((j // g) == (2 * (l // g) + q))).astype(f32)

    l1 = jnp.stack([row_sel(14, 28, p) for p in (0, 1)])   # (2, 14, 28)
    r1 = jnp.stack([col_sel(168, 84, 6, q) for q in (0, 1)])    # (2, 168, 84)
    l2 = jnp.stack([row_sel(5, 10, p) for p in (0, 1)])    # (2, 5, 10)
    r2 = jnp.stack([col_sel(160, 80, 16, q) for q in (0, 1)])   # (2, 160, 80)

    # fc1: permute rows from torch's view(-1,400) order (co*25 + m*5 + n) to
    # the kernel's pooled layout [m][n*16 + co].
    wfc1 = params["fc1_w"].astype(f32).reshape(16, 5, 5, 120)
    wfc1 = jnp.transpose(wfc1, (1, 2, 0, 3)).reshape(5, 80, 120)

    return {
        "w1": w1band, "b1": b1w, "l1": l1, "r1": r1,
        "w2": w2band, "b2": b2w, "l2": l2, "r2": r2,
        "wfc1": wfc1, "bfc1": params["fc1_b"].astype(f32)[None, :],
        "wfc2": params["fc2_w"].astype(f32),
        "bfc2": params["fc2_b"].astype(f32)[None, :],
        "wfc3": params["fc3_w"].astype(f32),
        "bfc3": params["fc3_b"].astype(f32)[None, :],
    }


# ----------------------------------------------------------------------------
# Deterministic parameter init (PyTorch-style uniform(-1/sqrt(fan_in), +...))
# ----------------------------------------------------------------------------
def init_params(key):
    keys = jax.random.split(key, 10)

    def u(k, shape, fan_in):
        bound = 1.0 / (fan_in ** 0.5)
        return jax.random.uniform(k, shape, jnp.float32, -bound, bound)

    return {
        "conv1_w": u(keys[0], (6, 1, 5, 5), 1 * 5 * 5),
        "conv1_b": u(keys[1], (6,), 1 * 5 * 5),
        "conv2_w": u(keys[2], (16, 6, 5, 5), 6 * 5 * 5),
        "conv2_b": u(keys[3], (16,), 6 * 5 * 5),
        "fc1_w": u(keys[4], (400, 120), 400),
        "fc1_b": u(keys[5], (120,), 400),
        "fc2_w": u(keys[6], (120, 84), 120),
        "fc2_b": u(keys[7], (84,), 120),
        "fc3_w": u(keys[8], (84, 10), 84),
        "fc3_b": u(keys[9], (10,), 84),
    }


# ----------------------------------------------------------------------------
# Pure-JAX reference (matches the PyTorch module semantics)
# ----------------------------------------------------------------------------
def ref_forward(x_nchw, params):
    x = x_nchw.astype(jnp.float32)
    dn = ("NCHW", "OIHW", "NCHW")
    y = lax.conv_general_dilated(x, params["conv1_w"], (1, 1),
                                 ((2, 2), (2, 2)), dimension_numbers=dn)
    y = jnp.maximum(y + params["conv1_b"][None, :, None, None], 0.0)
    y = lax.reduce_window(y, -jnp.inf, lax.max, (1, 1, 2, 2), (1, 1, 2, 2), "VALID")
    y = lax.conv_general_dilated(y, params["conv2_w"], (1, 1),
                                 ((0, 0), (0, 0)), dimension_numbers=dn)
    y = jnp.maximum(y + params["conv2_b"][None, :, None, None], 0.0)
    y = lax.reduce_window(y, -jnp.inf, lax.max, (1, 1, 2, 2), (1, 1, 2, 2), "VALID")
    y = y.reshape(y.shape[0], -1)                          # torch view(-1, 400)
    y = jnp.maximum(y @ params["fc1_w"] + params["fc1_b"], 0.0)
    y = jnp.maximum(y @ params["fc2_w"] + params["fc2_b"], 0.0)
    return y @ params["fc3_w"] + params["fc3_b"]


if __name__ == "__main__":
    root = jax.random.PRNGKey(0)
    pkey, xkey = jax.random.split(root)
    params = init_params(pkey)
    prep = prepare_params(params)

    # LeNet geometry: 28x28 single-channel input (so fc1 sees 16*5*5).
    x = jax.random.normal(xkey, (2, 1, 28, 28), jnp.float32)

    fwd = jax.jit(lenet_forward)
    out = jax.block_until_ready(fwd(x, prep))
    assert out.shape == (2, 10), out.shape
    assert out.dtype == jnp.float32

    # Correctness check vs. pure-JAX reference (relative L2; tolerant of the
    # TPU MXU's default reduced-precision f32 matmuls on either side).
    ref = jax.block_until_ready(ref_forward(x, params))
    rel = jnp.linalg.norm(out - ref) / (jnp.linalg.norm(ref) + 1e-12)
    assert rel < 3e-2, float(rel)

    print("KERNEL_OK")
</pallas_src>

<mosaic_0001>
module attributes {stable_mosaic.version = 11 : i64} {
  func.func @_lenet_kernel(%arg0: i32, %arg1: memref<1x32x32xf32, #tpu.memory_space<vmem>>, %arg2: memref<5x32x168xf32, #tpu.memory_space<vmem>>, %arg3: memref<1x168xf32, #tpu.memory_space<vmem>>, %arg4: memref<2x14x28xf32, #tpu.memory_space<vmem>>, %arg5: memref<2x168x84xf32, #tpu.memory_space<vmem>>, %arg6: memref<5x84x160xf32, #tpu.memory_space<vmem>>, %arg7: memref<1x160xf32, #tpu.memory_space<vmem>>, %arg8: memref<2x5x10xf32, #tpu.memory_space<vmem>>, %arg9: memref<2x160x80xf32, #tpu.memory_space<vmem>>, %arg10: memref<5x80x120xf32, #tpu.memory_space<vmem>>, %arg11: memref<1x120xf32, #tpu.memory_space<vmem>>, %arg12: memref<120x84xf32, #tpu.memory_space<vmem>>, %arg13: memref<1x84xf32, #tpu.memory_space<vmem>>, %arg14: memref<84x10xf32, #tpu.memory_space<vmem>>, %arg15: memref<1x10xf32, #tpu.memory_space<vmem>>, %arg16: memref<1x1x10xf32, #tpu.memory_space<vmem>>) attributes {dimension_semantics = [#tpu.dimension_semantics<parallel>], iteration_bounds = array<i64: 2>, scalar_prefetch = 0 : i64, scratch_operands = 0 : i64, tpu.core_type = #tpu.core_type<tc>, window_params = [{transform_indices = @transform_0, window_bounds = array<i64: 1, 32, 32>}, {pipeline_mode = #tpu.pipeline_mode<synchronous>, transform_indices = @transform_1, window_bounds = array<i64: 5, 32, 168>}, {pipeline_mode = #tpu.pipeline_mode<synchronous>, transform_indices = @transform_2, window_bounds = array<i64: 1, 168>}, {pipeline_mode = #tpu.pipeline_mode<synchronous>, transform_indices = @transform_3, window_bounds = array<i64: 2, 14, 28>}, {pipeline_mode = #tpu.pipeline_mode<synchronous>, transform_indices = @transform_4, window_bounds = array<i64: 2, 168, 84>}, {pipeline_mode = #tpu.pipeline_mode<synchronous>, transform_indices = @transform_5, window_bounds = array<i64: 5, 84, 160>}, {pipeline_mode = #tpu.pipeline_mode<synchronous>, transform_indices = @transform_6, window_bounds = array<i64: 1, 160>}, {pipeline_mode = #tpu.pipeline_mode<synchronous>, transform_indices = @transform_7, window_bounds = array<i64: 2, 5, 10>}, {pipeline_mode = #tpu.pipeline_mode<synchronous>, transform_indices = @transform_8, window_bounds = array<i64: 2, 160, 80>}, {pipeline_mode = #tpu.pipeline_mode<synchronous>, transform_indices = @transform_9, window_bounds = array<i64: 5, 80, 120>}, {pipeline_mode = #tpu.pipeline_mode<synchronous>, transform_indices = @transform_10, window_bounds = array<i64: 1, 120>}, {pipeline_mode = #tpu.pipeline_mode<synchronous>, transform_indices = @transform_11, window_bounds = array<i64: 120, 84>}, {pipeline_mode = #tpu.pipeline_mode<synchronous>, transform_indices = @transform_12, window_bounds = array<i64: 1, 84>}, {pipeline_mode = #tpu.pipeline_mode<synchronous>, transform_indices = @transform_13, window_bounds = array<i64: 84, 10>}, {pipeline_mode = #tpu.pipeline_mode<synchronous>, transform_indices = @transform_14, window_bounds = array<i64: 1, 10>}, {transform_indices = @transform_15, window_bounds = array<i64: 1, 1, 10>}]} {
    %c0 = arith.constant 0 : index
    %c0_0 = arith.constant 0 : index
    %c0_1 = arith.constant 0 : index
    %0 = vector.load %arg1[%c0, %c0_0, %c0_1] : memref<1x32x32xf32, #tpu.memory_space<vmem>>, vector<1x32x32xf32>
    %1 = vector.shape_cast %0 : vector<1x32x32xf32> to vector<32x32xf32>
    %cst = arith.constant 0.000000e+00 : f32
    %2 = vector.broadcast %cst : f32 to vector<28x168xf32>
    %3 = vector.extract_strided_slice %1 {offsets = [0, 0], sizes = [28, 32], strides = [1, 1]} : vector<32x32xf32> to vector<28x32xf32>
    %c0_2 = arith.constant 0 : index
    %c0_3 = arith.constant 0 : index
    %c0_4 = arith.constant 0 : index
    %4 = vector.load %arg2[%c0_2, %c0_3, %c0_4] : memref<5x32x168xf32, #tpu.memory_space<vmem>>, vector<1x32x168xf32>
    %5 = vector.shape_cast %4 : vector<1x32x168xf32> to vector<32x168xf32>
    %cst_5 = arith.constant dense<0.000000e+00> : vector<28x168xf32>
    %6 = tpu.matmul %3, %5, %cst_5 {dimension_numbers = #tpu.dot_dimension_numbers<[1], [0], [0], [1], [0, 0, 1, 1], [], []>} : vector<28x32xf32>, vector<32x168xf32>, vector<28x168xf32> -> vector<28x168xf32>
    %7 = arith.addf %2, %6 : vector<28x168xf32>
    %8 = vector.extract_strided_slice %1 {offsets = [1, 0], sizes = [28, 32], strides = [1, 1]} : vector<32x32xf32> to vector<28x32xf32>
    %c1 = arith.constant 1 : index
    %c0_6 = arith.constant 0 : index
    %c0_7 = arith.constant 0 : index
    %9 = vector.load %arg2[%c1, %c0_6, %c0_7] : memref<5x32x168xf32, #tpu.memory_space<vmem>>, vector<1x32x168xf32>
    %10 = vector.shape_cast %9 : vector<1x32x168xf32> to vector<32x168xf32>
    %cst_8 = arith.constant dense<0.000000e+00> : vector<28x168xf32>
    %11 = tpu.matmul %8, %10, %cst_8 {dimension_numbers = #tpu.dot_dimension_numbers<[1], [0], [0], [1], [0, 0, 1, 1], [], []>} : vector<28x32xf32>, vector<32x168xf32>, vector<28x168xf32> -> vector<28x168xf32>
    %12 = arith.addf %7, %11 : vector<28x168xf32>
    %13 = vector.extract_strided_slice %1 {offsets = [2, 0], sizes = [28, 32], strides = [1, 1]} : vector<32x32xf32> to vector<28x32xf32>
    %c2 = arith.constant 2 : index
    %c0_9 = arith.constant 0 : index
    %c0_10 = arith.constant 0 : index
    %14 = vector.load %arg2[%c2, %c0_9, %c0_10] : memref<5x32x168xf32, #tpu.memory_space<vmem>>, vector<1x32x168xf32>
    %15 = vector.shape_cast %14 : vector<1x32x168xf32> to vector<32x168xf32>
    %cst_11 = arith.constant dense<0.000000e+00> : vector<28x168xf32>
    %16 = tpu.matmul %13, %15, %cst_11 {dimension_numbers = #tpu.dot_dimension_numbers<[1], [0], [0], [1], [0, 0, 1, 1], [], []>} : vector<28x32xf32>, vector<32x168xf32>, vector<28x168xf32> -> vector<28x168xf32>
    %17 = arith.addf %12, %16 : vector<28x168xf32>
    %18 = vector.extract_strided_slice %1 {offsets = [3, 0], sizes = [28, 32], strides = [1, 1]} : vector<32x32xf32> to vector<28x32xf32>
    %c3 = arith.constant 3 : index
    %c0_12 = arith.constant 0 : index
    %c0_13 = arith.constant 0 : index
    %19 = vector.load %arg2[%c3, %c0_12, %c0_13] : memref<5x32x168xf32, #tpu.memory_space<vmem>>, vector<1x32x168xf32>
    %20 = vector.shape_cast %19 : vector<1x32x168xf32> to vector<32x168xf32>
    %cst_14 = arith.constant dense<0.000000e+00> : vector<28x168xf32>
    %21 = tpu.matmul %18, %20, %cst_14 {dimension_numbers = #tpu.dot_dimension_numbers<[1], [0], [0], [1], [0, 0, 1, 1], [], []>} : vector<28x32xf32>, vector<32x168xf32>, vector<28x168xf32> -> vector<28x168xf32>
    %22 = arith.addf %17, %21 : vector<28x168xf32>
    %23 = vector.extract_strided_slice %1 {offsets = [4, 0], sizes = [28, 32], strides = [1, 1]} : vector<32x32xf32> to vector<28x32xf32>
    %c4 = arith.constant 4 : index
    %c0_15 = arith.constant 0 : index
    %c0_16 = arith.constant 0 : index
    %24 = vector.load %arg2[%c4, %c0_15, %c0_16] : memref<5x32x168xf32, #tpu.memory_space<vmem>>, vector<1x32x168xf32>
    %25 = vector.shape_cast %24 : vector<1x32x168xf32> to vector<32x168xf32>
    %cst_17 = arith.constant dense<0.000000e+00> : vector<28x168xf32>
    %26 = tpu.matmul %23, %25, %cst_17 {dimension_numbers = #tpu.dot_dimension_numbers<[1], [0], [0], [1], [0, 0, 1, 1], [], []>} : vector<28x32xf32>, vector<32x168xf32>, vector<28x168xf32> -> vector<28x168xf32>
    %27 = arith.addf %22, %26 : vector<28x168xf32>
    %c0_18 = arith.constant 0 : index
    %c0_19 = arith.constant 0 : index
    %28 = vector.load %arg3[%c0_18, %c0_19] : memref<1x168xf32, #tpu.memory_space<vmem>>, vector<1x168xf32>
    %29 = vector.broadcast %28 : vector<1x168xf32> to vector<28x168xf32>
    %30 = arith.addf %27, %29 : vector<28x168xf32>
    %cst_20 = arith.constant 0.000000e+00 : f32
    %31 = vector.broadcast %cst_20 : f32 to vector<28x168xf32>
    %32 = arith.maximumf %30, %31 : vector<28x168xf32>
    %c0_21 = arith.constant 0 : index
    %c0_22 = arith.constant 0 : index
    %c0_23 = arith.constant 0 : index
    %33 = vector.load %arg4[%c0_21, %c0_22, %c0_23] : memref<2x14x28xf32, #tpu.memory_space<vmem>>, vector<1x14x28xf32>
    %34 = vector.shape_cast %33 : vector<1x14x28xf32> to vector<14x28xf32>
    %cst_24 = arith.constant dense<0.000000e+00> : vector<14x168xf32>
    %35 = tpu.matmul %34, %32, %cst_24 {dimension_numbers = #tpu.dot_dimension_numbers<[1], [0], [0], [1], [0, 0, 1, 1], [], []>} : vector<14x28xf32>, vector<28x168xf32>, vector<14x168xf32> -> vector<14x168xf32>
    %c0_25 = arith.constant 0 : index
    %c0_26 = arith.constant 0 : index
    %c0_27 = arith.constant 0 : index
    %36 = vector.load %arg5[%c0_25, %c0_26, %c0_27] : memref<2x168x84xf32, #tpu.memory_space<vmem>>, vector<1x168x84xf32>
    %37 = vector.shape_cast %36 : vector<1x168x84xf32> to vector<168x84xf32>
    %cst_28 = arith.constant dense<0.000000e+00> : vector<14x84xf32>
    %38 = tpu.matmul %35, %37, %cst_28 {dimension_numbers = #tpu.dot_dimension_numbers<[1], [0], [0], [1], [0, 0, 1, 1], [], []>} : vector<14x168xf32>, vector<168x84xf32>, vector<14x84xf32> -> vector<14x84xf32>
    %c1_29 = arith.constant 1 : index
    %c0_30 = arith.constant 0 : index
    %c0_31 = arith.constant 0 : index
    %39 = vector.load %arg5[%c1_29, %c0_30, %c0_31] : memref<2x168x84xf32, #tpu.memory_space<vmem>>, vector<1x168x84xf32>
    %40 = vector.shape_cast %39 : vector<1x168x84xf32> to vector<168x84xf32>
    %cst_32 = arith.constant dense<0.000000e+00> : vector<14x84xf32>
    %41 = tpu.matmul %35, %40, %cst_32 {dimension_numbers = #tpu.dot_dimension_numbers<[1], [0], [0], [1], [0, 0, 1, 1], [], []>} : vector<14x168xf32>, vector<168x84xf32>, vector<14x84xf32> -> vector<14x84xf32>
    %c1_33 = arith.constant 1 : index
    %c0_34 = arith.constant 0 : index
    %c0_35 = arith.constant 0 : index
    %42 = vector.load %arg4[%c1_33, %c0_34, %c0_35] : memref<2x14x28xf32, #tpu.memory_space<vmem>>, vector<1x14x28xf32>
    %43 = vector.shape_cast %42 : vector<1x14x28xf32> to vector<14x28xf32>
    %cst_36 = arith.constant dense<0.000000e+00> : vector<14x168xf32>
    %44 = tpu.matmul %43, %32, %cst_36 {dimension_numbers = #tpu.dot_dimension_numbers<[1], [0], [0], [1], [0, 0, 1, 1], [], []>} : vector<14x28xf32>, vector<28x168xf32>, vector<14x168xf32> -> vector<14x168xf32>
    %c0_37 = arith.constant 0 : index
    %c0_38 = arith.constant 0 : index
    %c0_39 = arith.constant 0 : index
    %45 = vector.load %arg5[%c0_37, %c0_38, %c0_39] : memref<2x168x84xf32, #tpu.memory_space<vmem>>, vector<1x168x84xf32>
    %46 = vector.shape_cast %45 : vector<1x168x84xf32> to vector<168x84xf32>
    %cst_40 = arith.constant dense<0.000000e+00> : vector<14x84xf32>
    %47 = tpu.matmul %44, %46, %cst_40 {dimension_numbers = #tpu.dot_dimension_numbers<[1], [0], [0], [1], [0, 0, 1, 1], [], []>} : vector<14x168xf32>, vector<168x84xf32>, vector<14x84xf32> -> vector<14x84xf32>
    %c1_41 = arith.constant 1 : index
    %c0_42 = arith.constant 0 : index
    %c0_43 = arith.constant 0 : index
    %48 = vector.load %arg5[%c1_41, %c0_42, %c0_43] : memref<2x168x84xf32, #tpu.memory_space<vmem>>, vector<1x168x84xf32>
    %49 = vector.shape_cast %48 : vector<1x168x84xf32> to vector<168x84xf32>
    %cst_44 = arith.constant dense<0.000000e+00> : vector<14x84xf32>
    %50 = tpu.matmul %44, %49, %cst_44 {dimension_numbers = #tpu.dot_dimension_numbers<[1], [0], [0], [1], [0, 0, 1, 1], [], []>} : vector<14x168xf32>, vector<168x84xf32>, vector<14x84xf32> -> vector<14x84xf32>
    %51 = arith.maximumf %38, %41 : vector<14x84xf32>
    %52 = arith.maximumf %47, %50 : vector<14x84xf32>
    %53 = arith.maximumf %51, %52 : vector<14x84xf32>
    %cst_45 = arith.constant 0.000000e+00 : f32
    %54 = vector.broadcast %cst_45 : f32 to vector<10x160xf32>
    %55 = vector.extract_strided_slice %53 {offsets = [0, 0], sizes = [10, 84], strides = [1, 1]} : vector<14x84xf32> to vector<10x84xf32>
    %c0_46 = arith.constant 0 : index
    %c0_47 = arith.constant 0 : index
    %c0_48 = arith.constant 0 : index
    %56 = vector.load %arg6[%c0_46, %c0_47, %c0_48] : memref<5x84x160xf32, #tpu.memory_space<vmem>>, vector<1x84x160xf32>
    %57 = vector.shape_cast %56 : vector<1x84x160xf32> to vector<84x160xf32>
    %cst_49 = arith.constant dense<0.000000e+00> : vector<10x160xf32>
    %58 = tpu.matmul %55, %57, %cst_49 {dimension_numbers = #tpu.dot_dimension_numbers<[1], [0], [0], [1], [0, 0, 1, 1], [], []>} : vector<10x84xf32>, vector<84x160xf32>, vector<10x160xf32> -> vector<10x160xf32>
    %59 = arith.addf %54, %58 : vector<10x160xf32>
    %60 = vector.extract_strided_slice %53 {offsets = [1, 0], sizes = [10, 84], strides = [1, 1]} : vector<14x84xf32> to vector<10x84xf32>
    %c1_50 = arith.constant 1 : index
    %c0_51 = arith.constant 0 : index
    %c0_52 = arith.constant 0 : index
    %61 = vector.load %arg6[%c1_50, %c0_51, %c0_52] : memref<5x84x160xf32, #tpu.memory_space<vmem>>, vector<1x84x160xf32>
    %62 = vector.shape_cast %61 : vector<1x84x160xf32> to vector<84x160xf32>
    %cst_53 = arith.constant dense<0.000000e+00> : vector<10x160xf32>
    %63 = tpu.matmul %60, %62, %cst_53 {dimension_numbers = #tpu.dot_dimension_numbers<[1], [0], [0], [1], [0, 0, 1, 1], [], []>} : vector<10x84xf32>, vector<84x160xf32>, vector<10x160xf32> -> vector<10x160xf32>
    %64 = arith.addf %59, %63 : vector<10x160xf32>
    %65 = vector.extract_strided_slice %53 {offsets = [2, 0], sizes = [10, 84], strides = [1, 1]} : vector<14x84xf32> to vector<10x84xf32>
    %c2_54 = arith.constant 2 : index
    %c0_55 = arith.constant 0 : index
    %c0_56 = arith.constant 0 : index
    %66 = vector.load %arg6[%c2_54, %c0_55, %c0_56] : memref<5x84x160xf32, #tpu.memory_space<vmem>>, vector<1x84x160xf32>
    %67 = vector.shape_cast %66 : vector<1x84x160xf32> to vector<84x160xf32>
    %cst_57 = arith.constant dense<0.000000e+00> : vector<10x160xf32>
    %68 = tpu.matmul %65, %67, %cst_57 {dimension_numbers = #tpu.dot_dimension_numbers<[1], [0], [0], [1], [0, 0, 1, 1], [], []>} : vector<10x84xf32>, vector<84x160xf32>, vector<10x160xf32> -> vector<10x160xf32>
    %69 = arith.addf %64, %68 : vector<10x160xf32>
    %70 = vector.extract_strided_slice %53 {offsets = [3, 0], sizes = [10, 84], strides = [1, 1]} : vector<14x84xf32> to vector<10x84xf32>
    %c3_58 = arith.constant 3 : index
    %c0_59 = arith.constant 0 : index
    %c0_60 = arith.constant 0 : index
    %71 = vector.load %arg6[%c3_58, %c0_59, %c0_60] : memref<5x84x160xf32, #tpu.memory_space<vmem>>, vector<1x84x160xf32>
    %72 = vector.shape_cast %71 : vector<1x84x160xf32> to vector<84x160xf32>
    %cst_61 = arith.constant dense<0.000000e+00> : vector<10x160xf32>
    %73 = tpu.matmul %70, %72, %cst_61 {dimension_numbers = #tpu.dot_dimension_numbers<[1], [0], [0], [1], [0, 0, 1, 1], [], []>} : vector<10x84xf32>, vector<84x160xf32>, vector<10x160xf32> -> vector<10x160xf32>
    %74 = arith.addf %69, %73 : vector<10x160xf32>
    %75 = vector.extract_strided_slice %53 {offsets = [4, 0], sizes = [10, 84], strides = [1, 1]} : vector<14x84xf32> to vector<10x84xf32>
    %c4_62 = arith.constant 4 : index
    %c0_63 = arith.constant 0 : index
    %c0_64 = arith.constant 0 : index
    %76 = vector.load %arg6[%c4_62, %c0_63, %c0_64] : memref<5x84x160xf32, #tpu.memory_space<vmem>>, vector<1x84x160xf32>
    %77 = vector.shape_cast %76 : vector<1x84x160xf32> to vector<84x160xf32>
    %cst_65 = arith.constant dense<0.000000e+00> : vector<10x160xf32>
    %78 = tpu.matmul %75, %77, %cst_65 {dimension_numbers = #tpu.dot_dimension_numbers<[1], [0], [0], [1], [0, 0, 1, 1], [], []>} : vector<10x84xf32>, vector<84x160xf32>, vector<10x160xf32> -> vector<10x160xf32>
    %79 = arith.addf %74, %78 : vector<10x160xf32>
    %c0_66 = arith.constant 0 : index
    %c0_67 = arith.constant 0 : index
    %80 = vector.load %arg7[%c0_66, %c0_67] : memref<1x160xf32, #tpu.memory_space<vmem>>, vector<1x160xf32>
    %81 = vector.broadcast %80 : vector<1x160xf32> to vector<10x160xf32>
    %82 = arith.addf %79, %81 : vector<10x160xf32>
    %cst_68 = arith.constant 0.000000e+00 : f32
    %83 = vector.broadcast %cst_68 : f32 to vector<10x160xf32>
    %84 = arith.maximumf %82, %83 : vector<10x160xf32>
    %c0_69 = arith.constant 0 : index
    %c0_70 = arith.constant 0 : index
    %c0_71 = arith.constant 0 : index
    %85 = vector.load %arg8[%c0_69, %c0_70, %c0_71] : memref<2x5x10xf32, #tpu.memory_space<vmem>>, vector<1x5x10xf32>
    %86 = vector.shape_cast %85 : vector<1x5x10xf32> to vector<5x10xf32>
    %cst_72 = arith.constant dense<0.000000e+00> : vector<5x160xf32>
    %87 = tpu.matmul %86, %84, %cst_72 {dimension_numbers = #tpu.dot_dimension_numbers<[1], [0], [0], [1], [0, 0, 1, 1], [], []>} : vector<5x10xf32>, vector<10x160xf32>, vector<5x160xf32> -> vector<5x160xf32>
    %c0_73 = arith.constant 0 : index
    %c0_74 = arith.constant 0 : index
    %c0_75 = arith.constant 0 : index
    %88 = vector.load %arg9[%c0_73, %c0_74, %c0_75] : memref<2x160x80xf32, #tpu.memory_space<vmem>>, vector<1x160x80xf32>
    %89 = vector.shape_cast %88 : vector<1x160x80xf32> to vector<160x80xf32>
    %cst_76 = arith.constant dense<0.000000e+00> : vector<5x80xf32>
    %90 = tpu.matmul %87, %89, %cst_76 {dimension_numbers = #tpu.dot_dimension_numbers<[1], [0], [0], [1], [0, 0, 1, 1], [], []>} : vector<5x160xf32>, vector<160x80xf32>, vector<5x80xf32> -> vector<5x80xf32>
    %c1_77 = arith.constant 1 : index
    %c0_78 = arith.constant 0 : index
    %c0_79 = arith.constant 0 : index
    %91 = vector.load %arg9[%c1_77, %c0_78, %c0_79] : memref<2x160x80xf32, #tpu.memory_space<vmem>>, vector<1x160x80xf32>
    %92 = vector.shape_cast %91 : vector<1x160x80xf32> to vector<160x80xf32>
    %cst_80 = arith.constant dense<0.000000e+00> : vector<5x80xf32>
    %93 = tpu.matmul %87, %92, %cst_80 {dimension_numbers = #tpu.dot_dimension_numbers<[1], [0], [0], [1], [0, 0, 1, 1], [], []>} : vector<5x160xf32>, vector<160x80xf32>, vector<5x80xf32> -> vector<5x80xf32>
    %c1_81 = arith.constant 1 : index
    %c0_82 = arith.constant 0 : index
    %c0_83 = arith.constant 0 : index
    %94 = vector.load %arg8[%c1_81, %c0_82, %c0_83] : memref<2x5x10xf32, #tpu.memory_space<vmem>>, vector<1x5x10xf32>
    %95 = vector.shape_cast %94 : vector<1x5x10xf32> to vector<5x10xf32>
    %cst_84 = arith.constant dense<0.000000e+00> : vector<5x160xf32>
    %96 = tpu.matmul %95, %84, %cst_84 {dimension_numbers = #tpu.dot_dimension_numbers<[1], [0], [0], [1], [0, 0, 1, 1], [], []>} : vector<5x10xf32>, vector<10x160xf32>, vector<5x160xf32> -> vector<5x160xf32>
    %c0_85 = arith.constant 0 : index
    %c0_86 = arith.constant 0 : index
    %c0_87 = arith.constant 0 : index
    %97 = vector.load %arg9[%c0_85, %c0_86, %c0_87] : memref<2x160x80xf32, #tpu.memory_space<vmem>>, vector<1x160x80xf32>
    %98 = vector.shape_cast %97 : vector<1x160x80xf32> to vector<160x80xf32>
    %cst_88 = arith.constant dense<0.000000e+00> : vector<5x80xf32>
    %99 = tpu.matmul %96, %98, %cst_88 {dimension_numbers = #tpu.dot_dimension_numbers<[1], [0], [0], [1], [0, 0, 1, 1], [], []>} : vector<5x160xf32>, vector<160x80xf32>, vector<5x80xf32> -> vector<5x80xf32>
    %c1_89 = arith.constant 1 : index
    %c0_90 = arith.constant 0 : index
    %c0_91 = arith.constant 0 : index
    %100 = vector.load %arg9[%c1_89, %c0_90, %c0_91] : memref<2x160x80xf32, #tpu.memory_space<vmem>>, vector<1x160x80xf32>
    %101 = vector.shape_cast %100 : vector<1x160x80xf32> to vector<160x80xf32>
    %cst_92 = arith.constant dense<0.000000e+00> : vector<5x80xf32>
    %102 = tpu.matmul %96, %101, %cst_92 {dimension_numbers = #tpu.dot_dimension_numbers<[1], [0], [0], [1], [0, 0, 1, 1], [], []>} : vector<5x160xf32>, vector<160x80xf32>, vector<5x80xf32> -> vector<5x80xf32>
    %103 = arith.maximumf %90, %93 : vector<5x80xf32>
    %104 = arith.maximumf %99, %102 : vector<5x80xf32>
    %105 = arith.maximumf %103, %104 : vector<5x80xf32>
    %c0_93 = arith.constant 0 : index
    %c0_94 = arith.constant 0 : index
    %106 = vector.load %arg11[%c0_93, %c0_94] : memref<1x120xf32, #tpu.memory_space<vmem>>, vector<1x120xf32>
    %107 = vector.extract_strided_slice %105 {offsets = [0, 0], sizes = [1, 80], strides = [1, 1]} : vector<5x80xf32> to vector<1x80xf32>
    %c0_95 = arith.constant 0 : index
    %c0_96 = arith.constant 0 : index
    %c0_97 = arith.constant 0 : index
    %108 = vector.load %arg10[%c0_95, %c0_96, %c0_97] : memref<5x80x120xf32, #tpu.memory_space<vmem>>, vector<1x80x120xf32>
    %109 = vector.shape_cast %108 : vector<1x80x120xf32> to vector<80x120xf32>
    %cst_98 = arith.constant dense<0.000000e+00> : vector<1x120xf32>
    %110 = tpu.matmul %107, %109, %cst_98 {dimension_numbers = #tpu.dot_dimension_numbers<[1], [0], [0], [1], [0, 0, 1, 1], [], []>} : vector<1x80xf32>, vector<80x120xf32>, vector<1x120xf32> -> vector<1x120xf32>
    %111 = arith.addf %106, %110 : vector<1x120xf32>
    %112 = vector.extract_strided_slice %105 {offsets = [1, 0], sizes = [1, 80], strides = [1, 1]} : vector<5x80xf32> to vector<1x80xf32>
    %c1_99 = arith.constant 1 : index
    %c0_100 = arith.constant 0 : index
    %c0_101 = arith.constant 0 : index
    %113 = vector.load %arg10[%c1_99, %c0_100, %c0_101] : memref<5x80x120xf32, #tpu.memory_space<vmem>>, vector<1x80x120xf32>
    %114 = vector.shape_cast %113 : vector<1x80x120xf32> to vector<80x120xf32>
    %cst_102 = arith.constant dense<0.000000e+00> : vector<1x120xf32>
    %115 = tpu.matmul %112, %114, %cst_102 {dimension_numbers = #tpu.dot_dimension_numbers<[1], [0], [0], [1], [0, 0, 1, 1], [], []>} : vector<1x80xf32>, vector<80x120xf32>, vector<1x120xf32> -> vector<1x120xf32>
    %116 = arith.addf %111, %115 : vector<1x120xf32>
    %117 = vector.extract_strided_slice %105 {offsets = [2, 0], sizes = [1, 80], strides = [1, 1]} : vector<5x80xf32> to vector<1x80xf32>
    %c2_103 = arith.constant 2 : index
    %c0_104 = arith.constant 0 : index
    %c0_105 = arith.constant 0 : index
    %118 = vector.load %arg10[%c2_103, %c0_104, %c0_105] : memref<5x80x120xf32, #tpu.memory_space<vmem>>, vector<1x80x120xf32>
    %119 = vector.shape_cast %118 : vector<1x80x120xf32> to vector<80x120xf32>
    %cst_106 = arith.constant dense<0.000000e+00> : vector<1x120xf32>
    %120 = tpu.matmul %117, %119, %cst_106 {dimension_numbers = #tpu.dot_dimension_numbers<[1], [0], [0], [1], [0, 0, 1, 1], [], []>} : vector<1x80xf32>, vector<80x120xf32>, vector<1x120xf32> -> vector<1x120xf32>
    %121 = arith.addf %116, %120 : vector<1x120xf32>
    %122 = vector.extract_strided_slice %105 {offsets = [3, 0], sizes = [1, 80], strides = [1, 1]} : vector<5x80xf32> to vector<1x80xf32>
    %c3_107 = arith.constant 3 : index
    %c0_108 = arith.constant 0 : index
    %c0_109 = arith.constant 0 : index
    %123 = vector.load %arg10[%c3_107, %c0_108, %c0_109] : memref<5x80x120xf32, #tpu.memory_space<vmem>>, vector<1x80x120xf32>
    %124 = vector.shape_cast %123 : vector<1x80x120xf32> to vector<80x120xf32>
    %cst_110 = arith.constant dense<0.000000e+00> : vector<1x120xf32>
    %125 = tpu.matmul %122, %124, %cst_110 {dimension_numbers = #tpu.dot_dimension_numbers<[1], [0], [0], [1], [0, 0, 1, 1], [], []>} : vector<1x80xf32>, vector<80x120xf32>, vector<1x120xf32> -> vector<1x120xf32>
    %126 = arith.addf %121, %125 : vector<1x120xf32>
    %127 = vector.extract_strided_slice %105 {offsets = [4, 0], sizes = [1, 80], strides = [1, 1]} : vector<5x80xf32> to vector<1x80xf32>
    %c4_111 = arith.constant 4 : index
    %c0_112 = arith.constant 0 : index
    %c0_113 = arith.constant 0 : index
    %128 = vector.load %arg10[%c4_111, %c0_112, %c0_113] : memref<5x80x120xf32, #tpu.memory_space<vmem>>, vector<1x80x120xf32>
    %129 = vector.shape_cast %128 : vector<1x80x120xf32> to vector<80x120xf32>
    %cst_114 = arith.constant dense<0.000000e+00> : vector<1x120xf32>
    %130 = tpu.matmul %127, %129, %cst_114 {dimension_numbers = #tpu.dot_dimension_numbers<[1], [0], [0], [1], [0, 0, 1, 1], [], []>} : vector<1x80xf32>, vector<80x120xf32>, vector<1x120xf32> -> vector<1x120xf32>
    %131 = arith.addf %126, %130 : vector<1x120xf32>
    %cst_115 = arith.constant 0.000000e+00 : f32
    %132 = vector.broadcast %cst_115 : f32 to vector<1x120xf32>
    %133 = arith.maximumf %131, %132 : vector<1x120xf32>
    %c0_116 = arith.constant 0 : index
    %c0_117 = arith.constant 0 : index
    %134 = vector.load %arg12[%c0_116, %c0_117] : memref<120x84xf32, #tpu.memory_space<vmem>>, vector<120x84xf32>
    %cst_118 = arith.constant dense<0.000000e+00> : vector<1x84xf32>
    %135 = tpu.matmul %133, %134, %cst_118 {dimension_numbers = #tpu.dot_dimension_numbers<[1], [0], [0], [1], [0, 0, 1, 1], [], []>} : vector<1x120xf32>, vector<120x84xf32>, vector<1x84xf32> -> vector<1x84xf32>
    %c0_119 = arith.constant 0 : index
    %c0_120 = arith.constant 0 : index
    %136 = vector.load %arg13[%c0_119, %c0_120] : memref<1x84xf32, #tpu.memory_space<vmem>>, vector<1x84xf32>
    %137 = arith.addf %135, %136 : vector<1x84xf32>
    %cst_121 = arith.constant 0.000000e+00 : f32
    %138 = vector.broadcast %cst_121 : f32 to vector<1x84xf32>
    %139 = arith.maximumf %137, %138 : vector<1x84xf32>
    %c0_122 = arith.constant 0 : index
    %c0_123 = arith.constant 0 : index
    %140 = vector.load %arg14[%c0_122, %c0_123] : memref<84x10xf32, #tpu.memory_space<vmem>>, vector<84x10xf32>
    %cst_124 = arith.constant dense<0.000000e+00> : vector<1x10xf32>
    %141 = tpu.matmul %139, %140, %cst_124 {dimension_numbers = #tpu.dot_dimension_numbers<[1], [0], [0], [1], [0, 0, 1, 1], [], []>} : vector<1x84xf32>, vector<84x10xf32>, vector<1x10xf32> -> vector<1x10xf32>
    %c0_125 = arith.constant 0 : index
    %c0_126 = arith.constant 0 : index
    %142 = vector.load %arg15[%c0_125, %c0_126] : memref<1x10xf32, #tpu.memory_space<vmem>>, vector<1x10xf32>
    %143 = arith.addf %141, %142 : vector<1x10xf32>
    %c0_127 = arith.constant 0 : index
    %c0_128 = arith.constant 0 : index
    %c0_129 = arith.constant 0 : index
    %144 = vector.load %arg16[%c0_127, %c0_128, %c0_129] : memref<1x1x10xf32, #tpu.memory_space<vmem>>, vector<1x1x10xf32>
    %145 = vector.shape_cast %144 : vector<1x1x10xf32> to vector<1x10xf32>
    %146 = vector.shape_cast %143 : vector<1x10xf32> to vector<1x1x10xf32>
    tpu.vector_store %arg16[%c0_127, %c0_128, %c0_129], %146 {strides = array<i32>} : memref<1x1x10xf32, #tpu.memory_space<vmem>>, vector<1x1x10xf32>,
    return
  }
  func.func @transform_0(%arg0: i32) -> (i32, i32, i32) {
    %c0_i32 = arith.constant 0 : i32
    %c0_i32_0 = arith.constant 0 : i32
    %c0_i32_1 = arith.constant 0 : i32
    return %arg0, %c0_i32, %c0_i32_0 : i32, i32, i32
  }
  func.func @transform_1(%arg0: i32) -> (i32, i32, i32) {
    %c0_i32 = arith.constant 0 : i32
    %c0_i32_0 = arith.constant 0 : i32
    %c0_i32_1 = arith.constant 0 : i32
    %c0_i32_2 = arith.constant 0 : i32
    return %c0_i32, %c0_i32_0, %c0_i32_1 : i32, i32, i32
  }
  func.func @transform_2(%arg0: i32) -> (i32, i32) {
    %c0_i32 = arith.constant 0 : i32
    %c0_i32_0 = arith.constant 0 : i32
    %c0_i32_1 = arith.constant 0 : i32
    return %c0_i32, %c0_i32_0 : i32, i32
  }
  func.func @transform_3(%arg0: i32) -> (i32, i32, i32) {
    %c0_i32 = arith.constant 0 : i32
    %c0_i32_0 = arith.constant 0 : i32
    %c0_i32_1 = arith.constant 0 : i32
    %c0_i32_2 = arith.constant 0 : i32
    return %c0_i32, %c0_i32_0, %c0_i32_1 : i32, i32, i32
  }
  func.func @transform_4(%arg0: i32) -> (i32, i32, i32) {
    %c0_i32 = arith.constant 0 : i32
    %c0_i32_0 = arith.constant 0 : i32
    %c0_i32_1 = arith.constant 0 : i32
    %c0_i32_2 = arith.constant 0 : i32
    return %c0_i32, %c0_i32_0, %c0_i32_1 : i32, i32, i32
  }
  func.func @transform_5(%arg0: i32) -> (i32, i32, i32) {
    %c0_i32 = arith.constant 0 : i32
    %c0_i32_0 = arith.constant 0 : i32
    %c0_i32_1 = arith.constant 0 : i32
    %c0_i32_2 = arith.constant 0 : i32
    return %c0_i32, %c0_i32_0, %c0_i32_1 : i32, i32, i32
  }
  func.func @transform_6(%arg0: i32) -> (i32, i32) {
    %c0_i32 = arith.constant 0 : i32
    %c0_i32_0 = arith.constant 0 : i32
    %c0_i32_1 = arith.constant 0 : i32
    return %c0_i32, %c0_i32_0 : i32, i32
  }
  func.func @transform_7(%arg0: i32) -> (i32, i32, i32) {
    %c0_i32 = arith.constant 0 : i32
    %c0_i32_0 = arith.constant 0 : i32
    %c0_i32_1 = arith.constant 0 : i32
    %c0_i32_2 = arith.constant 0 : i32
    return %c0_i32, %c0_i32_0, %c0_i32_1 : i32, i32, i32
  }
  func.func @transform_8(%arg0: i32) -> (i32, i32, i32) {
    %c0_i32 = arith.constant 0 : i32
    %c0_i32_0 = arith.constant 0 : i32
    %c0_i32_1 = arith.constant 0 : i32
    %c0_i32_2 = arith.constant 0 : i32
    return %c0_i32, %c0_i32_0, %c0_i32_1 : i32, i32, i32
  }
  func.func @transform_9(%arg0: i32) -> (i32, i32, i32) {
    %c0_i32 = arith.constant 0 : i32
    %c0_i32_0 = arith.constant 0 : i32
    %c0_i32_1 = arith.constant 0 : i32
    %c0_i32_2 = arith.constant 0 : i32
    return %c0_i32, %c0_i32_0, %c0_i32_1 : i32, i32, i32
  }
  func.func @transform_10(%arg0: i32) -> (i32, i32) {
    %c0_i32 = arith.constant 0 : i32
    %c0_i32_0 = arith.constant 0 : i32
    %c0_i32_1 = arith.constant 0 : i32
    return %c0_i32, %c0_i32_0 : i32, i32
  }
  func.func @transform_11(%arg0: i32) -> (i32, i32) {
    %c0_i32 = arith.constant 0 : i32
    %c0_i32_0 = arith.constant 0 : i32
    %c0_i32_1 = arith.constant 0 : i32
    return %c0_i32, %c0_i32_0 : i32, i32
  }
  func.func @transform_12(%arg0: i32) -> (i32, i32) {
    %c0_i32 = arith.constant 0 : i32
    %c0_i32_0 = arith.constant 0 : i32
    %c0_i32_1 = arith.constant 0 : i32
    return %c0_i32, %c0_i32_0 : i32, i32
  }
  func.func @transform_13(%arg0: i32) -> (i32, i32) {
    %c0_i32 = arith.constant 0 : i32
    %c0_i32_0 = arith.constant 0 : i32
    %c0_i32_1 = arith.constant 0 : i32
    return %c0_i32, %c0_i32_0 : i32, i32
  }
  func.func @transform_14(%arg0: i32) -> (i32, i32) {
    %c0_i32 = arith.constant 0 : i32
    %c0_i32_0 = arith.constant 0 : i32
    %c0_i32_1 = arith.constant 0 : i32
    return %c0_i32, %c0_i32_0 : i32, i32
  }
  func.func @transform_15(%arg0: i32) -> (i32, i32, i32) {
    %c0_i32 = arith.constant 0 : i32
    %c0_i32_0 = arith.constant 0 : i32
    %c0_i32_1 = arith.constant 0 : i32
    return %arg0, %c0_i32, %c0_i32_0 : i32, i32, i32
  }
}

</mosaic_0001>

<llo_original>
// kernel: lenet_forward.1
$region0: #{lenet_forward.1}
  #allocation0 [shape = 'u32[]', space=smem, size = 0x4, offset = 0x4, fixed_abs, tag = 'smem constant byte address 0x4 - core index']
  #allocation1 [shape = 'u32[144,128]{1,0:T(1,128)}', space=vmem, size = 0x12000, scoped, tag = 'internal scratch']
  %s0 = inlined_call_operand.vmem [shape: f32[2,32,32], index: 0, kind: input, shape index: {}]
  %s1 = inlined_call_operand.vmem [shape: f32[5,32,168], index: 1, kind: input, shape index: {}]
  %s2 = inlined_call_operand.vmem [shape: f32[1,168], index: 2, kind: input, shape index: {}]
  %s3 = inlined_call_operand.vmem [shape: f32[2,14,28], index: 3, kind: input, shape index: {}]
  %s4 = inlined_call_operand.vmem [shape: f32[2,168,84], index: 4, kind: input, shape index: {}]
  %s5 = inlined_call_operand.vmem [shape: f32[5,84,160], index: 5, kind: input, shape index: {}]
  %s6 = inlined_call_operand.vmem [shape: f32[1,160], index: 6, kind: input, shape index: {}]
  %s7 = inlined_call_operand.vmem [shape: f32[2,5,10], index: 7, kind: input, shape index: {}]
  %s8 = inlined_call_operand.vmem [shape: f32[2,160,80], index: 8, kind: input, shape index: {}]
  %s9 = inlined_call_operand.vmem [shape: f32[5,80,120], index: 9, kind: input, shape index: {}]
  %s10 = inlined_call_operand.vmem [shape: f32[1,120], index: 10, kind: input, shape index: {}]
  %s11 = inlined_call_operand.vmem [shape: f32[120,84], index: 11, kind: input, shape index: {}]
  %s12 = inlined_call_operand.vmem [shape: f32[1,84], index: 12, kind: input, shape index: {}]
  %s13 = inlined_call_operand.vmem [shape: f32[84,10], index: 13, kind: input, shape index: {}]
  %s14 = inlined_call_operand.vmem [shape: f32[1,10], index: 14, kind: input, shape index: {}]
  %s15 = inlined_call_operand.hbm [shape: f32[2,1,10], index: 15, kind: output, shape index: {}]
  %s16 = sld [smem:[#allocation0]]
  $region93: #{lenet_forward.1} parent=0
    _
  %s18 = ssub.s32 1, %s16
  %s19 = scalar_select 0, %s18, %s16
  $region1: #{lenet_forward.1} parent=0
    #allocation2 [shape = 'u8[1024]{0}', space=vmem, size = 0x400, scoped, tag = 'output window, operand 0']
    #allocation3 [shape = 's32[2]{0}', space=sflag, size = 0x8, scoped, tag = 'scoped memory for lenet_forward.1']
    %20 = vsyncpa [#allocation3], 0
    %s21 = scalar_lea.sflag [#allocation3], 1
    %22 = vsyncpa %s21, 0
    loop: start=0, step=1, limit=4
    $region2: #{lenet_forward.1} parent=1 // loop_pre_header
      _
    $region3: #{lenet_forward.1} parent=1 // loop_header
      %s24 = sphi 0, %s28
      %p25 = scmp.ge.s32.totalorder %s24, 4
      %s34 = sphi 0, %s36
      %s37 = sphi 0, %s34
      %s38 = sphi 0, %s37
      %s54 = sphi 0, %s38
      %s58 = sphi 0, %s58
      %s60 = sphi 0, %s58
      %s61 = sphi 0, %s60
      %s75 = sphi 0, %s61
      %s79 = sphi 0, %s79
      %s81 = sphi 0, %s79
      %s82 = sphi 0, %s81
      %s96 = sphi 0, %s82
      %s100 = sphi 0, %s100
      %s102 = sphi 0, %s100
      %s103 = sphi 0, %s102
      %s117 = sphi 0, %s103
      %s121 = sphi 0, %s121
      %s123 = sphi 0, %s121
      %s124 = sphi 0, %s123
      %s138 = sphi 0, %s124
      %s142 = sphi 0, %s142
      %s144 = sphi 0, %s142
      %s145 = sphi 0, %s144
      %s159 = sphi 0, %s145
      %s163 = sphi 0, %s163
      %s165 = sphi 0, %s163
      %s166 = sphi 0, %s165
      %s180 = sphi 0, %s166
      %s184 = sphi 0, %s184
      %s186 = sphi 0, %s184
      %s187 = sphi 0, %s186
      %s201 = sphi 0, %s187
      %s205 = sphi 0, %s205
      %s207 = sphi 0, %s205
      %s208 = sphi 0, %s207
      %s222 = sphi 0, %s208
      %s226 = sphi 0, %s226
      %s228 = sphi 0, %s226
      %s229 = sphi 0, %s228
      %s243 = sphi 0, %s229
      %s247 = sphi 0, %s247
      %s249 = sphi 0, %s247
      %s250 = sphi 0, %s249
      %s264 = sphi 0, %s250
      %s268 = sphi 0, %s268
      %s270 = sphi 0, %s268
      %s271 = sphi 0, %s270
      %s285 = sphi 0, %s271
      %s289 = sphi 0, %s289
      %s291 = sphi 0, %s289
      %s292 = sphi 0, %s291
      %s306 = sphi 0, %s292
      %s310 = sphi 0, %s310
      %s312 = sphi 0, %s310
      %s313 = sphi 0, %s312
      %s327 = sphi 0, %s313
      %s331 = sphi 0, %s331
      %s333 = sphi 0, %s331
      %s334 = sphi 0, %s333
      %s348 = sphi 0, %s334
      %s354 = sphi 0, %s356
      %s357 = sphi 0, %s354
      %s358 = sphi 0, %s357
      %s374 = sphi 0, %s358
    $region4: #{lenet_forward.1} parent=1 // loop_header_branch
      %27 = sbr.rel (%p25) target = $region8
    $region5: #{lenet_forward.1} parent=1 // loop_body
      %s29 = ssub.s32 %s24, 1
      %s30 = ssub.s32 %s24, 2
      %s31 = sadd.s32 %s24, 1
      %s32 = ssub.s32 %s24, %s31
      %p33 = scmp.eq.s32.totalorder %s32, 0
      %s35 = sadd.s32 %s34, 1
      %s36 = scalar_select %p33, %s34, %s35
      %p39 = pneg %p33
      %p40 = scmp.eq.s32.totalorder %s24, 1
      %p41 = por %p39, %p40
      %p42 = scmp.ne.s32.totalorder %s34, %s37
      %p43 = scmp.eq.s32.totalorder %s24, 0
      %p44 = por %p42, %p43
      %p45 = scmp.ne.s32.totalorder %s34, %s37
      %p46 = scmp.eq.s32.totalorder %s29, 1
      %p47 = por %p45, %p46
      %p48 = scmp.ne.s32.totalorder %s37, %s38
      %p49 = scmp.eq.s32.totalorder %s29, 0
      %p50 = por %p48, %p49
      %p51 = scmp.ne.s32.totalorder %s37, %s38
      %p52 = scmp.eq.s32.totalorder %s30, 1
      %p53 = por %p51, %p52
      %p55 = scmp.ne.s32.totalorder %s38, %s54
      %p56 = scmp.eq.s32.totalorder %s30, 0
      %p57 = por %p55, %p56
      %s59 = sadd.s32 %s58, 1
      %p62 = scmp.eq.s32.totalorder %s24, 1
      %p63 = scmp.ne.s32.totalorder %s58, %s60
      %p64 = scmp.eq.s32.totalorder %s24, 0
      %p65 = por %p63, %p64
      %p66 = scmp.ne.s32.totalorder %s58, %s60
      %p67 = scmp.eq.s32.totalorder %s29, 1
      %p68 = por %p66, %p67
      %p69 = scmp.ne.s32.totalorder %s60, %s61
      %p70 = scmp.eq.s32.totalorder %s29, 0
      %p71 = por %p69, %p70
      %p72 = scmp.ne.s32.totalorder %s60, %s61
      %p73 = scmp.eq.s32.totalorder %s30, 1
      %p74 = por %p72, %p73
      %p76 = scmp.ne.s32.totalorder %s61, %s75
      %p77 = scmp.eq.s32.totalorder %s30, 0
      %p78 = por %p76, %p77
      %s80 = sadd.s32 %s79, 1
      %p83 = scmp.eq.s32.totalorder %s24, 1
      %p84 = scmp.ne.s32.totalorder %s79, %s81
      %p85 = scmp.eq.s32.totalorder %s24, 0
      %p86 = por %p84, %p85
      %p87 = scmp.ne.s32.totalorder %s79, %s81
      %p88 = scmp.eq.s32.totalorder %s29, 1
      %p89 = por %p87, %p88
      %p90 = scmp.ne.s32.totalorder %s81, %s82
      %p91 = scmp.eq.s32.totalorder %s29, 0
      %p92 = por %p90, %p91
      %p93 = scmp.ne.s32.totalorder %s81, %s82
      %p94 = scmp.eq.s32.totalorder %s30, 1
      %p95 = por %p93, %p94
      %p97 = scmp.ne.s32.totalorder %s82, %s96
      %p98 = scmp.eq.s32.totalorder %s30, 0
      %p99 = por %p97, %p98
      %s101 = sadd.s32 %s100, 1
      %p104 = scmp.eq.s32.totalorder %s24, 1
      %p105 = scmp.ne.s32.totalorder %s100, %s102
      %p106 = scmp.eq.s32.totalorder %s24, 0
      %p107 = por %p105, %p106
      %p108 = scmp.ne.s32.totalorder %s100, %s102
      %p109 = scmp.eq.s32.totalorder %s29, 1
      %p110 = por %p108, %p109
      %p111 = scmp.ne.s32.totalorder %s102, %s103
      %p112 = scmp.eq.s32.totalorder %s29, 0
      %p113 = por %p111, %p112
      %p114 = scmp.ne.s32.totalorder %s102, %s103
      %p115 = scmp.eq.s32.totalorder %s30, 1
      %p116 = por %p114, %p115
      %p118 = scmp.ne.s32.totalorder %s103, %s117
      %p119 = scmp.eq.s32.totalorder %s30, 0
      %p120 = por %p118, %p119
      %s122 = sadd.s32 %s121, 1
      %p125 = scmp.eq.s32.totalorder %s24, 1
      %p126 = scmp.ne.s32.totalorder %s121, %s123
      %p127 = scmp.eq.s32.totalorder %s24, 0
      %p128 = por %p126, %p127
      %p129 = scmp.ne.s32.totalorder %s121, %s123
      %p130 = scmp.eq.s32.totalorder %s29, 1
      %p131 = por %p129, %p130
      %p132 = scmp.ne.s32.totalorder %s123, %s124
      %p133 = scmp.eq.s32.totalorder %s29, 0
      %p134 = por %p132, %p133
      %p135 = scmp.ne.s32.totalorder %s123, %s124
      %p136 = scmp.eq.s32.totalorder %s30, 1
      %p137 = por %p135, %p136
      %p139 = scmp.ne.s32.totalorder %s124, %s138
      %p140 = scmp.eq.s32.totalorder %s30, 0
      %p141 = por %p139, %p140
      %s143 = sadd.s32 %s142, 1
      %p146 = scmp.eq.s32.totalorder %s24, 1
      %p147 = scmp.ne.s32.totalorder %s142, %s144
      %p148 = scmp.eq.s32.totalorder %s24, 0
      %p149 = por %p147, %p148
      %p150 = scmp.ne.s32.totalorder %s142, %s144
      %p151 = scmp.eq.s32.totalorder %s29, 1
      %p152 = por %p150, %p151
      %p153 = scmp.ne.s32.totalorder %s144, %s145
      %p154 = scmp.eq.s32.totalorder %s29, 0
      %p155 = por %p153, %p154
      %p156 = scmp.ne.s32.totalorder %s144, %s145
      %p157 = scmp.eq.s32.totalorder %s30, 1
      %p158 = por %p156, %p157
      %p160 = scmp.ne.s32.totalorder %s145, %s159
      %p161 = scmp.eq.s32.totalorder %s30, 0
      %p162 = por %p160, %p161
      %s164 = sadd.s32 %s163, 1
      %p167 = scmp.eq.s32.totalorder %s24, 1
      %p168 = scmp.ne.s32.totalorder %s163, %s165
      %p169 = scmp.eq.s32.totalorder %s24, 0
      %p170 = por %p168, %p169
      %p171 = scmp.ne.s32.totalorder %s163, %s165
      %p172 = scmp.eq.s32.totalorder %s29, 1
      %p173 = por %p171, %p172
      %p174 = scmp.ne.s32.totalorder %s165, %s166
      %p175 = scmp.eq.s32.totalorder %s29, 0
      %p176 = por %p174, %p175
      %p177 = scmp.ne.s32.totalorder %s165, %s166
      %p178 = scmp.eq.s32.totalorder %s30, 1
      %p179 = por %p177, %p178
      %p181 = scmp.ne.s32.totalorder %s166, %s180
      %p182 = scmp.eq.s32.totalorder %s30, 0
      %p183 = por %p181, %p182
      %s185 = sadd.s32 %s184, 1
      %p188 = scmp.eq.s32.totalorder %s24, 1
      %p189 = scmp.ne.s32.totalorder %s184, %s186
      %p190 = scmp.eq.s32.totalorder %s24, 0
      %p191 = por %p189, %p190
      %p192 = scmp.ne.s32.totalorder %s184, %s186
      %p193 = scmp.eq.s32.totalorder %s29, 1
      %p194 = por %p192, %p193
      %p195 = scmp.ne.s32.totalorder %s186, %s187
      %p196 = scmp.eq.s32.totalorder %s29, 0
      %p197 = por %p195, %p196
      %p198 = scmp.ne.s32.totalorder %s186, %s187
      %p199 = scmp.eq.s32.totalorder %s30, 1
      %p200 = por %p198, %p199
      %p202 = scmp.ne.s32.totalorder %s187, %s201
      %p203 = scmp.eq.s32.totalorder %s30, 0
      %p204 = por %p202, %p203
      %s206 = sadd.s32 %s205, 1
      %p209 = scmp.eq.s32.totalorder %s24, 1
      %p210 = scmp.ne.s32.totalorder %s205, %s207
      %p211 = scmp.eq.s32.totalorder %s24, 0
      %p212 = por %p210, %p211
      %p213 = scmp.ne.s32.totalorder %s205, %s207
      %p214 = scmp.eq.s32.totalorder %s29, 1
      %p215 = por %p213, %p214
      %p216 = scmp.ne.s32.totalorder %s207, %s208
      %p217 = scmp.eq.s32.totalorder %s29, 0
      %p218 = por %p216, %p217
      %p219 = scmp.ne.s32.totalorder %s207, %s208
      %p220 = scmp.eq.s32.totalorder %s30, 1
      %p221 = por %p219, %p220
      %p223 = scmp.ne.s32.totalorder %s208, %s222
      %p224 = scmp.eq.s32.totalorder %s30, 0
      %p225 = por %p223, %p224
      %s227 = sadd.s32 %s226, 1
      %p230 = scmp.eq.s32.totalorder %s24, 1
      %p231 = scmp.ne.s32.totalorder %s226, %s228
      %p232 = scmp.eq.s32.totalorder %s24, 0
      %p233 = por %p231, %p232
      %p234 = scmp.ne.s32.totalorder %s226, %s228
      %p235 = scmp.eq.s32.totalorder %s29, 1
      %p236 = por %p234, %p235
      %p237 = scmp.ne.s32.totalorder %s228, %s229
      %p238 = scmp.eq.s32.totalorder %s29, 0
      %p239 = por %p237, %p238
      %p240 = scmp.ne.s32.totalorder %s228, %s229
      %p241 = scmp.eq.s32.totalorder %s30, 1
      %p242 = por %p240, %p241
      %p244 = scmp.ne.s32.totalorder %s229, %s243
      %p245 = scmp.eq.s32.totalorder %s30, 0
      %p246 = por %p244, %p245
      %s248 = sadd.s32 %s247, 1
      %p251 = scmp.eq.s32.totalorder %s24, 1
      %p252 = scmp.ne.s32.totalorder %s247, %s249
      %p253 = scmp.eq.s32.totalorder %s24, 0
      %p254 = por %p252, %p253
      %p255 = scmp.ne.s32.totalorder %s247, %s249
      %p256 = scmp.eq.s32.totalorder %s29, 1
      %p257 = por %p255, %p256
      %p258 = scmp.ne.s32.totalorder %s249, %s250
      %p259 = scmp.eq.s32.totalorder %s29, 0
      %p260 = por %p258, %p259
      %p261 = scmp.ne.s32.totalorder %s249, %s250
      %p262 = scmp.eq.s32.totalorder %s30, 1
      %p263 = por %p261, %p262
      %p265 = scmp.ne.s32.totalorder %s250, %s264
      %p266 = scmp.eq.s32.totalorder %s30, 0
      %p267 = por %p265, %p266
      %s269 = sadd.s32 %s268, 1
      %p272 = scmp.eq.s32.totalorder %s24, 1
      %p273 = scmp.ne.s32.totalorder %s268, %s270
      %p274 = scmp.eq.s32.totalorder %s24, 0
      %p275 = por %p273, %p274
      %p276 = scmp.ne.s32.totalorder %s268, %s270
      %p277 = scmp.eq.s32.totalorder %s29, 1
      %p278 = por %p276, %p277
      %p279 = scmp.ne.s32.totalorder %s270, %s271
      %p280 = scmp.eq.s32.totalorder %s29, 0
      %p281 = por %p279, %p280
      %p282 = scmp.ne.s32.totalorder %s270, %s271
      %p283 = scmp.eq.s32.totalorder %s30, 1
      %p284 = por %p282, %p283
      %p286 = scmp.ne.s32.totalorder %s271, %s285
      %p287 = scmp.eq.s32.totalorder %s30, 0
      %p288 = por %p286, %p287
      %s290 = sadd.s32 %s289, 1
      %p293 = scmp.eq.s32.totalorder %s24, 1
      %p294 = scmp.ne.s32.totalorder %s289, %s291
      %p295 = scmp.eq.s32.totalorder %s24, 0
      %p296 = por %p294, %p295
      %p297 = scmp.ne.s32.totalorder %s289, %s291
      %p298 = scmp.eq.s32.totalorder %s29, 1
      %p299 = por %p297, %p298
      %p300 = scmp.ne.s32.totalorder %s291, %s292
      %p301 = scmp.eq.s32.totalorder %s29, 0
      %p302 = por %p300, %p301
      %p303 = scmp.ne.s32.totalorder %s291, %s292
      %p304 = scmp.eq.s32.totalorder %s30, 1
      %p305 = por %p303, %p304
      %p307 = scmp.ne.s32.totalorder %s292, %s306
      %p308 = scmp.eq.s32.totalorder %s30, 0
      %p309 = por %p307, %p308
      %s311 = sadd.s32 %s310, 1
      %p314 = scmp.eq.s32.totalorder %s24, 1
      %p315 = scmp.ne.s32.totalorder %s310, %s312
      %p316 = scmp.eq.s32.totalorder %s24, 0
      %p317 = por %p315, %p316
      %p318 = scmp.ne.s32.totalorder %s310, %s312
      %p319 = scmp.eq.s32.totalorder %s29, 1
      %p320 = por %p318, %p319
      %p321 = scmp.ne.s32.totalorder %s312, %s313
      %p322 = scmp.eq.s32.totalorder %s29, 0
      %p323 = por %p321, %p322
      %p324 = scmp.ne.s32.totalorder %s312, %s313
      %p325 = scmp.eq.s32.totalorder %s30, 1
      %p326 = por %p324, %p325
      %p328 = scmp.ne.s32.totalorder %s313, %s327
      %p329 = scmp.eq.s32.totalorder %s30, 0
      %p330 = por %p328, %p329
      %s332 = sadd.s32 %s331, 1
      %p335 = scmp.eq.s32.totalorder %s24, 1
      %p336 = scmp.ne.s32.totalorder %s331, %s333
      %p337 = scmp.eq.s32.totalorder %s24, 0
      %p338 = por %p336, %p337
      %p339 = scmp.ne.s32.totalorder %s331, %s333
      %p340 = scmp.eq.s32.totalorder %s29, 1
      %p341 = por %p339, %p340
      %p342 = scmp.ne.s32.totalorder %s333, %s334
      %p343 = scmp.eq.s32.totalorder %s29, 0
      %p344 = por %p342, %p343
      %p345 = scmp.ne.s32.totalorder %s333, %s334
      %p346 = scmp.eq.s32.totalorder %s30, 1
      %p347 = por %p345, %p346
      %p349 = scmp.ne.s32.totalorder %s334, %s348
      %p350 = scmp.eq.s32.totalorder %s30, 0
      %p351 = por %p349, %p350
      %s352 = ssub.s32 %s24, %s31
      %p353 = scmp.eq.s32.totalorder %s352, 0
      %s355 = sadd.s32 %s354, 1
      %s356 = scalar_select %p353, %s354, %s355
      %p359 = pneg %p353
      %p360 = scmp.eq.s32.totalorder %s24, 1
      %p361 = por %p359, %p360
      %p362 = scmp.ne.s32.totalorder %s354, %s357
      %p363 = scmp.eq.s32.totalorder %s24, 0
      %p364 = por %p362, %p363
      %p365 = scmp.ne.s32.totalorder %s354, %s357
      %p366 = scmp.eq.s32.totalorder %s29, 1
      %p367 = por %p365, %p366
      %p368 = scmp.ne.s32.totalorder %s357, %s358
      %p369 = scmp.eq.s32.totalorder %s29, 0
      %p370 = por %p368, %p369
      %p371 = scmp.ne.s32.totalorder %s357, %s358
      %p372 = scmp.eq.s32.totalorder %s30, 1
      %p373 = por %p371, %p372
      %p375 = scmp.ne.s32.totalorder %s358, %s374
      %p376 = scmp.eq.s32.totalorder %s30, 0
      %p377 = por %p375, %p376
      %p378 = scmp.le.s32.totalorder 1, %s24
      %p379 = scmp.lt.s32.totalorder %s24, 3
      %p380 = pnand %p378, %p379
      %p381 = pneg %p380
      // Predicated region
      $region9: #{lenet_forward.1} parent=5 // pred_check
        _
      $region10: #{lenet_forward.1} parent=5 // pred_check_branch
        %383 = sbr.rel (%p380) target = $region12
      $region11: #{lenet_forward.1} parent=5 // pred_region
        %s384 = ssub.s32 %s24, 1
        // Predicated region
        $region13: #{lenet_forward.1} parent=11 // pred_check
          %p385 = pneg %p71
        $region14: #{lenet_forward.1} parent=11 // pred_check_branch
          %387 = sbr.rel (%p385) target = $region16
        $region15: #{lenet_forward.1} parent=11 // pred_region
          _
        $region16: #{lenet_forward.1} parent=11 // pred_fallthru
          _
        // Predicated region
        $region17: #{lenet_forward.1} parent=11 // pred_check
          %p388 = pneg %p92
        $region18: #{lenet_forward.1} parent=11 // pred_check_branch
          %390 = sbr.rel (%p388) target = $region20
        $region19: #{lenet_forward.1} parent=11 // pred_region
          _
        $region20: #{lenet_forward.1} parent=11 // pred_fallthru
          _
        // Predicated region
        $region21: #{lenet_forward.1} parent=11 // pred_check
          %p391 = pneg %p113
        $region22: #{lenet_forward.1} parent=11 // pred_check_branch
          %393 = sbr.rel (%p391) target = $region24
        $region23: #{lenet_forward.1} parent=11 // pred_region
          _
        $region24: #{lenet_forward.1} parent=11 // pred_fallthru
          _
        // Predicated region
        $region25: #{lenet_forward.1} parent=11 // pred_check
          %p394 = pneg %p134
        $region26: #{lenet_forward.1} parent=11 // pred_check_branch
          %396 = sbr.rel (%p394) target = $region28
        $region27: #{lenet_forward.1} parent=11 // pred_region
          _
        $region28: #{lenet_forward.1} parent=11 // pred_fallthru
          _
        // Predicated region
        $region29: #{lenet_forward.1} parent=11 // pred_check
          %p397 = pneg %p155
        $region30: #{lenet_forward.1} parent=11 // pred_check_branch
          %399 = sbr.rel (%p397) target = $region32
        $region31: #{lenet_forward.1} parent=11 // pred_region
          _
        $region32: #{lenet_forward.1} parent=11 // pred_fallthru
          _
        // Predicated region
        $region33: #{lenet_forward.1} parent=11 // pred_check
          %p400 = pneg %p176
        $region34: #{lenet_forward.1} parent=11 // pred_check_branch
          %402 = sbr.rel (%p400) target = $region36
        $region35: #{lenet_forward.1} parent=11 // pred_region
          _
        $region36: #{lenet_forward.1} parent=11 // pred_fallthru
          _
        // Predicated region
        $region37: #{lenet_forward.1} parent=11 // pred_check
          %p403 = pneg %p197
        $region38: #{lenet_forward.1} parent=11 // pred_check_branch
          %405 = sbr.rel (%p403) target = $region40
        $region39: #{lenet_forward.1} parent=11 // pred_region
          _
        $region40: #{lenet_forward.1} parent=11 // pred_fallthru
          _
        // Predicated region
        $region41: #{lenet_forward.1} parent=11 // pred_check
          %p406 = pneg %p218
        $region42: #{lenet_forward.1} parent=11 // pred_check_branch
          %408 = sbr.rel (%p406) target = $region44
        $region43: #{lenet_forward.1} parent=11 // pred_region
          _
        $region44: #{lenet_forward.1} parent=11 // pred_fallthru
          _
        // Predicated region
        $region45: #{lenet_forward.1} parent=11 // pred_check
          %p409 = pneg %p239
        $region46: #{lenet_forward.1} parent=11 // pred_check_branch
          %411 = sbr.rel (%p409) target = $region48
        $region47: #{lenet_forward.1} parent=11 // pred_region
          _
        $region48: #{lenet_forward.1} parent=11 // pred_fallthru
          _
        // Predicated region
        $region49: #{lenet_forward.1} parent=11 // pred_check
          %p412 = pneg %p260
        $region50: #{lenet_forward.1} parent=11 // pred_check_branch
          %414 = sbr.rel (%p412) target = $region52
        $region51: #{lenet_forward.1} parent=11 // pred_region
          _
        $region52: #{lenet_forward.1} parent=11 // pred_fallthru
          _
        // Predicated region
        $region53: #{lenet_forward.1} parent=11 // pred_check
          %p415 = pneg %p281
        $region54: #{lenet_forward.1} parent=11 // pred_check_branch
          %417 = sbr.rel (%p415) target = $region56
        $region55: #{lenet_forward.1} parent=11 // pred_region
          _
        $region56: #{lenet_forward.1} parent=11 // pred_fallthru
          _
        // Predicated region
        $region57: #{lenet_forward.1} parent=11 // pred_check
          %p418 = pneg %p302
        $region58: #{lenet_forward.1} parent=11 // pred_check_branch
          %420 = sbr.rel (%p418) target = $region60
        $region59: #{lenet_forward.1} parent=11 // pred_region
          _
        $region60: #{lenet_forward.1} parent=11 // pred_fallthru
          _
        // Predicated region
        $region61: #{lenet_forward.1} parent=11 // pred_check
          %p421 = pneg %p323
        $region62: #{lenet_forward.1} parent=11 // pred_check_branch
          %423 = sbr.rel (%p421) target = $region64
        $region63: #{lenet_forward.1} parent=11 // pred_region
          _
        $region64: #{lenet_forward.1} parent=11 // pred_fallthru
          _
        // Predicated region
        $region65: #{lenet_forward.1} parent=11 // pred_check
          %p424 = pneg %p344
        $region66: #{lenet_forward.1} parent=11 // pred_check_branch
          %426 = sbr.rel (%p424) target = $region68
        $region67: #{lenet_forward.1} parent=11 // pred_region
          _
        $region68: #{lenet_forward.1} parent=11 // pred_fallthru
          _
      $region12: #{lenet_forward.1} parent=5 // pred_fallthru
        _
      %p427 = scmp.lt.s32.totalorder %s24, 2
      // Predicated region
      $region69: #{lenet_forward.1} parent=5 // pred_check
        %p428 = pneg %p427
      $region70: #{lenet_forward.1} parent=5 // pred_check_branch
        %430 = sbr.rel (%p428) target = $region72
      $region71: #{lenet_forward.1} parent=5 // pred_region
        // Predicated region
        $region73: #{lenet_forward.1} parent=71 // pred_check
          %p431 = pneg %p44
        $region74: #{lenet_forward.1} parent=71 // pred_check_branch
          %433 = sbr.rel (%p431) target = $region76
        $region75: #{lenet_forward.1} parent=71 // pred_region
          %p434 = scmp.lt.s32.totalorder %s24, 1
          %s435 = scalar_select %p434, %s24, 1
          %s436 = smul.addr %s435, 4
          %s437 = smul.addr %s436, 8
          %s438 = scalar_lea.vmem %s0, %s437
        $region76: #{lenet_forward.1} parent=71 // pred_fallthru
          _
      $region72: #{lenet_forward.1} parent=5 // pred_fallthru
        _
      %p439 = scmp.le.s32.totalorder 1, %s24
      %p440 = scmp.lt.s32.totalorder %s24, 3
      %p441 = pnand %p439, %p440
      %p442 = pneg %p441
      // Predicated region
      $region77: #{lenet_forward.1} parent=5 // pred_check
        _
      $region78: #{lenet_forward.1} parent=5 // pred_check_branch
        %444 = sbr.rel (%p441) target = $region80
      $region79: #{lenet_forward.1} parent=5 // pred_region
        %s445 = ssub.s32 %s24, 1
        %p446 = scmp.lt.s32.totalorder %s29, 1
        %s447 = scalar_select %p446, %s29, 1
        %s448 = smul.addr %s447, 4
        %s449 = smul.addr %s448, 8
        %s450 = scalar_lea.vmem %s0, %s449
        %p451 = pneg %p50
        %p452 = pneg %p47
        %p453 = pneg %p71
        %p454 = pneg %p68
        %p455 = pneg %p92
        %p456 = pneg %p89
        %p457 = pneg %p113
        %p458 = pneg %p110
        %p459 = pneg %p134
        %p460 = pneg %p131
        %p461 = pneg %p155
        %p462 = pneg %p152
        %p463 = pneg %p176
        %p464 = pneg %p173
        %p465 = pneg %p197
        %p466 = pneg %p194
        %p467 = pneg %p218
        %p468 = pneg %p215
        %p469 = pneg %p239
        %p470 = pneg %p236
        %p471 = pneg %p260
        %p472 = pneg %p257
        %p473 = pneg %p281
        %p474 = pneg %p278
        %p475 = pneg %p302
        %p476 = pneg %p299
        %p477 = pneg %p323
        %p478 = pneg %p320
        %p479 = pneg %p344
        %p480 = pneg %p341
        %p481 = pneg %p370
        %p482 = pneg %p367
        %s483 = sand.u32 %s357, 1
        %s484 = scalar_lea.sflag [#allocation3], %s483
        %s485 = sand.u32 %s357, 1
        %s486 = scalar_lea.vmem [#allocation2], %s485
        %p487 = scmp.lt.s32.totalorder %s29, 1
        %s488 = scalar_select %p487, %s29, 1
        %s489 = smul.addr %s488, 4
        %s490 = smul.addr %s489, 8
        %s491 = scalar_lea.vmem %s0, %s490
        %v492 = vld [vmem:[%s491] sm:$0xff]
        %v493 = vld [vmem:[%s491 + $0x8] sm:$0xff]
        %v494 = vld [vmem:[%s491 + $0x10] sm:$0xff]
        %v495 = vld [vmem:[%s491 + $0x18] sm:$0xff]
        %v496 = vld [vmem:[%s1] sm:$0xff]
        %v497 = vld [vmem:[%s1 + $0x8] sm:$0xff]
        %v498 = vld [vmem:[%s1 + $0x10] sm:$0xff]
        %v499 = vld [vmem:[%s1 + $0x18] sm:$0xff]
        %v500 = vld [vmem:[%s1 + $0x20] sm:$0xff]
        %v501 = vld [vmem:[%s1 + $0x28] sm:$0xff]
        %v502 = vld [vmem:[%s1 + $0x30] sm:$0xff]
        %v503 = vld [vmem:[%s1 + $0x38] sm:$0xff]
        %s504 = scalar_lea.vmem %s1, 64
        %v505 = vld [vmem:[%s504] sm:$0xff]
        %v506 = vld [vmem:[%s504 + $0x8] sm:$0xff]
        %v507 = vld [vmem:[%s504 + $0x10] sm:$0xff]
        %v508 = vld [vmem:[%s504 + $0x18] sm:$0xff]
        %v509 = vld [vmem:[%s504 + $0x20] sm:$0xff]
        %v510 = vld [vmem:[%s504 + $0x28] sm:$0xff]
        %v511 = vld [vmem:[%s504 + $0x30] sm:$0xff]
        %v512 = vld [vmem:[%s504 + $0x38] sm:$0xff]
        %vm517 = vcmask 1046528
        %v518 = vrot.slane %v492, 1
        %v519 = vrot.slane %v493, 1
        %v520 = vsel %vm517, %v518, %v519
        %v521 = vrot.slane %v494, 1
        %v522 = vsel %vm517, %v519, %v521
        %v523 = vrot.slane %v495, 1
        %v524 = vsel %vm517, %v521, %v523
        %vm525 = vcmask 261120
        %v526 = vsel %vm525, %v520, 0
        %v528 = vsel %vm525, %v522, 0
        %v530 = vsel %vm525, %v524, 0
        %v532 = vsel %vm525, %v523, 0
        %534 = vmatprep.subr.mxu0 0.0
        %535 = vmatpush1.msra.mxu0 0.0
        %536 = vmatprep.subr.mxu0 0.0
        %537 = vmatpush1.msra.mxu0 0.0
        %538 = vmatprep.subr.mxu0 0.0
        %539 = vmatpush1.msra.mxu0 0.0
        %540 = vmatprep.subr.mxu0 0.0
        %541 = vmatpush1.msra.mxu0 0.0
        %542 = vmatprep.subr.mxu0 0.0
        %543 = vmatpush1.msra.mxu0 0.0
        %544 = vmatprep.subr.mxu0 0.0
        %545 = vmatpush1.msra.mxu0 0.0
        %546 = vmatprep.subr.mxu0 0.0
        %547 = vmatpush1.msra.mxu0 0.0
        %548 = vmatprep.subr.mxu0 0.0
        %549 = vmatpush1.msra.mxu0 0.0
        %550 = vmatprep.subr.mxu0 0.0
        %551 = vmatpush1.msra.mxu0 0.0
        %552 = vmatprep.subr.mxu0 0.0
        %553 = vmatpush1.msra.mxu0 0.0
        %554 = vmatprep.subr.mxu0 0.0
        %555 = vmatpush1.msra.mxu0 0.0
        %556 = vmatprep.subr.mxu0 0.0
        %557 = vmatpush1.msra.mxu0 0.0
        %558 = vmatprep.subr.mxu0 %v512
        %559 = vmatpush1.msra.mxu0 %v511
        %560 = vmatprep.subr.mxu0 %v510
        %561 = vmatpush1.msra.mxu0 %v509
        %562 = vmatprep.subr.mxu0 %v508
        %563 = vmatpush1.msra.mxu0 %v507
        %564 = vmatprep.subr.mxu0 %v506
        %565 = vmatpush1.msra.mxu0 %v505
        %566 = vmatprep.subr.mxu0 0.0
        %567 = vmatpush2.msra.mxu0 0.0
        %568 = vmatprep.subr.mxu0 0.0
        %569 = vmatpush2.msra.mxu0 0.0
        %570 = vmatprep.subr.mxu0 0.0
        %571 = vmatpush2.msra.mxu0 0.0
        %572 = vmatprep.subr.mxu0 0.0
        %573 = vmatpush2.msra.mxu0 0.0
        %574 = vmatprep.subr.mxu0 0.0
        %575 = vmatpush2.msra.mxu0 0.0
        %576 = vmatprep.subr.mxu0 0.0
        %577 = vmatpush2.msra.mxu0 0.0
        %578 = vmatprep.subr.mxu0 0.0
        %579 = vmatpush2.msra.mxu0 0.0
        %580 = vmatprep.subr.mxu0 0.0
        %581 = vmatpush2.msra.mxu0 0.0
        %582 = vmatprep.subr.mxu0 0.0
        %583 = vmatpush2.msra.mxu0 0.0
        %584 = vmatprep.subr.mxu0 0.0
        %585 = vmatpush2.msra.mxu0 0.0
        %586 = vmatprep.subr.mxu0 0.0
        %587 = vmatpush2.msra.mxu0 0.0
        %588 = vmatprep.subr.mxu0 0.0
        %589 = vmatpush2.msra.mxu0 0.0
        %590 = vmatprep.subr.mxu0 0.0
        %591 = vmatpush2.msra.mxu0 0.0
        %592 = vmatprep.subr.mxu0 0.0
        %593 = vmatpush2.msra.mxu0 0.0
        %594 = vmatprep.subr.mxu0 0.0
        %595 = vmatpush2.msra.mxu0 0.0
        %596 = vmatprep.subr.mxu0 0.0
        %597 = vmatpush2.msra.mxu0 0.0
        %598 = vmatprep.mubr.f32.mxu0 0.0
        %599 = vmatmul.mubr.f32.gmra.mxu0 %v526
        %v600 = vpop.f32.mrf.mxu0
        %v601 = vadd.f32 0.0, %v600
        %v602 = vpop.f32.mrf.mxu0
        %v603 = vadd.f32 0.0, %v602
        %604 = vmatprep.mubr.f32.mxu0 0.0
        %605 = vmatmul.mubr.f32.gmra.mxu0 %v528
        %v606 = vpop.f32.mrf.mxu0
        %v607 = vadd.f32 0.0, %v606
        %v608 = vpop.f32.mrf.mxu0
        %v609 = vadd.f32 0.0, %v608
        %610 = vmatprep.mubr.f32.mxu0 0.0
        %611 = vmatmul.mubr.f32.gmra.mxu0 %v530
        %v612 = vpop.f32.mrf.mxu0
        %v613 = vadd.f32 0.0, %v612
        %v614 = vpop.f32.mrf.mxu0
        %v615 = vadd.f32 0.0, %v614
        %616 = vmatprep.mubr.f32.mxu0 0.0
        %617 = vmatmul.mubr.f32.gmra.mxu0 %v532
        %v618 = vpop.f32.mrf.mxu0
        %v619 = vadd.f32 0.0, %v618
        %v620 = vpop.f32.mrf.mxu0
        %v621 = vadd.f32 0.0, %v620
        %622 = vdwg.mxu0
        %v623 = vsel %vm525, %v492, 0
        %v625 = vsel %vm525, %v493, 0
        %v627 = vsel %vm525, %v494, 0
        %v629 = vsel %vm525, %v495, 0
        %631 = vmatprep.subr.mxu0 0.0
        %632 = vmatpush1.msra.mxu0 0.0
        %633 = vmatprep.subr.mxu0 0.0
        %634 = vmatpush1.msra.mxu0 0.0
        %635 = vmatprep.subr.mxu0 0.0
        %636 = vmatpush1.msra.mxu0 0.0
        %637 = vmatprep.subr.mxu0 0.0
        %638 = vmatpush1.msra.mxu0 0.0
        %639 = vmatprep.subr.mxu0 0.0
        %640 = vmatpush1.msra.mxu0 0.0
        %641 = vmatprep.subr.mxu0 0.0
        %642 = vmatpush1.msra.mxu0 0.0
        %643 = vmatprep.subr.mxu0 0.0
        %644 = vmatpush1.msra.mxu0 0.0
        %645 = vmatprep.subr.mxu0 0.0
        %646 = vmatpush1.msra.mxu0 0.0
        %647 = vmatprep.subr.mxu0 0.0
        %648 = vmatpush1.msra.mxu0 0.0
        %649 = vmatprep.subr.mxu0 0.0
        %650 = vmatpush1.msra.mxu0 0.0
        %651 = vmatprep.subr.mxu0 0.0
        %652 = vmatpush1.msra.mxu0 0.0
        %653 = vmatprep.subr.mxu0 0.0
        %654 = vmatpush1.msra.mxu0 0.0
        %655 = vmatprep.subr.mxu0 %v503
        %656 = vmatpush1.msra.mxu0 %v502
        %657 = vmatprep.subr.mxu0 %v501
        %658 = vmatpush1.msra.mxu0 %v500
        %659 = vmatprep.subr.mxu0 %v499
        %660 = vmatpush1.msra.mxu0 %v498
        %661 = vmatprep.subr.mxu0 %v497
        %662 = vmatpush1.msra.mxu0 %v496
        %663 = vmatprep.subr.mxu0 0.0
        %664 = vmatpush2.msra.mxu0 0.0
        %665 = vmatprep.subr.mxu0 0.0
        %666 = vmatpush2.msra.mxu0 0.0
        %667 = vmatprep.subr.mxu0 0.0
        %668 = vmatpush2.msra.mxu0 0.0
        %669 = vmatprep.subr.mxu0 0.0
        %670 = vmatpush2.msra.mxu0 0.0
        %671 = vmatprep.subr.mxu0 0.0
        %672 = vmatpush2.msra.mxu0 0.0
        %673 = vmatprep.subr.mxu0 0.0
        %674 = vmatpush2.msra.mxu0 0.0
        %675 = vmatprep.subr.mxu0 0.0
        %676 = vmatpush2.msra.mxu0 0.0
        %677 = vmatprep.subr.mxu0 0.0
        %678 = vmatpush2.msra.mxu0 0.0
        %679 = vmatprep.subr.mxu0 0.0
        %680 = vmatpush2.msra.mxu0 0.0
        %681 = vmatprep.subr.mxu0 0.0
        %682 = vmatpush2.msra.mxu0 0.0
        %683 = vmatprep.subr.mxu0 0.0
        %684 = vmatpush2.msra.mxu0 0.0
        %685 = vmatprep.subr.mxu0 0.0
        %686 = vmatpush2.msra.mxu0 0.0
        %687 = vmatprep.subr.mxu0 0.0
        %688 = vmatpush2.msra.mxu0 0.0
        %689 = vmatprep.subr.mxu0 0.0
        %690 = vmatpush2.msra.mxu0 0.0
        %691 = vmatprep.subr.mxu0 0.0
        %692 = vmatpush2.msra.mxu0 0.0
        %693 = vmatprep.subr.mxu0 0.0
        %694 = vmatpush2.msra.mxu0 0.0
        %695 = vmatprep.mubr.f32.mxu0 0.0
        %696 = vmatmul.mubr.f32.gmra.mxu0 %v623
        %v697 = vpop.f32.mrf.mxu0
        %v698 = vadd.f32 %v601, %v697
        %v699 = vpop.f32.mrf.mxu0
        %v700 = vadd.f32 %v603, %v699
        %701 = vmatprep.mubr.f32.mxu0 0.0
        %702 = vmatmul.mubr.f32.gmra.mxu0 %v625
        %v703 = vpop.f32.mrf.mxu0
        %v704 = vadd.f32 %v607, %v703
        %v705 = vpop.f32.mrf.mxu0
        %v706 = vadd.f32 %v609, %v705
        %707 = vmatprep.mubr.f32.mxu0 0.0
        %708 = vmatmul.mubr.f32.gmra.mxu0 %v627
        %v709 = vpop.f32.mrf.mxu0
        %v710 = vadd.f32 %v613, %v709
        %v711 = vpop.f32.mrf.mxu0
        %v712 = vadd.f32 %v615, %v711
        %713 = vmatprep.mubr.f32.mxu0 0.0
        %714 = vmatmul.mubr.f32.gmra.mxu0 %v629
        %v715 = vpop.f32.mrf.mxu0
        %v716 = vadd.f32 %v619, %v715
        %v717 = vpop.f32.mrf.mxu0
        %v718 = vadd.f32 %v621, %v717
        %719 = vdwg.mxu0
        %s720 = scalar_lea.vmem %s1, 128
        %v721 = vld [vmem:[%s720] sm:$0xff]
        %v722 = vld [vmem:[%s720 + $0x8] sm:$0xff]
        %v723 = vld [vmem:[%s720 + $0x10] sm:$0xff]
        %v724 = vld [vmem:[%s720 + $0x18] sm:$0xff]
        %v725 = vld [vmem:[%s720 + $0x20] sm:$0xff]
        %v726 = vld [vmem:[%s720 + $0x28] sm:$0xff]
        %v727 = vld [vmem:[%s720 + $0x30] sm:$0xff]
        %v728 = vld [vmem:[%s720 + $0x38] sm:$0xff]
        %vm729 = vcmask 1045504
        %v730 = vrot.slane %v492, 2
        %v731 = vrot.slane %v493, 2
        %v732 = vsel %vm729, %v730, %v731
        %v733 = vrot.slane %v494, 2
        %v734 = vsel %vm729, %v731, %v733
        %v735 = vrot.slane %v495, 2
        %v736 = vsel %vm729, %v733, %v735
        %v737 = vsel %vm525, %v732, 0
        %v739 = vsel %vm525, %v734, 0
        %v741 = vsel %vm525, %v736, 0
        %v743 = vsel %vm525, %v735, 0
        %745 = vmatprep.subr.mxu0 0.0
        %746 = vmatpush1.msra.mxu0 0.0
        %747 = vmatprep.subr.mxu0 0.0
        %748 = vmatpush1.msra.mxu0 0.0
        %749 = vmatprep.subr.mxu0 0.0
        %750 = vmatpush1.msra.mxu0 0.0
        %751 = vmatprep.subr.mxu0 0.0
        %752 = vmatpush1.msra.mxu0 0.0
        %753 = vmatprep.subr.mxu0 0.0
        %754 = vmatpush1.msra.mxu0 0.0
        %755 = vmatprep.subr.mxu0 0.0
        %756 = vmatpush1.msra.mxu0 0.0
        %757 = vmatprep.subr.mxu0 0.0
        %758 = vmatpush1.msra.mxu0 0.0
        %759 = vmatprep.subr.mxu0 0.0
        %760 = vmatpush1.msra.mxu0 0.0
        %761 = vmatprep.subr.mxu0 0.0
        %762 = vmatpush1.msra.mxu0 0.0
        %763 = vmatprep.subr.mxu0 0.0
        %764 = vmatpush1.msra.mxu0 0.0
        %765 = vmatprep.subr.mxu0 0.0
        %766 = vmatpush1.msra.mxu0 0.0
        %767 = vmatprep.subr.mxu0 0.0
        %768 = vmatpush1.msra.mxu0 0.0
        %769 = vmatprep.subr.mxu0 %v728
        %770 = vmatpush1.msra.mxu0 %v727
        %771 = vmatprep.subr.mxu0 %v726
        %772 = vmatpush1.msra.mxu0 %v725
        %773 = vmatprep.subr.mxu0 %v724
        %774 = vmatpush1.msra.mxu0 %v723
        %775 = vmatprep.subr.mxu0 %v722
        %776 = vmatpush1.msra.mxu0 %v721
        %777 = vmatprep.subr.mxu0 0.0
        %778 = vmatpush2.msra.mxu0 0.0
        %779 = vmatprep.subr.mxu0 0.0
        %780 = vmatpush2.msra.mxu0 0.0
        %781 = vmatprep.subr.mxu0 0.0
        %782 = vmatpush2.msra.mxu0 0.0
        %783 = vmatprep.subr.mxu0 0.0
        %784 = vmatpush2.msra.mxu0 0.0
        %785 = vmatprep.subr.mxu0 0.0
        %786 = vmatpush2.msra.mxu0 0.0
        %787 = vmatprep.subr.mxu0 0.0
        %788 = vmatpush2.msra.mxu0 0.0
        %789 = vmatprep.subr.mxu0 0.0
        %790 = vmatpush2.msra.mxu0 0.0
        %791 = vmatprep.subr.mxu0 0.0
        %792 = vmatpush2.msra.mxu0 0.0
        %793 = vmatprep.subr.mxu0 0.0
        %794 = vmatpush2.msra.mxu0 0.0
        %795 = vmatprep.subr.mxu0 0.0
        %796 = vmatpush2.msra.mxu0 0.0
        %797 = vmatprep.subr.mxu0 0.0
        %798 = vmatpush2.msra.mxu0 0.0
        %799 = vmatprep.subr.mxu0 0.0
        %800 = vmatpush2.msra.mxu0 0.0
        %801 = vmatprep.subr.mxu0 0.0
        %802 = vmatpush2.msra.mxu0 0.0
        %803 = vmatprep.subr.mxu0 0.0
        %804 = vmatpush2.msra.mxu0 0.0
        %805 = vmatprep.subr.mxu0 0.0
        %806 = vmatpush2.msra.mxu0 0.0
        %807 = vmatprep.subr.mxu0 0.0
        %808 = vmatpush2.msra.mxu0 0.0
        %809 = vmatprep.mubr.f32.mxu0 0.0
        %810 = vmatmul.mubr.f32.gmra.mxu0 %v737
        %v811 = vpop.f32.mrf.mxu0
        %v812 = vadd.f32 0.0, %v811
        %v813 = vpop.f32.mrf.mxu0
        %v814 = vadd.f32 0.0, %v813
        %815 = vmatprep.mubr.f32.mxu0 0.0
        %816 = vmatmul.mubr.f32.gmra.mxu0 %v739
        %v817 = vpop.f32.mrf.mxu0
        %v818 = vadd.f32 0.0, %v817
        %v819 = vpop.f32.mrf.mxu0
        %v820 = vadd.f32 0.0, %v819
        %821 = vmatprep.mubr.f32.mxu0 0.0
        %822 = vmatmul.mubr.f32.gmra.mxu0 %v741
        %v823 = vpop.f32.mrf.mxu0
        %v824 = vadd.f32 0.0, %v823
        %v825 = vpop.f32.mrf.mxu0
        %v826 = vadd.f32 0.0, %v825
        %827 = vmatprep.mubr.f32.mxu0 0.0
        %828 = vmatmul.mubr.f32.gmra.mxu0 %v743
        %v829 = vpop.f32.mrf.mxu0
        %v830 = vadd.f32 0.0, %v829
        %v831 = vpop.f32.mrf.mxu0
        %v832 = vadd.f32 0.0, %v831
        %833 = vdwg.mxu0
        %v834 = vadd.f32 %v698, %v812
        %v835 = vadd.f32 %v700, %v814
        %v836 = vadd.f32 %v704, %v818
        %v837 = vadd.f32 %v706, %v820
        %v838 = vadd.f32 %v710, %v824
        %v839 = vadd.f32 %v712, %v826
        %v840 = vadd.f32 %v716, %v830
        %v841 = vadd.f32 %v718, %v832
        %s842 = scalar_lea.vmem %s1, 192
        %v843 = vld [vmem:[%s842] sm:$0xff]
        %v844 = vld [vmem:[%s842 + $0x8] sm:$0xff]
        %v845 = vld [vmem:[%s842 + $0x10] sm:$0xff]
        %v846 = vld [vmem:[%s842 + $0x18] sm:$0xff]
        %v847 = vld [vmem:[%s842 + $0x20] sm:$0xff]
        %v848 = vld [vmem:[%s842 + $0x28] sm:$0xff]
        %v849 = vld [vmem:[%s842 + $0x30] sm:$0xff]
        %v850 = vld [vmem:[%s842 + $0x38] sm:$0xff]
        %vm851 = vcmask 1044480
        %v852 = vrot.slane %v492, 3
        %v853 = vrot.slane %v493, 3
        %v854 = vsel %vm851, %v852, %v853
        %v855 = vrot.slane %v494, 3
        %v856 = vsel %vm851, %v853, %v855
        %v857 = vrot.slane %v495, 3
        %v858 = vsel %vm851, %v855, %v857
        %v859 = vsel %vm525, %v854, 0
        %v861 = vsel %vm525, %v856, 0
        %v863 = vsel %vm525, %v858, 0
        %v865 = vsel %vm525, %v857, 0
        %867 = vmatprep.subr.mxu0 0.0
        %868 = vmatpush1.msra.mxu0 0.0
        %869 = vmatprep.subr.mxu0 0.0
        %870 = vmatpush1.msra.mxu0 0.0
        %871 = vmatprep.subr.mxu0 0.0
        %872 = vmatpush1.msra.mxu0 0.0
        %873 = vmatprep.subr.mxu0 0.0
        %874 = vmatpush1.msra.mxu0 0.0
        %875 = vmatprep.subr.mxu0 0.0
        %876 = vmatpush1.msra.mxu0 0.0
        %877 = vmatprep.subr.mxu0 0.0
        %878 = vmatpush1.msra.mxu0 0.0
        %879 = vmatprep.subr.mxu0 0.0
        %880 = vmatpush1.msra.mxu0 0.0
        %881 = vmatprep.subr.mxu0 0.0
        %882 = vmatpush1.msra.mxu0 0.0
        %883 = vmatprep.subr.mxu0 0.0
        %884 = vmatpush1.msra.mxu0 0.0
        %885 = vmatprep.subr.mxu0 0.0
        %886 = vmatpush1.msra.mxu0 0.0
        %887 = vmatprep.subr.mxu0 0.0
        %888 = vmatpush1.msra.mxu0 0.0
        %889 = vmatprep.subr.mxu0 0.0
        %890 = vmatpush1.msra.mxu0 0.0
        %891 = vmatprep.subr.mxu0 %v850
        %892 = vmatpush1.msra.mxu0 %v849
        %893 = vmatprep.subr.mxu0 %v848
        %894 = vmatpush1.msra.mxu0 %v847
        %895 = vmatprep.subr.mxu0 %v846
        %896 = vmatpush1.msra.mxu0 %v845
        %897 = vmatprep.subr.mxu0 %v844
        %898 = vmatpush1.msra.mxu0 %v843
        %899 = vmatprep.subr.mxu0 0.0
        %900 = vmatpush2.msra.mxu0 0.0
        %901 = vmatprep.subr.mxu0 0.0
        %902 = vmatpush2.msra.mxu0 0.0
        %903 = vmatprep.subr.mxu0 0.0
        %904 = vmatpush2.msra.mxu0 0.0
        %905 = vmatprep.subr.mxu0 0.0
        %906 = vmatpush2.msra.mxu0 0.0
        %907 = vmatprep.subr.mxu0 0.0
        %908 = vmatpush2.msra.mxu0 0.0
        %909 = vmatprep.subr.mxu0 0.0
        %910 = vmatpush2.msra.mxu0 0.0
        %911 = vmatprep.subr.mxu0 0.0
        %912 = vmatpush2.msra.mxu0 0.0
        %913 = vmatprep.subr.mxu0 0.0
        %914 = vmatpush2.msra.mxu0 0.0
        %915 = vmatprep.subr.mxu0 0.0
        %916 = vmatpush2.msra.mxu0 0.0
        %917 = vmatprep.subr.mxu0 0.0
        %918 = vmatpush2.msra.mxu0 0.0
        %919 = vmatprep.subr.mxu0 0.0
        %920 = vmatpush2.msra.mxu0 0.0
        %921 = vmatprep.subr.mxu0 0.0
        %922 = vmatpush2.msra.mxu0 0.0
        %923 = vmatprep.subr.mxu0 0.0
        %924 = vmatpush2.msra.mxu0 0.0
        %925 = vmatprep.subr.mxu0 0.0
        %926 = vmatpush2.msra.mxu0 0.0
        %927 = vmatprep.subr.mxu0 0.0
        %928 = vmatpush2.msra.mxu0 0.0
        %929 = vmatprep.subr.mxu0 0.0
        %930 = vmatpush2.msra.mxu0 0.0
        %931 = vmatprep.mubr.f32.mxu0 0.0
        %932 = vmatmul.mubr.f32.gmra.mxu0 %v859
        %v933 = vpop.f32.mrf.mxu0
        %v934 = vadd.f32 0.0, %v933
        %v935 = vpop.f32.mrf.mxu0
        %v936 = vadd.f32 0.0, %v935
        %937 = vmatprep.mubr.f32.mxu0 0.0
        %938 = vmatmul.mubr.f32.gmra.mxu0 %v861
        %v939 = vpop.f32.mrf.mxu0
        %v940 = vadd.f32 0.0, %v939
        %v941 = vpop.f32.mrf.mxu0
        %v942 = vadd.f32 0.0, %v941
        %943 = vmatprep.mubr.f32.mxu0 0.0
        %944 = vmatmul.mubr.f32.gmra.mxu0 %v863
        %v945 = vpop.f32.mrf.mxu0
        %v946 = vadd.f32 0.0, %v945
        %v947 = vpop.f32.mrf.mxu0
        %v948 = vadd.f32 0.0, %v947
        %949 = vmatprep.mubr.f32.mxu0 0.0
        %950 = vmatmul.mubr.f32.gmra.mxu0 %v865
        %v951 = vpop.f32.mrf.mxu0
        %v952 = vadd.f32 0.0, %v951
        %v953 = vpop.f32.mrf.mxu0
        %v954 = vadd.f32 0.0, %v953
        %955 = vdwg.mxu0
        %v956 = vadd.f32 %v834, %v934
        %v957 = vadd.f32 %v835, %v936
        %v958 = vadd.f32 %v836, %v940
        %v959 = vadd.f32 %v837, %v942
        %v960 = vadd.f32 %v838, %v946
        %v961 = vadd.f32 %v839, %v948
        %v962 = vadd.f32 %v840, %v952
        %v963 = vadd.f32 %v841, %v954
        %s964 = scalar_lea.vmem %s1, 256
        %v965 = vld [vmem:[%s964] sm:$0xff]
        %v966 = vld [vmem:[%s964 + $0x8] sm:$0xff]
        %v967 = vld [vmem:[%s964 + $0x10] sm:$0xff]
        %v968 = vld [vmem:[%s964 + $0x18] sm:$0xff]
        %v969 = vld [vmem:[%s964 + $0x20] sm:$0xff]
        %v970 = vld [vmem:[%s964 + $0x28] sm:$0xff]
        %v971 = vld [vmem:[%s964 + $0x30] sm:$0xff]
        %v972 = vld [vmem:[%s964 + $0x38] sm:$0xff]
        %vm973 = vcmask 1043456
        %v974 = vrot.slane %v492, 4
        %v975 = vrot.slane %v493, 4
        %v976 = vsel %vm973, %v974, %v975
        %v977 = vrot.slane %v494, 4
        %v978 = vsel %vm973, %v975, %v977
        %v979 = vrot.slane %v495, 4
        %v980 = vsel %vm973, %v977, %v979
        %v981 = vsel %vm525, %v976, 0
        %v983 = vsel %vm525, %v978, 0
        %v985 = vsel %vm525, %v980, 0
        %v987 = vsel %vm525, %v979, 0
        %989 = vmatprep.subr.mxu0 0.0
        %990 = vmatpush1.msra.mxu0 0.0
        %991 = vmatprep.subr.mxu0 0.0
        %992 = vmatpush1.msra.mxu0 0.0
        %993 = vmatprep.subr.mxu0 0.0
        %994 = vmatpush1.msra.mxu0 0.0
        %995 = vmatprep.subr.mxu0 0.0
        %996 = vmatpush1.msra.mxu0 0.0
        %997 = vmatprep.subr.mxu0 0.0
        %998 = vmatpush1.msra.mxu0 0.0
        %999 = vmatprep.subr.mxu0 0.0
        %1000 = vmatpush1.msra.mxu0 0.0
        %1001 = vmatprep.subr.mxu0 0.0
        %1002 = vmatpush1.msra.mxu0 0.0
        %1003 = vmatprep.subr.mxu0 0.0
        %1004 = vmatpush1.msra.mxu0 0.0
        %1005 = vmatprep.subr.mxu0 0.0
        %1006 = vmatpush1.msra.mxu0 0.0
        %1007 = vmatprep.subr.mxu0 0.0
        %1008 = vmatpush1.msra.mxu0 0.0
        %1009 = vmatprep.subr.mxu0 0.0
        %1010 = vmatpush1.msra.mxu0 0.0
        %1011 = vmatprep.subr.mxu0 0.0
        %1012 = vmatpush1.msra.mxu0 0.0
        %1013 = vmatprep.subr.mxu0 %v972
        %1014 = vmatpush1.msra.mxu0 %v971
        %1015 = vmatprep.subr.mxu0 %v970
        %1016 = vmatpush1.msra.mxu0 %v969
        %1017 = vmatprep.subr.mxu0 %v968
        %1018 = vmatpush1.msra.mxu0 %v967
        %1019 = vmatprep.subr.mxu0 %v966
        %1020 = vmatpush1.msra.mxu0 %v965
        %1021 = vmatprep.subr.mxu0 0.0
        %1022 = vmatpush2.msra.mxu0 0.0
        %1023 = vmatprep.subr.mxu0 0.0
        %1024 = vmatpush2.msra.mxu0 0.0
        %1025 = vmatprep.subr.mxu0 0.0
        %1026 = vmatpush2.msra.mxu0 0.0
        %1027 = vmatprep.subr.mxu0 0.0
        %1028 = vmatpush2.msra.mxu0 0.0
        %1029 = vmatprep.subr.mxu0 0.0
        %1030 = vmatpush2.msra.mxu0 0.0
        %1031 = vmatprep.subr.mxu0 0.0
        %1032 = vmatpush2.msra.mxu0 0.0
        %1033 = vmatprep.subr.mxu0 0.0
        %1034 = vmatpush2.msra.mxu0 0.0
        %1035 = vmatprep.subr.mxu0 0.0
        %1036 = vmatpush2.msra.mxu0 0.0
        %1037 = vmatprep.subr.mxu0 0.0
        %1038 = vmatpush2.msra.mxu0 0.0
        %1039 = vmatprep.subr.mxu0 0.0
        %1040 = vmatpush2.msra.mxu0 0.0
        %1041 = vmatprep.subr.mxu0 0.0
        %1042 = vmatpush2.msra.mxu0 0.0
        %1043 = vmatprep.subr.mxu0 0.0
        %1044 = vmatpush2.msra.mxu0 0.0
        %1045 = vmatprep.subr.mxu0 0.0
        %1046 = vmatpush2.msra.mxu0 0.0
        %1047 = vmatprep.subr.mxu0 0.0
        %1048 = vmatpush2.msra.mxu0 0.0
        %1049 = vmatprep.subr.mxu0 0.0
        %1050 = vmatpush2.msra.mxu0 0.0
        %1051 = vmatprep.subr.mxu0 0.0
        %1052 = vmatpush2.msra.mxu0 0.0
        %1053 = vmatprep.mubr.f32.mxu0 0.0
        %1054 = vmatmul.mubr.f32.gmra.mxu0 %v981
        %v1055 = vpop.f32.mrf.mxu0
        %v1056 = vadd.f32 0.0, %v1055
        %v1057 = vpop.f32.mrf.mxu0
        %v1058 = vadd.f32 0.0, %v1057
        %1059 = vmatprep.mubr.f32.mxu0 0.0
        %1060 = vmatmul.mubr.f32.gmra.mxu0 %v983
        %v1061 = vpop.f32.mrf.mxu0
        %v1062 = vadd.f32 0.0, %v1061
        %v1063 = vpop.f32.mrf.mxu0
        %v1064 = vadd.f32 0.0, %v1063
        %1065 = vmatprep.mubr.f32.mxu0 0.0
        %1066 = vmatmul.mubr.f32.gmra.mxu0 %v985
        %v1067 = vpop.f32.mrf.mxu0
        %v1068 = vadd.f32 0.0, %v1067
        %v1069 = vpop.f32.mrf.mxu0
        %v1070 = vadd.f32 0.0, %v1069
        %1071 = vmatprep.mubr.f32.mxu0 0.0
        %1072 = vmatmul.mubr.f32.gmra.mxu0 %v987
        %v1073 = vpop.f32.mrf.mxu0
        %v1074 = vadd.f32 0.0, %v1073
        %v1075 = vpop.f32.mrf.mxu0
        %v1076 = vadd.f32 0.0, %v1075
        %1077 = vdwg.mxu0
        %v1078 = vadd.f32 %v956, %v1056
        %v1079 = vadd.f32 %v957, %v1058
        %v1080 = vadd.f32 %v958, %v1062
        %v1081 = vadd.f32 %v959, %v1064
        %v1082 = vadd.f32 %v960, %v1068
        %v1083 = vadd.f32 %v961, %v1070
        %v1084 = vadd.f32 %v962, %v1074
        %v1085 = vadd.f32 %v963, %v1076
        %v1086 = vld [vmem:[%s2] sm:$0x3]
        %v1088 = vlaneseq
        %v1089 = vshrl.u32 %v1088, 7
        %v1090 = vsub.s32 0, %v1089
        %v1091 = vrot.slane %v1086, %v1090
        %v1092 = vlaneseq
        %v1093 = vshrl.u32 %v1092, 7
        %v1094 = vsub.s32 1, %v1093
        %v1095 = vrot.slane %v1086, %v1094
        %v1098 = vadd.f32 %v1078, %v1091
        %v1099 = vadd.f32 %v1079, %v1095
        %v1100 = vadd.f32 %v1080, %v1091
        %v1101 = vadd.f32 %v1081, %v1095
        %v1102 = vadd.f32 %v1082, %v1091
        %v1103 = vadd.f32 %v1083, %v1095
        %v1104 = vadd.f32 %v1084, %v1091
        %v1105 = vadd.f32 %v1085, %v1095
        %v1106 = vmax.f32 %v1098, 0.0
        %v1107 = vmax.f32 %v1099, 0.0
        %v1108 = vmax.f32 %v1100, 0.0
        %v1109 = vmax.f32 %v1101, 0.0
        %v1110 = vmax.f32 %v1102, 0.0
        %v1111 = vmax.f32 %v1103, 0.0
        %v1112 = vmax.f32 %v1104, 0.0
        %v1113 = vmax.f32 %v1105, 0.0
        %v1114 = vld [vmem:[%s3] sm:$0xff]
        %v1115 = vld [vmem:[%s3 + $0x8] sm:$0x3f]
        %vm1116 = vcmask 228352
        %v1118 = vsel %vm1116, %v1114, 0
        %v1121 = vsel %vm1116, %v1115, 0
        %v1124 = vsel %vm973, %v1112, 0
        %v1127 = vsel %vm973, %v1113, 0
        %1129 = vmatprep.subr.mxu0 0.0
        %1130 = vmatpush1.msra.mxu0 0.0
        %1131 = vmatprep.subr.mxu0 0.0
        %1132 = vmatpush1.msra.mxu0 0.0
        %1133 = vmatprep.subr.mxu0 0.0
        %1134 = vmatpush1.msra.mxu0 0.0
        %1135 = vmatprep.subr.mxu0 0.0
        %1136 = vmatpush1.msra.mxu0 0.0
        %1137 = vmatprep.subr.mxu0 0.0
        %1138 = vmatpush1.msra.mxu0 0.0
        %1139 = vmatprep.subr.mxu0 0.0
        %1140 = vmatpush1.msra.mxu0 0.0
        %1141 = vmatprep.subr.mxu0 0.0
        %1142 = vmatpush1.msra.mxu0 0.0
        %1143 = vmatprep.subr.mxu0 0.0
        %1144 = vmatpush1.msra.mxu0 0.0
        %1145 = vmatprep.subr.mxu0 0.0
        %1146 = vmatpush1.msra.mxu0 0.0
        %1147 = vmatprep.subr.mxu0 0.0
        %1148 = vmatpush1.msra.mxu0 0.0
        %1149 = vmatprep.subr.mxu0 0.0
        %1150 = vmatpush1.msra.mxu0 0.0
        %1151 = vmatprep.subr.mxu0 0.0
        %1152 = vmatpush1.msra.mxu0 0.0
        %1153 = vmatprep.subr.mxu0 %v1127
        %1154 = vmatpush1.msra.mxu0 %v1124
        %1155 = vmatprep.subr.mxu0 %v1111
        %1156 = vmatpush1.msra.mxu0 %v1110
        %1157 = vmatprep.subr.mxu0 %v1109
        %1158 = vmatpush1.msra.mxu0 %v1108
        %1159 = vmatprep.subr.mxu0 %v1107
        %1160 = vmatpush1.msra.mxu0 %v1106
        %1161 = vmatprep.subr.mxu0 0.0
        %1162 = vmatpush2.msra.mxu0 0.0
        %1163 = vmatprep.subr.mxu0 0.0
        %1164 = vmatpush2.msra.mxu0 0.0
        %1165 = vmatprep.subr.mxu0 0.0
        %1166 = vmatpush2.msra.mxu0 0.0
        %1167 = vmatprep.subr.mxu0 0.0
        %1168 = vmatpush2.msra.mxu0 0.0
        %1169 = vmatprep.subr.mxu0 0.0
        %1170 = vmatpush2.msra.mxu0 0.0
        %1171 = vmatprep.subr.mxu0 0.0
        %1172 = vmatpush2.msra.mxu0 0.0
        %1173 = vmatprep.subr.mxu0 0.0
        %1174 = vmatpush2.msra.mxu0 0.0
        %1175 = vmatprep.subr.mxu0 0.0
        %1176 = vmatpush2.msra.mxu0 0.0
        %1177 = vmatprep.subr.mxu0 0.0
        %1178 = vmatpush2.msra.mxu0 0.0
        %1179 = vmatprep.subr.mxu0 0.0
        %1180 = vmatpush2.msra.mxu0 0.0
        %1181 = vmatprep.subr.mxu0 0.0
        %1182 = vmatpush2.msra.mxu0 0.0
        %1183 = vmatprep.subr.mxu0 0.0
        %1184 = vmatpush2.msra.mxu0 0.0
        %1185 = vmatprep.subr.mxu0 0.0
        %1186 = vmatpush2.msra.mxu0 0.0
        %1187 = vmatprep.subr.mxu0 0.0
        %1188 = vmatpush2.msra.mxu0 0.0
        %1189 = vmatprep.subr.mxu0 0.0
        %1190 = vmatpush2.msra.mxu0 0.0
        %1191 = vmatprep.subr.mxu0 0.0
        %1192 = vmatpush2.msra.mxu0 0.0
        %1193 = vmatprep.mubr.f32.mxu0 0.0
        %1194 = vmatmul.mubr.f32.gmra.mxu0 %v1118
        %v1195 = vpop.f32.mrf.mxu0
        %v1196 = vadd.f32 0.0, %v1195
        %v1197 = vpop.f32.mrf.mxu0
        %v1198 = vadd.f32 0.0, %v1197
        %1199 = vmatprep.mubr.f32.mxu0 0.0
        %1200 = vmatmul.mubr.f32.gmra.mxu0 %v1121
        %v1201 = vpop.f32.mrf.mxu0
        %v1202 = vadd.f32 0.0, %v1201
        %v1203 = vpop.f32.mrf.mxu0
        %v1204 = vadd.f32 0.0, %v1203
        %1205 = vdwg.mxu0
        %v1206 = vld [vmem:[%s4] sm:$0xff]
        %v1207 = vld [vmem:[%s4 + $0x8] sm:$0xff]
        %v1208 = vld [vmem:[%s4 + $0x10] sm:$0xff]
        %v1209 = vld [vmem:[%s4 + $0x18] sm:$0xff]
        %v1210 = vld [vmem:[%s4 + $0x20] sm:$0xff]
        %v1211 = vld [vmem:[%s4 + $0x28] sm:$0xff]
        %v1212 = vld [vmem:[%s4 + $0x30] sm:$0xff]
        %v1213 = vld [vmem:[%s4 + $0x38] sm:$0xff]
        %v1214 = vld [vmem:[%s4 + $0x40] sm:$0xff]
        %v1215 = vld [vmem:[%s4 + $0x48] sm:$0xff]
        %v1216 = vld [vmem:[%s4 + $0x50] sm:$0xff]
        %v1217 = vld [vmem:[%s4 + $0x58] sm:$0xff]
        %v1218 = vld [vmem:[%s4 + $0x60] sm:$0xff]
        %v1219 = vld [vmem:[%s4 + $0x68] sm:$0xff]
        %v1220 = vld [vmem:[%s4 + $0x70] sm:$0xff]
        %v1221 = vld [vmem:[%s4 + $0x78] sm:$0xff]
        %v1222 = vld [vmem:[%s4 + $0x80] sm:$0xff]
        %v1223 = vld [vmem:[%s4 + $0x88] sm:$0xff]
        %v1224 = vld [vmem:[%s4 + $0x90] sm:$0xff]
        %v1225 = vld [vmem:[%s4 + $0x98] sm:$0xff]
        %v1226 = vld [vmem:[%s4 + $0xa0] sm:$0xff]
        %vm1227 = vcmask 326656
        %v1229 = vsel %vm1227, %v1198, 0
        %v1232 = vsel %vm1227, %v1204, 0
        %1234 = vmatprep.subr.mxu0 0.0
        %1235 = vmatpush1.msra.mxu0 %v1221
        %1236 = vmatprep.subr.mxu0 0.0
        %1237 = vmatpush1.msra.mxu0 %v1220
        %1238 = vmatprep.subr.mxu0 0.0
        %1239 = vmatpush1.msra.mxu0 %v1219
        %1240 = vmatprep.subr.mxu0 0.0
        %1241 = vmatpush1.msra.mxu0 %v1218
        %1242 = vmatprep.subr.mxu0 0.0
        %1243 = vmatpush1.msra.mxu0 %v1217
        %1244 = vmatprep.subr.mxu0 0.0
        %1245 = vmatpush1.msra.mxu0 %v1216
        %1246 = vmatprep.subr.mxu0 0.0
        %1247 = vmatpush1.msra.mxu0 %v1215
        %1248 = vmatprep.subr.mxu0 0.0
        %1249 = vmatpush1.msra.mxu0 %v1214
        %1250 = vmatprep.subr.mxu0 0.0
        %1251 = vmatpush1.msra.mxu0 %v1213
        %1252 = vmatprep.subr.mxu0 0.0
        %1253 = vmatpush1.msra.mxu0 %v1212
        %1254 = vmatprep.subr.mxu0 0.0
        %1255 = vmatpush1.msra.mxu0 %v1211
        %1256 = vmatprep.subr.mxu0 0.0
        %1257 = vmatpush1.msra.mxu0 %v1210
        %1258 = vmatprep.subr.mxu0 0.0
        %1259 = vmatpush1.msra.mxu0 %v1209
        %1260 = vmatprep.subr.mxu0 0.0
        %1261 = vmatpush1.msra.mxu0 %v1208
        %1262 = vmatprep.subr.mxu0 0.0
        %1263 = vmatpush1.msra.mxu0 %v1207
        %1264 = vmatprep.subr.mxu0 0.0
        %1265 = vmatpush1.msra.mxu0 %v1206
        %1266 = vmatprep.subr.mxu0 0.0
        %1267 = vmatpush2.msra.mxu0 0.0
        %1268 = vmatprep.subr.mxu0 0.0
        %1269 = vmatpush2.msra.mxu0 0.0
        %1270 = vmatprep.subr.mxu0 0.0
        %1271 = vmatpush2.msra.mxu0 0.0
        %1272 = vmatprep.subr.mxu0 0.0
        %1273 = vmatpush2.msra.mxu0 0.0
        %1274 = vmatprep.subr.mxu0 0.0
        %1275 = vmatpush2.msra.mxu0 0.0
        %1276 = vmatprep.subr.mxu0 0.0
        %1277 = vmatpush2.msra.mxu0 0.0
        %1278 = vmatprep.subr.mxu0 0.0
        %1279 = vmatpush2.msra.mxu0 0.0
        %1280 = vmatprep.subr.mxu0 0.0
        %1281 = vmatpush2.msra.mxu0 0.0
        %1282 = vmatprep.subr.mxu0 0.0
        %1283 = vmatpush2.msra.mxu0 0.0
        %1284 = vmatprep.subr.mxu0 0.0
        %1285 = vmatpush2.msra.mxu0 0.0
        %1286 = vmatprep.subr.mxu0 0.0
        %1287 = vmatpush2.msra.mxu0 0.0
        %1288 = vmatprep.subr.mxu0 0.0
        %1289 = vmatpush2.msra.mxu0 %v1226
        %1290 = vmatprep.subr.mxu0 0.0
        %1291 = vmatpush2.msra.mxu0 %v1225
        %1292 = vmatprep.subr.mxu0 0.0
        %1293 = vmatpush2.msra.mxu0 %v1224
        %1294 = vmatprep.subr.mxu0 0.0
        %1295 = vmatpush2.msra.mxu0 %v1223
        %1296 = vmatprep.subr.mxu0 0.0
        %1297 = vmatpush2.msra.mxu0 %v1222
        %1298 = vmatprep.mubr.f32.mxu0 %v1229
        %1299 = vmatmul.mubr.f32.gmra.mxu0 %v1196
        %v1300 = vpop.f32.mrf.mxu0
        %v1301 = vadd.f32 0.0, %v1300
        %v1302 = vpop.f32.mrf.mxu0
        %1303 = vmatprep.mubr.f32.mxu0 %v1232
        %1304 = vmatmul.mubr.f32.gmra.mxu0 %v1202
        %v1305 = vpop.f32.mrf.mxu0
        %v1306 = vadd.f32 0.0, %v1305
        %v1307 = vpop.f32.mrf.mxu0
        %1308 = vdwg.mxu0
        %s1309 = scalar_lea.vmem %s4, 168
        %v1310 = vld [vmem:[%s1309] sm:$0xff]
        %v1311 = vld [vmem:[%s1309 + $0x8] sm:$0xff]
        %v1312 = vld [vmem:[%s1309 + $0x10] sm:$0xff]
        %v1313 = vld [vmem:[%s1309 + $0x18] sm:$0xff]
        %v1314 = vld [vmem:[%s1309 + $0x20] sm:$0xff]
        %v1315 = vld [vmem:[%s1309 + $0x28] sm:$0xff]
        %v1316 = vld [vmem:[%s1309 + $0x30] sm:$0xff]
        %v1317 = vld [vmem:[%s1309 + $0x38] sm:$0xff]
        %v1318 = vld [vmem:[%s1309 + $0x40] sm:$0xff]
        %v1319 = vld [vmem:[%s1309 + $0x48] sm:$0xff]
        %v1320 = vld [vmem:[%s1309 + $0x50] sm:$0xff]
        %v1321 = vld [vmem:[%s1309 + $0x58] sm:$0xff]
        %v1322 = vld [vmem:[%s1309 + $0x60] sm:$0xff]
        %v1323 = vld [vmem:[%s1309 + $0x68] sm:$0xff]
        %v1324 = vld [vmem:[%s1309 + $0x70] sm:$0xff]
        %v1325 = vld [vmem:[%s1309 + $0x78] sm:$0xff]
        %v1326 = vld [vmem:[%s1309 + $0x80] sm:$0xff]
        %v1327 = vld [vmem:[%s1309 + $0x88] sm:$0xff]
        %v1328 = vld [vmem:[%s1309 + $0x90] sm:$0xff]
        %v1329 = vld [vmem:[%s1309 + $0x98] sm:$0xff]
        %v1330 = vld [vmem:[%s1309 + $0xa0] sm:$0xff]
        %1331 = vmatprep.subr.mxu0 0.0
        %1332 = vmatpush1.msra.mxu0 %v1325
        %1333 = vmatprep.subr.mxu0 0.0
        %1334 = vmatpush1.msra.mxu0 %v1324
        %1335 = vmatprep.subr.mxu0 0.0
        %1336 = vmatpush1.msra.mxu0 %v1323
        %1337 = vmatprep.subr.mxu0 0.0
        %1338 = vmatpush1.msra.mxu0 %v1322
        %1339 = vmatprep.subr.mxu0 0.0
        %1340 = vmatpush1.msra.mxu0 %v1321
        %1341 = vmatprep.subr.mxu0 0.0
        %1342 = vmatpush1.msra.mxu0 %v1320
        %1343 = vmatprep.subr.mxu0 0.0
        %1344 = vmatpush1.msra.mxu0 %v1319
        %1345 = vmatprep.subr.mxu0 0.0
        %1346 = vmatpush1.msra.mxu0 %v1318
        %1347 = vmatprep.subr.mxu0 0.0
        %1348 = vmatpush1.msra.mxu0 %v1317
        %1349 = vmatprep.subr.mxu0 0.0
        %1350 = vmatpush1.msra.mxu0 %v1316
        %1351 = vmatprep.subr.mxu0 0.0
        %1352 = vmatpush1.msra.mxu0 %v1315
        %1353 = vmatprep.subr.mxu0 0.0
        %1354 = vmatpush1.msra.mxu0 %v1314
        %1355 = vmatprep.subr.mxu0 0.0
        %1356 = vmatpush1.msra.mxu0 %v1313
        %1357 = vmatprep.subr.mxu0 0.0
        %1358 = vmatpush1.msra.mxu0 %v1312
        %1359 = vmatprep.subr.mxu0 0.0
        %1360 = vmatpush1.msra.mxu0 %v1311
        %1361 = vmatprep.subr.mxu0 0.0
        %1362 = vmatpush1.msra.mxu0 %v1310
        %1363 = vmatprep.subr.mxu0 0.0
        %1364 = vmatpush2.msra.mxu0 0.0
        %1365 = vmatprep.subr.mxu0 0.0
        %1366 = vmatpush2.msra.mxu0 0.0
        %1367 = vmatprep.subr.mxu0 0.0
        %1368 = vmatpush2.msra.mxu0 0.0
        %1369 = vmatprep.subr.mxu0 0.0
        %1370 = vmatpush2.msra.mxu0 0.0
        %1371 = vmatprep.subr.mxu0 0.0
        %1372 = vmatpush2.msra.mxu0 0.0
        %1373 = vmatprep.subr.mxu0 0.0
        %1374 = vmatpush2.msra.mxu0 0.0
        %1375 = vmatprep.subr.mxu0 0.0
        %1376 = vmatpush2.msra.mxu0 0.0
        %1377 = vmatprep.subr.mxu0 0.0
        %1378 = vmatpush2.msra.mxu0 0.0
        %1379 = vmatprep.subr.mxu0 0.0
        %1380 = vmatpush2.msra.mxu0 0.0
        %1381 = vmatprep.subr.mxu0 0.0
        %1382 = vmatpush2.msra.mxu0 0.0
        %1383 = vmatprep.subr.mxu0 0.0
        %1384 = vmatpush2.msra.mxu0 0.0
        %1385 = vmatprep.subr.mxu0 0.0
        %1386 = vmatpush2.msra.mxu0 %v1330
        %1387 = vmatprep.subr.mxu0 0.0
        %1388 = vmatpush2.msra.mxu0 %v1329
        %1389 = vmatprep.subr.mxu0 0.0
        %1390 = vmatpush2.msra.mxu0 %v1328
        %1391 = vmatprep.subr.mxu0 0.0
        %1392 = vmatpush2.msra.mxu0 %v1327
        %1393 = vmatprep.subr.mxu0 0.0
        %1394 = vmatpush2.msra.mxu0 %v1326
        %1395 = vmatprep.mubr.f32.mxu0 %v1229
        %1396 = vmatmul.mubr.f32.gmra.mxu0 %v1196
        %v1397 = vpop.f32.mrf.mxu0
        %v1398 = vadd.f32 0.0, %v1397
        %v1399 = vpop.f32.mrf.mxu0
        %1400 = vmatprep.mubr.f32.mxu0 %v1232
        %1401 = vmatmul.mubr.f32.gmra.mxu0 %v1202
        %v1402 = vpop.f32.mrf.mxu0
        %v1403 = vadd.f32 0.0, %v1402
        %v1404 = vpop.f32.mrf.mxu0
        %1405 = vdwg.mxu0
        %s1406 = scalar_lea.vmem %s3, 16
        %v1407 = vld [vmem:[%s1406] sm:$0xff]
        %v1408 = vld [vmem:[%s1406 + $0x8] sm:$0x3f]
        %v1410 = vsel %vm1116, %v1407, 0
        %v1413 = vsel %vm1116, %v1408, 0
        %1415 = vmatprep.subr.mxu0 0.0
        %1416 = vmatpush1.msra.mxu0 0.0
        %1417 = vmatprep.subr.mxu0 0.0
        %1418 = vmatpush1.msra.mxu0 0.0
        %1419 = vmatprep.subr.mxu0 0.0
        %1420 = vmatpush1.msra.mxu0 0.0
        %1421 = vmatprep.subr.mxu0 0.0
        %1422 = vmatpush1.msra.mxu0 0.0
        %1423 = vmatprep.subr.mxu0 0.0
        %1424 = vmatpush1.msra.mxu0 0.0
        %1425 = vmatprep.subr.mxu0 0.0
        %1426 = vmatpush1.msra.mxu0 0.0
        %1427 = vmatprep.subr.mxu0 0.0
        %1428 = vmatpush1.msra.mxu0 0.0
        %1429 = vmatprep.subr.mxu0 0.0
        %1430 = vmatpush1.msra.mxu0 0.0
        %1431 = vmatprep.subr.mxu0 0.0
        %1432 = vmatpush1.msra.mxu0 0.0
        %1433 = vmatprep.subr.mxu0 0.0
        %1434 = vmatpush1.msra.mxu0 0.0
        %1435 = vmatprep.subr.mxu0 0.0
        %1436 = vmatpush1.msra.mxu0 0.0
        %1437 = vmatprep.subr.mxu0 0.0
        %1438 = vmatpush1.msra.mxu0 0.0
        %1439 = vmatprep.subr.mxu0 %v1127
        %1440 = vmatpush1.msra.mxu0 %v1124
        %1441 = vmatprep.subr.mxu0 %v1111
        %1442 = vmatpush1.msra.mxu0 %v1110
        %1443 = vmatprep.subr.mxu0 %v1109
        %1444 = vmatpush1.msra.mxu0 %v1108
        %1445 = vmatprep.subr.mxu0 %v1107
        %1446 = vmatpush1.msra.mxu0 %v1106
        %1447 = vmatprep.subr.mxu0 0.0
        %1448 = vmatpush2.msra.mxu0 0.0
        %1449 = vmatprep.subr.mxu0 0.0
        %1450 = vmatpush2.msra.mxu0 0.0
        %1451 = vmatprep.subr.mxu0 0.0
        %1452 = vmatpush2.msra.mxu0 0.0
        %1453 = vmatprep.subr.mxu0 0.0
        %1454 = vmatpush2.msra.mxu0 0.0
        %1455 = vmatprep.subr.mxu0 0.0
        %1456 = vmatpush2.msra.mxu0 0.0
        %1457 = vmatprep.subr.mxu0 0.0
        %1458 = vmatpush2.msra.mxu0 0.0
        %1459 = vmatprep.subr.mxu0 0.0
        %1460 = vmatpush2.msra.mxu0 0.0
        %1461 = vmatprep.subr.mxu0 0.0
        %1462 = vmatpush2.msra.mxu0 0.0
        %1463 = vmatprep.subr.mxu0 0.0
        %1464 = vmatpush2.msra.mxu0 0.0
        %1465 = vmatprep.subr.mxu0 0.0
        %1466 = vmatpush2.msra.mxu0 0.0
        %1467 = vmatprep.subr.mxu0 0.0
        %1468 = vmatpush2.msra.mxu0 0.0
        %1469 = vmatprep.subr.mxu0 0.0
        %1470 = vmatpush2.msra.mxu0 0.0
        %1471 = vmatprep.subr.mxu0 0.0
        %1472 = vmatpush2.msra.mxu0 0.0
        %1473 = vmatprep.subr.mxu0 0.0
        %1474 = vmatpush2.msra.mxu0 0.0
        %1475 = vmatprep.subr.mxu0 0.0
        %1476 = vmatpush2.msra.mxu0 0.0
        %1477 = vmatprep.subr.mxu0 0.0
        %1478 = vmatpush2.msra.mxu0 0.0
        %1479 = vmatprep.mubr.f32.mxu0 0.0
        %1480 = vmatmul.mubr.f32.gmra.mxu0 %v1410
        %v1481 = vpop.f32.mrf.mxu0
        %v1482 = vadd.f32 0.0, %v1481
        %v1483 = vpop.f32.mrf.mxu0
        %v1484 = vadd.f32 0.0, %v1483
        %1485 = vmatprep.mubr.f32.mxu0 0.0
        %1486 = vmatmul.mubr.f32.gmra.mxu0 %v1413
        %v1487 = vpop.f32.mrf.mxu0
        %v1488 = vadd.f32 0.0, %v1487
        %v1489 = vpop.f32.mrf.mxu0
        %v1490 = vadd.f32 0.0, %v1489
        %1491 = vdwg.mxu0
        %v1493 = vsel %vm1227, %v1484, 0
        %v1496 = vsel %vm1227, %v1490, 0
        %1498 = vmatprep.subr.mxu0 0.0
        %1499 = vmatpush1.msra.mxu0 %v1221
        %1500 = vmatprep.subr.mxu0 0.0
        %1501 = vmatpush1.msra.mxu0 %v1220
        %1502 = vmatprep.subr.mxu0 0.0
        %1503 = vmatpush1.msra.mxu0 %v1219
        %1504 = vmatprep.subr.mxu0 0.0
        %1505 = vmatpush1.msra.mxu0 %v1218
        %1506 = vmatprep.subr.mxu0 0.0
        %1507 = vmatpush1.msra.mxu0 %v1217
        %1508 = vmatprep.subr.mxu0 0.0
        %1509 = vmatpush1.msra.mxu0 %v1216
        %1510 = vmatprep.subr.mxu0 0.0
        %1511 = vmatpush1.msra.mxu0 %v1215
        %1512 = vmatprep.subr.mxu0 0.0
        %1513 = vmatpush1.msra.mxu0 %v1214
        %1514 = vmatprep.subr.mxu0 0.0
        %1515 = vmatpush1.msra.mxu0 %v1213
        %1516 = vmatprep.subr.mxu0 0.0
        %1517 = vmatpush1.msra.mxu0 %v1212
        %1518 = vmatprep.subr.mxu0 0.0
        %1519 = vmatpush1.msra.mxu0 %v1211
        %1520 = vmatprep.subr.mxu0 0.0
        %1521 = vmatpush1.msra.mxu0 %v1210
        %1522 = vmatprep.subr.mxu0 0.0
        %1523 = vmatpush1.msra.mxu0 %v1209
        %1524 = vmatprep.subr.mxu0 0.0
        %1525 = vmatpush1.msra.mxu0 %v1208
        %1526 = vmatprep.subr.mxu0 0.0
        %1527 = vmatpush1.msra.mxu0 %v1207
        %1528 = vmatprep.subr.mxu0 0.0
        %1529 = vmatpush1.msra.mxu0 %v1206
        %1530 = vmatprep.subr.mxu0 0.0
        %1531 = vmatpush2.msra.mxu0 0.0
        %1532 = vmatprep.subr.mxu0 0.0
        %1533 = vmatpush2.msra.mxu0 0.0
        %1534 = vmatprep.subr.mxu0 0.0
        %1535 = vmatpush2.msra.mxu0 0.0
        %1536 = vmatprep.subr.mxu0 0.0
        %1537 = vmatpush2.msra.mxu0 0.0
        %1538 = vmatprep.subr.mxu0 0.0
        %1539 = vmatpush2.msra.mxu0 0.0
        %1540 = vmatprep.subr.mxu0 0.0
        %1541 = vmatpush2.msra.mxu0 0.0
        %1542 = vmatprep.subr.mxu0 0.0
        %1543 = vmatpush2.msra.mxu0 0.0
        %1544 = vmatprep.subr.mxu0 0.0
        %1545 = vmatpush2.msra.mxu0 0.0
        %1546 = vmatprep.subr.mxu0 0.0
        %1547 = vmatpush2.msra.mxu0 0.0
        %1548 = vmatprep.subr.mxu0 0.0
        %1549 = vmatpush2.msra.mxu0 0.0
        %1550 = vmatprep.subr.mxu0 0.0
        %1551 = vmatpush2.msra.mxu0 0.0
        %1552 = vmatprep.subr.mxu0 0.0
        %1553 = vmatpush2.msra.mxu0 %v1226
        %1554 = vmatprep.subr.mxu0 0.0
        %1555 = vmatpush2.msra.mxu0 %v1225
        %1556 = vmatprep.subr.mxu0 0.0
        %1557 = vmatpush2.msra.mxu0 %v1224
        %1558 = vmatprep.subr.mxu0 0.0
        %1559 = vmatpush2.msra.mxu0 %v1223
        %1560 = vmatprep.subr.mxu0 0.0
        %1561 = vmatpush2.msra.mxu0 %v1222
        %1562 = vmatprep.mubr.f32.mxu0 %v1493
        %1563 = vmatmul.mubr.f32.gmra.mxu0 %v1482
        %v1564 = vpop.f32.mrf.mxu0
        %v1565 = vadd.f32 0.0, %v1564
        %v1566 = vpop.f32.mrf.mxu0
        %1567 = vmatprep.mubr.f32.mxu0 %v1496
        %1568 = vmatmul.mubr.f32.gmra.mxu0 %v1488
        %v1569 = vpop.f32.mrf.mxu0
        %v1570 = vadd.f32 0.0, %v1569
        %v1571 = vpop.f32.mrf.mxu0
        %1572 = vdwg.mxu0
        %1573 = vmatprep.subr.mxu0 0.0
        %1574 = vmatpush1.msra.mxu0 %v1325
        %1575 = vmatprep.subr.mxu0 0.0
        %1576 = vmatpush1.msra.mxu0 %v1324
        %1577 = vmatprep.subr.mxu0 0.0
        %1578 = vmatpush1.msra.mxu0 %v1323
        %1579 = vmatprep.subr.mxu0 0.0
        %1580 = vmatpush1.msra.mxu0 %v1322
        %1581 = vmatprep.subr.mxu0 0.0
        %1582 = vmatpush1.msra.mxu0 %v1321
        %1583 = vmatprep.subr.mxu0 0.0
        %1584 = vmatpush1.msra.mxu0 %v1320
        %1585 = vmatprep.subr.mxu0 0.0
        %1586 = vmatpush1.msra.mxu0 %v1319
        %1587 = vmatprep.subr.mxu0 0.0
        %1588 = vmatpush1.msra.mxu0 %v1318
        %1589 = vmatprep.subr.mxu0 0.0
        %1590 = vmatpush1.msra.mxu0 %v1317
        %1591 = vmatprep.subr.mxu0 0.0
        %1592 = vmatpush1.msra.mxu0 %v1316
        %1593 = vmatprep.subr.mxu0 0.0
        %1594 = vmatpush1.msra.mxu0 %v1315
        %1595 = vmatprep.subr.mxu0 0.0
        %1596 = vmatpush1.msra.mxu0 %v1314
        %1597 = vmatprep.subr.mxu0 0.0
        %1598 = vmatpush1.msra.mxu0 %v1313
        %1599 = vmatprep.subr.mxu0 0.0
        %1600 = vmatpush1.msra.mxu0 %v1312
        %1601 = vmatprep.subr.mxu0 0.0
        %1602 = vmatpush1.msra.mxu0 %v1311
        %1603 = vmatprep.subr.mxu0 0.0
        %1604 = vmatpush1.msra.mxu0 %v1310
        %1605 = vmatprep.subr.mxu0 0.0
        %1606 = vmatpush2.msra.mxu0 0.0
        %1607 = vmatprep.subr.mxu0 0.0
        %1608 = vmatpush2.msra.mxu0 0.0
        %1609 = vmatprep.subr.mxu0 0.0
        %1610 = vmatpush2.msra.mxu0 0.0
        %1611 = vmatprep.subr.mxu0 0.0
        %1612 = vmatpush2.msra.mxu0 0.0
        %1613 = vmatprep.subr.mxu0 0.0
        %1614 = vmatpush2.msra.mxu0 0.0
        %1615 = vmatprep.subr.mxu0 0.0
        %1616 = vmatpush2.msra.mxu0 0.0
        %1617 = vmatprep.subr.mxu0 0.0
        %1618 = vmatpush2.msra.mxu0 0.0
        %1619 = vmatprep.subr.mxu0 0.0
        %1620 = vmatpush2.msra.mxu0 0.0
        %1621 = vmatprep.subr.mxu0 0.0
        %1622 = vmatpush2.msra.mxu0 0.0
        %1623 = vmatprep.subr.mxu0 0.0
        %1624 = vmatpush2.msra.mxu0 0.0
        %1625 = vmatprep.subr.mxu0 0.0
        %1626 = vmatpush2.msra.mxu0 0.0
        %1627 = vmatprep.subr.mxu0 0.0
        %1628 = vmatpush2.msra.mxu0 %v1330
        %1629 = vmatprep.subr.mxu0 0.0
        %1630 = vmatpush2.msra.mxu0 %v1329
        %1631 = vmatprep.subr.mxu0 0.0
        %1632 = vmatpush2.msra.mxu0 %v1328
        %1633 = vmatprep.subr.mxu0 0.0
        %1634 = vmatpush2.msra.mxu0 %v1327
        %1635 = vmatprep.subr.mxu0 0.0
        %1636 = vmatpush2.msra.mxu0 %v1326
        %1637 = vmatprep.mubr.f32.mxu0 %v1493
        %1638 = vmatmul.mubr.f32.gmra.mxu0 %v1482
        %v1639 = vpop.f32.mrf.mxu0
        %v1640 = vadd.f32 0.0, %v1639
        %v1641 = vpop.f32.mrf.mxu0
        %1642 = vmatprep.mubr.f32.mxu0 %v1496
        %1643 = vmatmul.mubr.f32.gmra.mxu0 %v1488
        %v1644 = vpop.f32.mrf.mxu0
        %v1645 = vadd.f32 0.0, %v1644
        %v1646 = vpop.f32.mrf.mxu0
        %1647 = vdwg.mxu0
        %v1648 = vmax.f32 %v1301, %v1398
        %v1649 = vmax.f32 %v1306, %v1403
        %v1650 = vmax.f32 %v1565, %v1640
        %v1651 = vmax.f32 %v1570, %v1645
        %v1652 = vmax.f32 %v1648, %v1650
        %v1653 = vmax.f32 %v1649, %v1651
        %v1654 = vld [vmem:[%s5] sm:$0xff]
        %v1655 = vld [vmem:[%s5 + $0x8] sm:$0xff]
        %v1656 = vld [vmem:[%s5 + $0x10] sm:$0xff]
        %v1657 = vld [vmem:[%s5 + $0x18] sm:$0xff]
        %v1658 = vld [vmem:[%s5 + $0x20] sm:$0xff]
        %v1659 = vld [vmem:[%s5 + $0x28] sm:$0xff]
        %v1660 = vld [vmem:[%s5 + $0x30] sm:$0xff]
        %v1661 = vld [vmem:[%s5 + $0x38] sm:$0xff]
        %v1662 = vld [vmem:[%s5 + $0x40] sm:$0xff]
        %v1663 = vld [vmem:[%s5 + $0x48] sm:$0xff]
        %v1664 = vld [vmem:[%s5 + $0x50] sm:$0xff]
        %v1665 = vld [vmem:[%s5 + $0x58] sm:$0xff]
        %v1666 = vld [vmem:[%s5 + $0x60] sm:$0xff]
        %v1667 = vld [vmem:[%s5 + $0x68] sm:$0xff]
        %v1668 = vld [vmem:[%s5 + $0x70] sm:$0xff]
        %v1669 = vld [vmem:[%s5 + $0x78] sm:$0xff]
        %v1670 = vld [vmem:[%s5 + $0x80] sm:$0xff]
        %v1671 = vld [vmem:[%s5 + $0x88] sm:$0xff]
        %v1672 = vld [vmem:[%s5 + $0x90] sm:$0xff]
        %v1673 = vld [vmem:[%s5 + $0x98] sm:$0xff]
        %v1674 = vld [vmem:[%s5 + $0xa0] sm:$0xf]
        %v1675 = vld [vmem:[%s5 + $0xa8] sm:$0xf]
        %s1676 = scalar_lea.vmem %s5, 176
        %v1677 = vld [vmem:[%s1676] sm:$0xff]
        %v1678 = vld [vmem:[%s1676 + $0x8] sm:$0xff]
        %v1679 = vld [vmem:[%s1676 + $0x10] sm:$0xff]
        %v1680 = vld [vmem:[%s1676 + $0x18] sm:$0xff]
        %v1681 = vld [vmem:[%s1676 + $0x20] sm:$0xff]
        %v1682 = vld [vmem:[%s1676 + $0x28] sm:$0xff]
        %v1683 = vld [vmem:[%s1676 + $0x30] sm:$0xff]
        %v1684 = vld [vmem:[%s1676 + $0x38] sm:$0xff]
        %v1685 = vld [vmem:[%s1676 + $0x40] sm:$0xff]
        %v1686 = vld [vmem:[%s1676 + $0x48] sm:$0xff]
        %v1687 = vld [vmem:[%s1676 + $0x50] sm:$0xff]
        %v1688 = vld [vmem:[%s1676 + $0x58] sm:$0xff]
        %v1689 = vld [vmem:[%s1676 + $0x60] sm:$0xff]
        %v1690 = vld [vmem:[%s1676 + $0x68] sm:$0xff]
        %v1691 = vld [vmem:[%s1676 + $0x70] sm:$0xff]
        %v1692 = vld [vmem:[%s1676 + $0x78] sm:$0xff]
        %v1693 = vld [vmem:[%s1676 + $0x80] sm:$0xff]
        %v1694 = vld [vmem:[%s1676 + $0x88] sm:$0xff]
        %v1695 = vld [vmem:[%s1676 + $0x90] sm:$0xff]
        %v1696 = vld [vmem:[%s1676 + $0x98] sm:$0xff]
        %v1697 = vld [vmem:[%s1676 + $0xa0] sm:$0xf]
        %v1698 = vld [vmem:[%s1676 + $0xa8] sm:$0xf]
        %v1701 = vrot.slane %v1652, 1
        %v1702 = vrot.slane %v1653, 1
        %v1703 = vsel %vm517, %v1701, %v1702
        %vm1704 = vcmask 687104
        %v1705 = vsel %vm1704, %v1703, 0
        %v1707 = vsel %vm1704, %v1702, 0
        %v1710 = vsel %vm973, %v1697, 0
        %v1713 = vsel %vm973, %v1698, 0
        %1715 = vmatprep.subr.mxu0 0.0
        %1716 = vmatpush1.msra.mxu0 0.0
        %1717 = vmatprep.subr.mxu0 0.0
        %1718 = vmatpush1.msra.mxu0 0.0
        %1719 = vmatprep.subr.mxu0 0.0
        %1720 = vmatpush1.msra.mxu0 0.0
        %1721 = vmatprep.subr.mxu0 0.0
        %1722 = vmatpush1.msra.mxu0 0.0
        %1723 = vmatprep.subr.mxu0 0.0
        %1724 = vmatpush1.msra.mxu0 0.0
        %1725 = vmatprep.subr.mxu0 %v1713
        %1726 = vmatpush1.msra.mxu0 %v1710
        %1727 = vmatprep.subr.mxu0 %v1696
        %1728 = vmatpush1.msra.mxu0 %v1695
        %1729 = vmatprep.subr.mxu0 %v1694
        %1730 = vmatpush1.msra.mxu0 %v1693
        %1731 = vmatprep.subr.mxu0 %v1692
        %1732 = vmatpush1.msra.mxu0 %v1691
        %1733 = vmatprep.subr.mxu0 %v1690
        %1734 = vmatpush1.msra.mxu0 %v1689
        %1735 = vmatprep.subr.mxu0 %v1688
        %1736 = vmatpush1.msra.mxu0 %v1687
        %1737 = vmatprep.subr.mxu0 %v1686
        %1738 = vmatpush1.msra.mxu0 %v1685
        %1739 = vmatprep.subr.mxu0 %v1684
        %1740 = vmatpush1.msra.mxu0 %v1683
        %1741 = vmatprep.subr.mxu0 %v1682
        %1742 = vmatpush1.msra.mxu0 %v1681
        %1743 = vmatprep.subr.mxu0 %v1680
        %1744 = vmatpush1.msra.mxu0 %v1679
        %1745 = vmatprep.subr.mxu0 %v1678
        %1746 = vmatpush1.msra.mxu0 %v1677
        %1747 = vmatprep.subr.mxu0 0.0
        %1748 = vmatpush2.msra.mxu0 0.0
        %1749 = vmatprep.subr.mxu0 0.0
        %1750 = vmatpush2.msra.mxu0 0.0
        %1751 = vmatprep.subr.mxu0 0.0
        %1752 = vmatpush2.msra.mxu0 0.0
        %1753 = vmatprep.subr.mxu0 0.0
        %1754 = vmatpush2.msra.mxu0 0.0
        %1755 = vmatprep.subr.mxu0 0.0
        %1756 = vmatpush2.msra.mxu0 0.0
        %1757 = vmatprep.subr.mxu0 0.0
        %1758 = vmatpush2.msra.mxu0 0.0
        %1759 = vmatprep.subr.mxu0 0.0
        %1760 = vmatpush2.msra.mxu0 0.0
        %1761 = vmatprep.subr.mxu0 0.0
        %1762 = vmatpush2.msra.mxu0 0.0
        %1763 = vmatprep.subr.mxu0 0.0
        %1764 = vmatpush2.msra.mxu0 0.0
        %1765 = vmatprep.subr.mxu0 0.0
        %1766 = vmatpush2.msra.mxu0 0.0
        %1767 = vmatprep.subr.mxu0 0.0
        %1768 = vmatpush2.msra.mxu0 0.0
        %1769 = vmatprep.subr.mxu0 0.0
        %1770 = vmatpush2.msra.mxu0 0.0
        %1771 = vmatprep.subr.mxu0 0.0
        %1772 = vmatpush2.msra.mxu0 0.0
        %1773 = vmatprep.subr.mxu0 0.0
        %1774 = vmatpush2.msra.mxu0 0.0
        %1775 = vmatprep.subr.mxu0 0.0
        %1776 = vmatpush2.msra.mxu0 0.0
        %1777 = vmatprep.subr.mxu0 0.0
        %1778 = vmatpush2.msra.mxu0 0.0
        %1779 = vmatprep.mubr.f32.mxu0 0.0
        %1780 = vmatmul.mubr.f32.gmra.mxu0 %v1705
        %v1781 = vpop.f32.mrf.mxu0
        %v1782 = vadd.f32 0.0, %v1781
        %v1783 = vpop.f32.mrf.mxu0
        %v1784 = vadd.f32 0.0, %v1783
        %1785 = vmatprep.mubr.f32.mxu0 0.0
        %1786 = vmatmul.mubr.f32.gmra.mxu0 %v1707
        %v1787 = vpop.f32.mrf.mxu0
        %v1788 = vadd.f32 0.0, %v1787
        %v1789 = vpop.f32.mrf.mxu0
        %v1790 = vadd.f32 0.0, %v1789
        %1791 = vdwg.mxu0
        %v1792 = vsel %vm1704, %v1652, 0
        %v1794 = vsel %vm1704, %v1653, 0
        %v1797 = vsel %vm973, %v1674, 0
        %v1800 = vsel %vm973, %v1675, 0
        %1802 = vmatprep.subr.mxu0 0.0
        %1803 = vmatpush1.msra.mxu0 0.0
        %1804 = vmatprep.subr.mxu0 0.0
        %1805 = vmatpush1.msra.mxu0 0.0
        %1806 = vmatprep.subr.mxu0 0.0
        %1807 = vmatpush1.msra.mxu0 0.0
        %1808 = vmatprep.subr.mxu0 0.0
        %1809 = vmatpush1.msra.mxu0 0.0
        %1810 = vmatprep.subr.mxu0 0.0
        %1811 = vmatpush1.msra.mxu0 0.0
        %1812 = vmatprep.subr.mxu0 %v1800
        %1813 = vmatpush1.msra.mxu0 %v1797
        %1814 = vmatprep.subr.mxu0 %v1673
        %1815 = vmatpush1.msra.mxu0 %v1672
        %1816 = vmatprep.subr.mxu0 %v1671
        %1817 = vmatpush1.msra.mxu0 %v1670
        %1818 = vmatprep.subr.mxu0 %v1669
        %1819 = vmatpush1.msra.mxu0 %v1668
        %1820 = vmatprep.subr.mxu0 %v1667
        %1821 = vmatpush1.msra.mxu0 %v1666
        %1822 = vmatprep.subr.mxu0 %v1665
        %1823 = vmatpush1.msra.mxu0 %v1664
        %1824 = vmatprep.subr.mxu0 %v1663
        %1825 = vmatpush1.msra.mxu0 %v1662
        %1826 = vmatprep.subr.mxu0 %v1661
        %1827 = vmatpush1.msra.mxu0 %v1660
        %1828 = vmatprep.subr.mxu0 %v1659
        %1829 = vmatpush1.msra.mxu0 %v1658
        %1830 = vmatprep.subr.mxu0 %v1657
        %1831 = vmatpush1.msra.mxu0 %v1656
        %1832 = vmatprep.subr.mxu0 %v1655
        %1833 = vmatpush1.msra.mxu0 %v1654
        %1834 = vmatprep.subr.mxu0 0.0
        %1835 = vmatpush2.msra.mxu0 0.0
        %1836 = vmatprep.subr.mxu0 0.0
        %1837 = vmatpush2.msra.mxu0 0.0
        %1838 = vmatprep.subr.mxu0 0.0
        %1839 = vmatpush2.msra.mxu0 0.0
        %1840 = vmatprep.subr.mxu0 0.0
        %1841 = vmatpush2.msra.mxu0 0.0
        %1842 = vmatprep.subr.mxu0 0.0
        %1843 = vmatpush2.msra.mxu0 0.0
        %1844 = vmatprep.subr.mxu0 0.0
        %1845 = vmatpush2.msra.mxu0 0.0
        %1846 = vmatprep.subr.mxu0 0.0
        %1847 = vmatpush2.msra.mxu0 0.0
        %1848 = vmatprep.subr.mxu0 0.0
        %1849 = vmatpush2.msra.mxu0 0.0
        %1850 = vmatprep.subr.mxu0 0.0
        %1851 = vmatpush2.msra.mxu0 0.0
        %1852 = vmatprep.subr.mxu0 0.0
        %1853 = vmatpush2.msra.mxu0 0.0
        %1854 = vmatprep.subr.mxu0 0.0
        %1855 = vmatpush2.msra.mxu0 0.0
        %1856 = vmatprep.subr.mxu0 0.0
        %1857 = vmatpush2.msra.mxu0 0.0
        %1858 = vmatprep.subr.mxu0 0.0
        %1859 = vmatpush2.msra.mxu0 0.0
        %1860 = vmatprep.subr.mxu0 0.0
        %1861 = vmatpush2.msra.mxu0 0.0
        %1862 = vmatprep.subr.mxu0 0.0
        %1863 = vmatpush2.msra.mxu0 0.0
        %1864 = vmatprep.subr.mxu0 0.0
        %1865 = vmatpush2.msra.mxu0 0.0
        %1866 = vmatprep.mubr.f32.mxu0 0.0
        %1867 = vmatmul.mubr.f32.gmra.mxu0 %v1792
        %v1868 = vpop.f32.mrf.mxu0
        %v1869 = vadd.f32 %v1782, %v1868
        %v1870 = vpop.f32.mrf.mxu0
        %v1871 = vadd.f32 %v1784, %v1870
        %1872 = vmatprep.mubr.f32.mxu0 0.0
        %1873 = vmatmul.mubr.f32.gmra.mxu0 %v1794
        %v1874 = vpop.f32.mrf.mxu0
        %v1875 = vadd.f32 %v1788, %v1874
        %v1876 = vpop.f32.mrf.mxu0
        %v1877 = vadd.f32 %v1790, %v1876
        %1878 = vdwg.mxu0
        %s1879 = scalar_lea.vmem %s5, 352
        %v1880 = vld [vmem:[%s1879] sm:$0xff]
        %v1881 = vld [vmem:[%s1879 + $0x8] sm:$0xff]
        %v1882 = vld [vmem:[%s1879 + $0x10] sm:$0xff]
        %v1883 = vld [vmem:[%s1879 + $0x18] sm:$0xff]
        %v1884 = vld [vmem:[%s1879 + $0x20] sm:$0xff]
        %v1885 = vld [vmem:[%s1879 + $0x28] sm:$0xff]
        %v1886 = vld [vmem:[%s1879 + $0x30] sm:$0xff]
        %v1887 = vld [vmem:[%s1879 + $0x38] sm:$0xff]
        %v1888 = vld [vmem:[%s1879 + $0x40] sm:$0xff]
        %v1889 = vld [vmem:[%s1879 + $0x48] sm:$0xff]
        %v1890 = vld [vmem:[%s1879 + $0x50] sm:$0xff]
        %v1891 = vld [vmem:[%s1879 + $0x58] sm:$0xff]
        %v1892 = vld [vmem:[%s1879 + $0x60] sm:$0xff]
        %v1893 = vld [vmem:[%s1879 + $0x68] sm:$0xff]
        %v1894 = vld [vmem:[%s1879 + $0x70] sm:$0xff]
        %v1895 = vld [vmem:[%s1879 + $0x78] sm:$0xff]
        %v1896 = vld [vmem:[%s1879 + $0x80] sm:$0xff]
        %v1897 = vld [vmem:[%s1879 + $0x88] sm:$0xff]
        %v1898 = vld [vmem:[%s1879 + $0x90] sm:$0xff]
        %v1899 = vld [vmem:[%s1879 + $0x98] sm:$0xff]
        %v1900 = vld [vmem:[%s1879 + $0xa0] sm:$0xf]
        %v1901 = vld [vmem:[%s1879 + $0xa8] sm:$0xf]
        %v1902 = vrot.slane %v1652, 2
        %v1903 = vrot.slane %v1653, 2
        %v1904 = vsel %vm729, %v1902, %v1903
        %v1905 = vsel %vm1704, %v1904, 0
        %v1907 = vsel %vm1704, %v1903, 0
        %v1910 = vsel %vm973, %v1900, 0
        %v1913 = vsel %vm973, %v1901, 0
        %1915 = vmatprep.subr.mxu0 0.0
        %1916 = vmatpush1.msra.mxu0 0.0
        %1917 = vmatprep.subr.mxu0 0.0
        %1918 = vmatpush1.msra.mxu0 0.0
        %1919 = vmatprep.subr.mxu0 0.0
        %1920 = vmatpush1.msra.mxu0 0.0
        %1921 = vmatprep.subr.mxu0 0.0
        %1922 = vmatpush1.msra.mxu0 0.0
        %1923 = vmatprep.subr.mxu0 0.0
        %1924 = vmatpush1.msra.mxu0 0.0
        %1925 = vmatprep.subr.mxu0 %v1913
        %1926 = vmatpush1.msra.mxu0 %v1910
        %1927 = vmatprep.subr.mxu0 %v1899
        %1928 = vmatpush1.msra.mxu0 %v1898
        %1929 = vmatprep.subr.mxu0 %v1897
        %1930 = vmatpush1.msra.mxu0 %v1896
        %1931 = vmatprep.subr.mxu0 %v1895
        %1932 = vmatpush1.msra.mxu0 %v1894
        %1933 = vmatprep.subr.mxu0 %v1893
        %1934 = vmatpush1.msra.mxu0 %v1892
        %1935 = vmatprep.subr.mxu0 %v1891
        %1936 = vmatpush1.msra.mxu0 %v1890
        %1937 = vmatprep.subr.mxu0 %v1889
        %1938 = vmatpush1.msra.mxu0 %v1888
        %1939 = vmatprep.subr.mxu0 %v1887
        %1940 = vmatpush1.msra.mxu0 %v1886
        %1941 = vmatprep.subr.mxu0 %v1885
        %1942 = vmatpush1.msra.mxu0 %v1884
        %1943 = vmatprep.subr.mxu0 %v1883
        %1944 = vmatpush1.msra.mxu0 %v1882
        %1945 = vmatprep.subr.mxu0 %v1881
        %1946 = vmatpush1.msra.mxu0 %v1880
        %1947 = vmatprep.subr.mxu0 0.0
        %1948 = vmatpush2.msra.mxu0 0.0
        %1949 = vmatprep.subr.mxu0 0.0
        %1950 = vmatpush2.msra.mxu0 0.0
        %1951 = vmatprep.subr.mxu0 0.0
        %1952 = vmatpush2.msra.mxu0 0.0
        %1953 = vmatprep.subr.mxu0 0.0
        %1954 = vmatpush2.msra.mxu0 0.0
        %1955 = vmatprep.subr.mxu0 0.0
        %1956 = vmatpush2.msra.mxu0 0.0
        %1957 = vmatprep.subr.mxu0 0.0
        %1958 = vmatpush2.msra.mxu0 0.0
        %1959 = vmatprep.subr.mxu0 0.0
        %1960 = vmatpush2.msra.mxu0 0.0
        %1961 = vmatprep.subr.mxu0 0.0
        %1962 = vmatpush2.msra.mxu0 0.0
        %1963 = vmatprep.subr.mxu0 0.0
        %1964 = vmatpush2.msra.mxu0 0.0
        %1965 = vmatprep.subr.mxu0 0.0
        %1966 = vmatpush2.msra.mxu0 0.0
        %1967 = vmatprep.subr.mxu0 0.0
        %1968 = vmatpush2.msra.mxu0 0.0
        %1969 = vmatprep.subr.mxu0 0.0
        %1970 = vmatpush2.msra.mxu0 0.0
        %1971 = vmatprep.subr.mxu0 0.0
        %1972 = vmatpush2.msra.mxu0 0.0
        %1973 = vmatprep.subr.mxu0 0.0
        %1974 = vmatpush2.msra.mxu0 0.0
        %1975 = vmatprep.subr.mxu0 0.0
        %1976 = vmatpush2.msra.mxu0 0.0
        %1977 = vmatprep.subr.mxu0 0.0
        %1978 = vmatpush2.msra.mxu0 0.0
        %1979 = vmatprep.mubr.f32.mxu0 0.0
        %1980 = vmatmul.mubr.f32.gmra.mxu0 %v1905
        %v1981 = vpop.f32.mrf.mxu0
        %v1982 = vadd.f32 0.0, %v1981
        %v1983 = vpop.f32.mrf.mxu0
        %v1984 = vadd.f32 0.0, %v1983
        %1985 = vmatprep.mubr.f32.mxu0 0.0
        %1986 = vmatmul.mubr.f32.gmra.mxu0 %v1907
        %v1987 = vpop.f32.mrf.mxu0
        %v1988 = vadd.f32 0.0, %v1987
        %v1989 = vpop.f32.mrf.mxu0
        %v1990 = vadd.f32 0.0, %v1989
        %1991 = vdwg.mxu0
        %v1992 = vadd.f32 %v1869, %v1982
        %v1993 = vadd.f32 %v1871, %v1984
        %v1994 = vadd.f32 %v1875, %v1988
        %v1995 = vadd.f32 %v1877, %v1990
        %s1996 = scalar_lea.vmem %s5, 528
        %v1997 = vld [vmem:[%s1996] sm:$0xff]
        %v1998 = vld [vmem:[%s1996 + $0x8] sm:$0xff]
        %v1999 = vld [vmem:[%s1996 + $0x10] sm:$0xff]
        %v2000 = vld [vmem:[%s1996 + $0x18] sm:$0xff]
        %v2001 = vld [vmem:[%s1996 + $0x20] sm:$0xff]
        %v2002 = vld [vmem:[%s1996 + $0x28] sm:$0xff]
        %v2003 = vld [vmem:[%s1996 + $0x30] sm:$0xff]
        %v2004 = vld [vmem:[%s1996 + $0x38] sm:$0xff]
        %v2005 = vld [vmem:[%s1996 + $0x40] sm:$0xff]
        %v2006 = vld [vmem:[%s1996 + $0x48] sm:$0xff]
        %v2007 = vld [vmem:[%s1996 + $0x50] sm:$0xff]
        %v2008 = vld [vmem:[%s1996 + $0x58] sm:$0xff]
        %v2009 = vld [vmem:[%s1996 + $0x60] sm:$0xff]
        %v2010 = vld [vmem:[%s1996 + $0x68] sm:$0xff]
        %v2011 = vld [vmem:[%s1996 + $0x70] sm:$0xff]
        %v2012 = vld [vmem:[%s1996 + $0x78] sm:$0xff]
        %v2013 = vld [vmem:[%s1996 + $0x80] sm:$0xff]
        %v2014 = vld [vmem:[%s1996 + $0x88] sm:$0xff]
        %v2015 = vld [vmem:[%s1996 + $0x90] sm:$0xff]
        %v2016 = vld [vmem:[%s1996 + $0x98] sm:$0xff]
        %v2017 = vld [vmem:[%s1996 + $0xa0] sm:$0xf]
        %v2018 = vld [vmem:[%s1996 + $0xa8] sm:$0xf]
        %v2019 = vrot.slane %v1652, 3
        %v2020 = vrot.slane %v1653, 3
        %v2021 = vsel %vm851, %v2019, %v2020
        %v2022 = vsel %vm1704, %v2021, 0
        %v2024 = vsel %vm1704, %v2020, 0
        %v2027 = vsel %vm973, %v2017, 0
        %v2030 = vsel %vm973, %v2018, 0
        %2032 = vmatprep.subr.mxu0 0.0
        %2033 = vmatpush1.msra.mxu0 0.0
        %2034 = vmatprep.subr.mxu0 0.0
        %2035 = vmatpush1.msra.mxu0 0.0
        %2036 = vmatprep.subr.mxu0 0.0
        %2037 = vmatpush1.msra.mxu0 0.0
        %2038 = vmatprep.subr.mxu0 0.0
        %2039 = vmatpush1.msra.mxu0 0.0
        %2040 = vmatprep.subr.mxu0 0.0
        %2041 = vmatpush1.msra.mxu0 0.0
        %2042 = vmatprep.subr.mxu0 %v2030
        %2043 = vmatpush1.msra.mxu0 %v2027
        %2044 = vmatprep.subr.mxu0 %v2016
        %2045 = vmatpush1.msra.mxu0 %v2015
        %2046 = vmatprep.subr.mxu0 %v2014
        %2047 = vmatpush1.msra.mxu0 %v2013
        %2048 = vmatprep.subr.mxu0 %v2012
        %2049 = vmatpush1.msra.mxu0 %v2011
        %2050 = vmatprep.subr.mxu0 %v2010
        %2051 = vmatpush1.msra.mxu0 %v2009
        %2052 = vmatprep.subr.mxu0 %v2008
        %2053 = vmatpush1.msra.mxu0 %v2007
        %2054 = vmatprep.subr.mxu0 %v2006
        %2055 = vmatpush1.msra.mxu0 %v2005
        %2056 = vmatprep.subr.mxu0 %v2004
        %2057 = vmatpush1.msra.mxu0 %v2003
        %2058 = vmatprep.subr.mxu0 %v2002
        %2059 = vmatpush1.msra.mxu0 %v2001
        %2060 = vmatprep.subr.mxu0 %v2000
        %2061 = vmatpush1.msra.mxu0 %v1999
        %2062 = vmatprep.subr.mxu0 %v1998
        %2063 = vmatpush1.msra.mxu0 %v1997
        %2064 = vmatprep.subr.mxu0 0.0
        %2065 = vmatpush2.msra.mxu0 0.0
        %2066 = vmatprep.subr.mxu0 0.0
        %2067 = vmatpush2.msra.mxu0 0.0
        %2068 = vmatprep.subr.mxu0 0.0
        %2069 = vmatpush2.msra.mxu0 0.0
        %2070 = vmatprep.subr.mxu0 0.0
        %2071 = vmatpush2.msra.mxu0 0.0
        %2072 = vmatprep.subr.mxu0 0.0
        %2073 = vmatpush2.msra.mxu0 0.0
        %2074 = vmatprep.subr.mxu0 0.0
        %2075 = vmatpush2.msra.mxu0 0.0
        %2076 = vmatprep.subr.mxu0 0.0
        %2077 = vmatpush2.msra.mxu0 0.0
        %2078 = vmatprep.subr.mxu0 0.0
        %2079 = vmatpush2.msra.mxu0 0.0
        %2080 = vmatprep.subr.mxu0 0.0
        %2081 = vmatpush2.msra.mxu0 0.0
        %2082 = vmatprep.subr.mxu0 0.0
        %2083 = vmatpush2.msra.mxu0 0.0
        %2084 = vmatprep.subr.mxu0 0.0
        %2085 = vmatpush2.msra.mxu0 0.0
        %2086 = vmatprep.subr.mxu0 0.0
        %2087 = vmatpush2.msra.mxu0 0.0
        %2088 = vmatprep.subr.mxu0 0.0
        %2089 = vmatpush2.msra.mxu0 0.0
        %2090 = vmatprep.subr.mxu0 0.0
        %2091 = vmatpush2.msra.mxu0 0.0
        %2092 = vmatprep.subr.mxu0 0.0
        %2093 = vmatpush2.msra.mxu0 0.0
        %2094 = vmatprep.subr.mxu0 0.0
        %2095 = vmatpush2.msra.mxu0 0.0
        %2096 = vmatprep.mubr.f32.mxu0 0.0
        %2097 = vmatmul.mubr.f32.gmra.mxu0 %v2022
        %v2098 = vpop.f32.mrf.mxu0
        %v2099 = vadd.f32 0.0, %v2098
        %v2100 = vpop.f32.mrf.mxu0
        %v2101 = vadd.f32 0.0, %v2100
        %2102 = vmatprep.mubr.f32.mxu0 0.0
        %2103 = vmatmul.mubr.f32.gmra.mxu0 %v2024
        %v2104 = vpop.f32.mrf.mxu0
        %v2105 = vadd.f32 0.0, %v2104
        %v2106 = vpop.f32.mrf.mxu0
        %v2107 = vadd.f32 0.0, %v2106
        %2108 = vdwg.mxu0
        %v2109 = vadd.f32 %v1992, %v2099
        %v2110 = vadd.f32 %v1993, %v2101
        %v2111 = vadd.f32 %v1994, %v2105
        %v2112 = vadd.f32 %v1995, %v2107
        %s2113 = scalar_lea.vmem %s5, 704
        %v2114 = vld [vmem:[%s2113] sm:$0xff]
        %v2115 = vld [vmem:[%s2113 + $0x8] sm:$0xff]
        %v2116 = vld [vmem:[%s2113 + $0x10] sm:$0xff]
        %v2117 = vld [vmem:[%s2113 + $0x18] sm:$0xff]
        %v2118 = vld [vmem:[%s2113 + $0x20] sm:$0xff]
        %v2119 = vld [vmem:[%s2113 + $0x28] sm:$0xff]
        %v2120 = vld [vmem:[%s2113 + $0x30] sm:$0xff]
        %v2121 = vld [vmem:[%s2113 + $0x38] sm:$0xff]
        %v2122 = vld [vmem:[%s2113 + $0x40] sm:$0xff]
        %v2123 = vld [vmem:[%s2113 + $0x48] sm:$0xff]
        %v2124 = vld [vmem:[%s2113 + $0x50] sm:$0xff]
        %v2125 = vld [vmem:[%s2113 + $0x58] sm:$0xff]
        %v2126 = vld [vmem:[%s2113 + $0x60] sm:$0xff]
        %v2127 = vld [vmem:[%s2113 + $0x68] sm:$0xff]
        %v2128 = vld [vmem:[%s2113 + $0x70] sm:$0xff]
        %v2129 = vld [vmem:[%s2113 + $0x78] sm:$0xff]
        %v2130 = vld [vmem:[%s2113 + $0x80] sm:$0xff]
        %v2131 = vld [vmem:[%s2113 + $0x88] sm:$0xff]
        %v2132 = vld [vmem:[%s2113 + $0x90] sm:$0xff]
        %v2133 = vld [vmem:[%s2113 + $0x98] sm:$0xff]
        %v2134 = vld [vmem:[%s2113 + $0xa0] sm:$0xf]
        %v2135 = vld [vmem:[%s2113 + $0xa8] sm:$0xf]
        %v2136 = vrot.slane %v1652, 4
        %v2137 = vrot.slane %v1653, 4
        %v2138 = vsel %vm973, %v2136, %v2137
        %v2139 = vsel %vm1704, %v2138, 0
        %v2141 = vsel %vm1704, %v2137, 0
        %v2144 = vsel %vm973, %v2134, 0
        %v2147 = vsel %vm973, %v2135, 0
        %2149 = vmatprep.subr.mxu0 0.0
        %2150 = vmatpush1.msra.mxu0 0.0
        %2151 = vmatprep.subr.mxu0 0.0
        %2152 = vmatpush1.msra.mxu0 0.0
        %2153 = vmatprep.subr.mxu0 0.0
        %2154 = vmatpush1.msra.mxu0 0.0
        %2155 = vmatprep.subr.mxu0 0.0
        %2156 = vmatpush1.msra.mxu0 0.0
        %2157 = vmatprep.subr.mxu0 0.0
        %2158 = vmatpush1.msra.mxu0 0.0
        %2159 = vmatprep.subr.mxu0 %v2147
        %2160 = vmatpush1.msra.mxu0 %v2144
        %2161 = vmatprep.subr.mxu0 %v2133
        %2162 = vmatpush1.msra.mxu0 %v2132
        %2163 = vmatprep.subr.mxu0 %v2131
        %2164 = vmatpush1.msra.mxu0 %v2130
        %2165 = vmatprep.subr.mxu0 %v2129
        %2166 = vmatpush1.msra.mxu0 %v2128
        %2167 = vmatprep.subr.mxu0 %v2127
        %2168 = vmatpush1.msra.mxu0 %v2126
        %2169 = vmatprep.subr.mxu0 %v2125
        %2170 = vmatpush1.msra.mxu0 %v2124
        %2171 = vmatprep.subr.mxu0 %v2123
        %2172 = vmatpush1.msra.mxu0 %v2122
        %2173 = vmatprep.subr.mxu0 %v2121
        %2174 = vmatpush1.msra.mxu0 %v2120
        %2175 = vmatprep.subr.mxu0 %v2119
        %2176 = vmatpush1.msra.mxu0 %v2118
        %2177 = vmatprep.subr.mxu0 %v2117
        %2178 = vmatpush1.msra.mxu0 %v2116
        %2179 = vmatprep.subr.mxu0 %v2115
        %2180 = vmatpush1.msra.mxu0 %v2114
        %2181 = vmatprep.subr.mxu0 0.0
        %2182 = vmatpush2.msra.mxu0 0.0
        %2183 = vmatprep.subr.mxu0 0.0
        %2184 = vmatpush2.msra.mxu0 0.0
        %2185 = vmatprep.subr.mxu0 0.0
        %2186 = vmatpush2.msra.mxu0 0.0
        %2187 = vmatprep.subr.mxu0 0.0
        %2188 = vmatpush2.msra.mxu0 0.0
        %2189 = vmatprep.subr.mxu0 0.0
        %2190 = vmatpush2.msra.mxu0 0.0
        %2191 = vmatprep.subr.mxu0 0.0
        %2192 = vmatpush2.msra.mxu0 0.0
        %2193 = vmatprep.subr.mxu0 0.0
        %2194 = vmatpush2.msra.mxu0 0.0
        %2195 = vmatprep.subr.mxu0 0.0
        %2196 = vmatpush2.msra.mxu0 0.0
        %2197 = vmatprep.subr.mxu0 0.0
        %2198 = vmatpush2.msra.mxu0 0.0
        %2199 = vmatprep.subr.mxu0 0.0
        %2200 = vmatpush2.msra.mxu0 0.0
        %2201 = vmatprep.subr.mxu0 0.0
        %2202 = vmatpush2.msra.mxu0 0.0
        %2203 = vmatprep.subr.mxu0 0.0
        %2204 = vmatpush2.msra.mxu0 0.0
        %2205 = vmatprep.subr.mxu0 0.0
        %2206 = vmatpush2.msra.mxu0 0.0
        %2207 = vmatprep.subr.mxu0 0.0
        %2208 = vmatpush2.msra.mxu0 0.0
        %2209 = vmatprep.subr.mxu0 0.0
        %2210 = vmatpush2.msra.mxu0 0.0
        %2211 = vmatprep.subr.mxu0 0.0
        %2212 = vmatpush2.msra.mxu0 0.0
        %2213 = vmatprep.mubr.f32.mxu0 0.0
        %2214 = vmatmul.mubr.f32.gmra.mxu0 %v2139
        %v2215 = vpop.f32.mrf.mxu0
        %v2216 = vadd.f32 0.0, %v2215
        %v2217 = vpop.f32.mrf.mxu0
        %v2218 = vadd.f32 0.0, %v2217
        %2219 = vmatprep.mubr.f32.mxu0 0.0
        %2220 = vmatmul.mubr.f32.gmra.mxu0 %v2141
        %v2221 = vpop.f32.mrf.mxu0
        %v2222 = vadd.f32 0.0, %v2221
        %v2223 = vpop.f32.mrf.mxu0
        %v2224 = vadd.f32 0.0, %v2223
        %2225 = vdwg.mxu0
        %v2226 = vadd.f32 %v2109, %v2216
        %v2227 = vadd.f32 %v2110, %v2218
        %v2228 = vadd.f32 %v2111, %v2222
        %v2229 = vadd.f32 %v2112, %v2224
        %v2230 = vld [vmem:[%s6] sm:$0x3]
        %v2232 = vlaneseq
        %v2233 = vshrl.u32 %v2232, 7
        %v2234 = vsub.s32 0, %v2233
        %v2235 = vrot.slane %v2230, %v2234
        %v2236 = vlaneseq
        %v2237 = vshrl.u32 %v2236, 7
        %v2238 = vsub.s32 1, %v2237
        %v2239 = vrot.slane %v2230, %v2238
        %v2242 = vadd.f32 %v2226, %v2235
        %v2243 = vadd.f32 %v2227, %v2239
        %v2244 = vadd.f32 %v2228, %v2235
        %v2245 = vadd.f32 %v2229, %v2239
        %v2246 = vmax.f32 %v2242, 0.0
        %v2247 = vmax.f32 %v2243, 0.0
        %v2248 = vmax.f32 %v2244, 0.0
        %v2249 = vmax.f32 %v2245, 0.0
        %v2250 = vld [vmem:[%s7] sm:$0x1f]
        %vm2251 = vcmask 80896
        %v2253 = vsel %vm2251, %v2250, 0
        %vm2255 = vcmask 1041408
        %v2257 = vsel %vm2255, %v2248, 0
        %v2260 = vsel %vm2255, %v2249, 0
        %2262 = vmatprep.subr.mxu0 0.0
        %2263 = vmatpush1.msra.mxu0 0.0
        %2264 = vmatprep.subr.mxu0 0.0
        %2265 = vmatpush1.msra.mxu0 0.0
        %2266 = vmatprep.subr.mxu0 0.0
        %2267 = vmatpush1.msra.mxu0 0.0
        %2268 = vmatprep.subr.mxu0 0.0
        %2269 = vmatpush1.msra.mxu0 0.0
        %2270 = vmatprep.subr.mxu0 0.0
        %2271 = vmatpush1.msra.mxu0 0.0
        %2272 = vmatprep.subr.mxu0 0.0
        %2273 = vmatpush1.msra.mxu0 0.0
        %2274 = vmatprep.subr.mxu0 0.0
        %2275 = vmatpush1.msra.mxu0 0.0
        %2276 = vmatprep.subr.mxu0 0.0
        %2277 = vmatpush1.msra.mxu0 0.0
        %2278 = vmatprep.subr.mxu0 0.0
        %2279 = vmatpush1.msra.mxu0 0.0
        %2280 = vmatprep.subr.mxu0 0.0
        %2281 = vmatpush1.msra.mxu0 0.0
        %2282 = vmatprep.subr.mxu0 0.0
        %2283 = vmatpush1.msra.mxu0 0.0
        %2284 = vmatprep.subr.mxu0 0.0
        %2285 = vmatpush1.msra.mxu0 0.0
        %2286 = vmatprep.subr.mxu0 0.0
        %2287 = vmatpush1.msra.mxu0 0.0
        %2288 = vmatprep.subr.mxu0 0.0
        %2289 = vmatpush1.msra.mxu0 0.0
        %2290 = vmatprep.subr.mxu0 %v2260
        %2291 = vmatpush1.msra.mxu0 %v2257
        %2292 = vmatprep.subr.mxu0 %v2247
        %2293 = vmatpush1.msra.mxu0 %v2246
        %2294 = vmatprep.subr.mxu0 0.0
        %2295 = vmatpush2.msra.mxu0 0.0
        %2296 = vmatprep.subr.mxu0 0.0
        %2297 = vmatpush2.msra.mxu0 0.0
        %2298 = vmatprep.subr.mxu0 0.0
        %2299 = vmatpush2.msra.mxu0 0.0
        %2300 = vmatprep.subr.mxu0 0.0
        %2301 = vmatpush2.msra.mxu0 0.0
        %2302 = vmatprep.subr.mxu0 0.0
        %2303 = vmatpush2.msra.mxu0 0.0
        %2304 = vmatprep.subr.mxu0 0.0
        %2305 = vmatpush2.msra.mxu0 0.0
        %2306 = vmatprep.subr.mxu0 0.0
        %2307 = vmatpush2.msra.mxu0 0.0
        %2308 = vmatprep.subr.mxu0 0.0
        %2309 = vmatpush2.msra.mxu0 0.0
        %2310 = vmatprep.subr.mxu0 0.0
        %2311 = vmatpush2.msra.mxu0 0.0
        %2312 = vmatprep.subr.mxu0 0.0
        %2313 = vmatpush2.msra.mxu0 0.0
        %2314 = vmatprep.subr.mxu0 0.0
        %2315 = vmatpush2.msra.mxu0 0.0
        %2316 = vmatprep.subr.mxu0 0.0
        %2317 = vmatpush2.msra.mxu0 0.0
        %2318 = vmatprep.subr.mxu0 0.0
        %2319 = vmatpush2.msra.mxu0 0.0
        %2320 = vmatprep.subr.mxu0 0.0
        %2321 = vmatpush2.msra.mxu0 0.0
        %2322 = vmatprep.subr.mxu0 0.0
        %2323 = vmatpush2.msra.mxu0 0.0
        %2324 = vmatprep.subr.mxu0 0.0
        %2325 = vmatpush2.msra.mxu0 0.0
        %2326 = vmatprep.mubr.f32.mxu0 0.0
        %2327 = vmatmul.mubr.f32.gmra.mxu0 %v2253
        %v2328 = vpop.f32.mrf.mxu0
        %v2329 = vadd.f32 0.0, %v2328
        %v2330 = vpop.f32.mrf.mxu0
        %v2331 = vadd.f32 0.0, %v2330
        %2332 = vdwg.mxu0
        %v2333 = vld [vmem:[%s8] sm:$0xff]
        %v2334 = vld [vmem:[%s8 + $0x8] sm:$0xff]
        %v2335 = vld [vmem:[%s8 + $0x10] sm:$0xff]
        %v2336 = vld [vmem:[%s8 + $0x18] sm:$0xff]
        %v2337 = vld [vmem:[%s8 + $0x20] sm:$0xff]
        %v2338 = vld [vmem:[%s8 + $0x28] sm:$0xff]
        %v2339 = vld [vmem:[%s8 + $0x30] sm:$0xff]
        %v2340 = vld [vmem:[%s8 + $0x38] sm:$0xff]
        %v2341 = vld [vmem:[%s8 + $0x40] sm:$0xff]
        %v2342 = vld [vmem:[%s8 + $0x48] sm:$0xff]
        %v2343 = vld [vmem:[%s8 + $0x50] sm:$0xff]
        %v2344 = vld [vmem:[%s8 + $0x58] sm:$0xff]
        %v2345 = vld [vmem:[%s8 + $0x60] sm:$0xff]
        %v2346 = vld [vmem:[%s8 + $0x68] sm:$0xff]
        %v2347 = vld [vmem:[%s8 + $0x70] sm:$0xff]
        %v2348 = vld [vmem:[%s8 + $0x78] sm:$0xff]
        %v2349 = vld [vmem:[%s8 + $0x80] sm:$0xff]
        %v2350 = vld [vmem:[%s8 + $0x88] sm:$0xff]
        %v2351 = vld [vmem:[%s8 + $0x90] sm:$0xff]
        %v2352 = vld [vmem:[%s8 + $0x98] sm:$0xff]
        %v2354 = vsel %vm525, %v2331, 0
        %2356 = vmatprep.subr.mxu0 0.0
        %2357 = vmatpush1.msra.mxu0 %v2348
        %2358 = vmatprep.subr.mxu0 0.0
        %2359 = vmatpush1.msra.mxu0 %v2347
        %2360 = vmatprep.subr.mxu0 0.0
        %2361 = vmatpush1.msra.mxu0 %v2346
        %2362 = vmatprep.subr.mxu0 0.0
        %2363 = vmatpush1.msra.mxu0 %v2345
        %2364 = vmatprep.subr.mxu0 0.0
        %2365 = vmatpush1.msra.mxu0 %v2344
        %2366 = vmatprep.subr.mxu0 0.0
        %2367 = vmatpush1.msra.mxu0 %v2343
        %2368 = vmatprep.subr.mxu0 0.0
        %2369 = vmatpush1.msra.mxu0 %v2342
        %2370 = vmatprep.subr.mxu0 0.0
        %2371 = vmatpush1.msra.mxu0 %v2341
        %2372 = vmatprep.subr.mxu0 0.0
        %2373 = vmatpush1.msra.mxu0 %v2340
        %2374 = vmatprep.subr.mxu0 0.0
        %2375 = vmatpush1.msra.mxu0 %v2339
        %2376 = vmatprep.subr.mxu0 0.0
        %2377 = vmatpush1.msra.mxu0 %v2338
        %2378 = vmatprep.subr.mxu0 0.0
        %2379 = vmatpush1.msra.mxu0 %v2337
        %2380 = vmatprep.subr.mxu0 0.0
        %2381 = vmatpush1.msra.mxu0 %v2336
        %2382 = vmatprep.subr.mxu0 0.0
        %2383 = vmatpush1.msra.mxu0 %v2335
        %2384 = vmatprep.subr.mxu0 0.0
        %2385 = vmatpush1.msra.mxu0 %v2334
        %2386 = vmatprep.subr.mxu0 0.0
        %2387 = vmatpush1.msra.mxu0 %v2333
        %2388 = vmatprep.subr.mxu0 0.0
        %2389 = vmatpush2.msra.mxu0 0.0
        %2390 = vmatprep.subr.mxu0 0.0
        %2391 = vmatpush2.msra.mxu0 0.0
        %2392 = vmatprep.subr.mxu0 0.0
        %2393 = vmatpush2.msra.mxu0 0.0
        %2394 = vmatprep.subr.mxu0 0.0
        %2395 = vmatpush2.msra.mxu0 0.0
        %2396 = vmatprep.subr.mxu0 0.0
        %2397 = vmatpush2.msra.mxu0 0.0
        %2398 = vmatprep.subr.mxu0 0.0
        %2399 = vmatpush2.msra.mxu0 0.0
        %2400 = vmatprep.subr.mxu0 0.0
        %2401 = vmatpush2.msra.mxu0 0.0
        %2402 = vmatprep.subr.mxu0 0.0
        %2403 = vmatpush2.msra.mxu0 0.0
        %2404 = vmatprep.subr.mxu0 0.0
        %2405 = vmatpush2.msra.mxu0 0.0
        %2406 = vmatprep.subr.mxu0 0.0
        %2407 = vmatpush2.msra.mxu0 0.0
        %2408 = vmatprep.subr.mxu0 0.0
        %2409 = vmatpush2.msra.mxu0 0.0
        %2410 = vmatprep.subr.mxu0 0.0
        %2411 = vmatpush2.msra.mxu0 0.0
        %2412 = vmatprep.subr.mxu0 0.0
        %2413 = vmatpush2.msra.mxu0 %v2352
        %2414 = vmatprep.subr.mxu0 0.0
        %2415 = vmatpush2.msra.mxu0 %v2351
        %2416 = vmatprep.subr.mxu0 0.0
        %2417 = vmatpush2.msra.mxu0 %v2350
        %2418 = vmatprep.subr.mxu0 0.0
        %2419 = vmatpush2.msra.mxu0 %v2349
        %2420 = vmatprep.mubr.f32.mxu0 %v2354
        %2421 = vmatmul.mubr.f32.gmra.mxu0 %v2329
        %v2422 = vpop.f32.mrf.mxu0
        %v2423 = vadd.f32 0.0, %v2422
        %v2424 = vpop.f32.mrf.mxu0
        %2425 = vdwg.mxu0
        %s2426 = scalar_lea.vmem %s8, 160
        %v2427 = vld [vmem:[%s2426] sm:$0xff]
        %v2428 = vld [vmem:[%s2426 + $0x8] sm:$0xff]
        %v2429 = vld [vmem:[%s2426 + $0x10] sm:$0xff]
        %v2430 = vld [vmem:[%s2426 + $0x18] sm:$0xff]
        %v2431 = vld [vmem:[%s2426 + $0x20] sm:$0xff]
        %v2432 = vld [vmem:[%s2426 + $0x28] sm:$0xff]
        %v2433 = vld [vmem:[%s2426 + $0x30] sm:$0xff]
        %v2434 = vld [vmem:[%s2426 + $0x38] sm:$0xff]
        %v2435 = vld [vmem:[%s2426 + $0x40] sm:$0xff]
        %v2436 = vld [vmem:[%s2426 + $0x48] sm:$0xff]
        %v2437 = vld [vmem:[%s2426 + $0x50] sm:$0xff]
        %v2438 = vld [vmem:[%s2426 + $0x58] sm:$0xff]
        %v2439 = vld [vmem:[%s2426 + $0x60] sm:$0xff]
        %v2440 = vld [vmem:[%s2426 + $0x68] sm:$0xff]
        %v2441 = vld [vmem:[%s2426 + $0x70] sm:$0xff]
        %v2442 = vld [vmem:[%s2426 + $0x78] sm:$0xff]
        %v2443 = vld [vmem:[%s2426 + $0x80] sm:$0xff]
        %v2444 = vld [vmem:[%s2426 + $0x88] sm:$0xff]
        %v2445 = vld [vmem:[%s2426 + $0x90] sm:$0xff]
        %v2446 = vld [vmem:[%s2426 + $0x98] sm:$0xff]
        %2447 = vmatprep.subr.mxu0 0.0
        %2448 = vmatpush1.msra.mxu0 %v2442
        %2449 = vmatprep.subr.mxu0 0.0
        %2450 = vmatpush1.msra.mxu0 %v2441
        %2451 = vmatprep.subr.mxu0 0.0
        %2452 = vmatpush1.msra.mxu0 %v2440
        %2453 = vmatprep.subr.mxu0 0.0
        %2454 = vmatpush1.msra.mxu0 %v2439
        %2455 = vmatprep.subr.mxu0 0.0
        %2456 = vmatpush1.msra.mxu0 %v2438
        %2457 = vmatprep.subr.mxu0 0.0
        %2458 = vmatpush1.msra.mxu0 %v2437
        %2459 = vmatprep.subr.mxu0 0.0
        %2460 = vmatpush1.msra.mxu0 %v2436
        %2461 = vmatprep.subr.mxu0 0.0
        %2462 = vmatpush1.msra.mxu0 %v2435
        %2463 = vmatprep.subr.mxu0 0.0
        %2464 = vmatpush1.msra.mxu0 %v2434
        %2465 = vmatprep.subr.mxu0 0.0
        %2466 = vmatpush1.msra.mxu0 %v2433
        %2467 = vmatprep.subr.mxu0 0.0
        %2468 = vmatpush1.msra.mxu0 %v2432
        %2469 = vmatprep.subr.mxu0 0.0
        %2470 = vmatpush1.msra.mxu0 %v2431
        %2471 = vmatprep.subr.mxu0 0.0
        %2472 = vmatpush1.msra.mxu0 %v2430
        %2473 = vmatprep.subr.mxu0 0.0
        %2474 = vmatpush1.msra.mxu0 %v2429
        %2475 = vmatprep.subr.mxu0 0.0
        %2476 = vmatpush1.msra.mxu0 %v2428
        %2477 = vmatprep.subr.mxu0 0.0
        %2478 = vmatpush1.msra.mxu0 %v2427
        %2479 = vmatprep.subr.mxu0 0.0
        %2480 = vmatpush2.msra.mxu0 0.0
        %2481 = vmatprep.subr.mxu0 0.0
        %2482 = vmatpush2.msra.mxu0 0.0
        %2483 = vmatprep.subr.mxu0 0.0
        %2484 = vmatpush2.msra.mxu0 0.0
        %2485 = vmatprep.subr.mxu0 0.0
        %2486 = vmatpush2.msra.mxu0 0.0
        %2487 = vmatprep.subr.mxu0 0.0
        %2488 = vmatpush2.msra.mxu0 0.0
        %2489 = vmatprep.subr.mxu0 0.0
        %2490 = vmatpush2.msra.mxu0 0.0
        %2491 = vmatprep.subr.mxu0 0.0
        %2492 = vmatpush2.msra.mxu0 0.0
        %2493 = vmatprep.subr.mxu0 0.0
        %2494 = vmatpush2.msra.mxu0 0.0
        %2495 = vmatprep.subr.mxu0 0.0
        %2496 = vmatpush2.msra.mxu0 0.0
        %2497 = vmatprep.subr.mxu0 0.0
        %2498 = vmatpush2.msra.mxu0 0.0
        %2499 = vmatprep.subr.mxu0 0.0
        %2500 = vmatpush2.msra.mxu0 0.0
        %2501 = vmatprep.subr.mxu0 0.0
        %2502 = vmatpush2.msra.mxu0 0.0
        %2503 = vmatprep.subr.mxu0 0.0
        %2504 = vmatpush2.msra.mxu0 %v2446
        %2505 = vmatprep.subr.mxu0 0.0
        %2506 = vmatpush2.msra.mxu0 %v2445
        %2507 = vmatprep.subr.mxu0 0.0
        %2508 = vmatpush2.msra.mxu0 %v2444
        %2509 = vmatprep.subr.mxu0 0.0
        %2510 = vmatpush2.msra.mxu0 %v2443
        %2511 = vmatprep.mubr.f32.mxu0 %v2354
        %2512 = vmatmul.mubr.f32.gmra.mxu0 %v2329
        %v2513 = vpop.f32.mrf.mxu0
        %v2514 = vadd.f32 0.0, %v2513
        %v2515 = vpop.f32.mrf.mxu0
        %2516 = vdwg.mxu0
        %s2517 = scalar_lea.vmem %s7, 8
        %v2518 = vld [vmem:[%s2517] sm:$0x1f]
        %v2520 = vsel %vm2251, %v2518, 0
        %2522 = vmatprep.subr.mxu0 0.0
        %2523 = vmatpush1.msra.mxu0 0.0
        %2524 = vmatprep.subr.mxu0 0.0
        %2525 = vmatpush1.msra.mxu0 0.0
        %2526 = vmatprep.subr.mxu0 0.0
        %2527 = vmatpush1.msra.mxu0 0.0
        %2528 = vmatprep.subr.mxu0 0.0
        %2529 = vmatpush1.msra.mxu0 0.0
        %2530 = vmatprep.subr.mxu0 0.0
        %2531 = vmatpush1.msra.mxu0 0.0
        %2532 = vmatprep.subr.mxu0 0.0
        %2533 = vmatpush1.msra.mxu0 0.0
        %2534 = vmatprep.subr.mxu0 0.0
        %2535 = vmatpush1.msra.mxu0 0.0
        %2536 = vmatprep.subr.mxu0 0.0
        %2537 = vmatpush1.msra.mxu0 0.0
        %2538 = vmatprep.subr.mxu0 0.0
        %2539 = vmatpush1.msra.mxu0 0.0
        %2540 = vmatprep.subr.mxu0 0.0
        %2541 = vmatpush1.msra.mxu0 0.0
        %2542 = vmatprep.subr.mxu0 0.0
        %2543 = vmatpush1.msra.mxu0 0.0
        %2544 = vmatprep.subr.mxu0 0.0
        %2545 = vmatpush1.msra.mxu0 0.0
        %2546 = vmatprep.subr.mxu0 0.0
        %2547 = vmatpush1.msra.mxu0 0.0
        %2548 = vmatprep.subr.mxu0 0.0
        %2549 = vmatpush1.msra.mxu0 0.0
        %2550 = vmatprep.subr.mxu0 %v2260
        %2551 = vmatpush1.msra.mxu0 %v2257
        %2552 = vmatprep.subr.mxu0 %v2247
        %2553 = vmatpush1.msra.mxu0 %v2246
        %2554 = vmatprep.subr.mxu0 0.0
        %2555 = vmatpush2.msra.mxu0 0.0
        %2556 = vmatprep.subr.mxu0 0.0
        %2557 = vmatpush2.msra.mxu0 0.0
        %2558 = vmatprep.subr.mxu0 0.0
        %2559 = vmatpush2.msra.mxu0 0.0
        %2560 = vmatprep.subr.mxu0 0.0
        %2561 = vmatpush2.msra.mxu0 0.0
        %2562 = vmatprep.subr.mxu0 0.0
        %2563 = vmatpush2.msra.mxu0 0.0
        %2564 = vmatprep.subr.mxu0 0.0
        %2565 = vmatpush2.msra.mxu0 0.0
        %2566 = vmatprep.subr.mxu0 0.0
        %2567 = vmatpush2.msra.mxu0 0.0
        %2568 = vmatprep.subr.mxu0 0.0
        %2569 = vmatpush2.msra.mxu0 0.0
        %2570 = vmatprep.subr.mxu0 0.0
        %2571 = vmatpush2.msra.mxu0 0.0
        %2572 = vmatprep.subr.mxu0 0.0
        %2573 = vmatpush2.msra.mxu0 0.0
        %2574 = vmatprep.subr.mxu0 0.0
        %2575 = vmatpush2.msra.mxu0 0.0
        %2576 = vmatprep.subr.mxu0 0.0
        %2577 = vmatpush2.msra.mxu0 0.0
        %2578 = vmatprep.subr.mxu0 0.0
        %2579 = vmatpush2.msra.mxu0 0.0
        %2580 = vmatprep.subr.mxu0 0.0
        %2581 = vmatpush2.msra.mxu0 0.0
        %2582 = vmatprep.subr.mxu0 0.0
        %2583 = vmatpush2.msra.mxu0 0.0
        %2584 = vmatprep.subr.mxu0 0.0
        %2585 = vmatpush2.msra.mxu0 0.0
        %2586 = vmatprep.mubr.f32.mxu0 0.0
        %2587 = vmatmul.mubr.f32.gmra.mxu0 %v2520
        %v2588 = vpop.f32.mrf.mxu0
        %v2589 = vadd.f32 0.0, %v2588
        %v2590 = vpop.f32.mrf.mxu0
        %v2591 = vadd.f32 0.0, %v2590
        %2592 = vdwg.mxu0
        %v2594 = vsel %vm525, %v2591, 0
        %2596 = vmatprep.subr.mxu0 0.0
        %2597 = vmatpush1.msra.mxu0 %v2348
        %2598 = vmatprep.subr.mxu0 0.0
        %2599 = vmatpush1.msra.mxu0 %v2347
        %2600 = vmatprep.subr.mxu0 0.0
        %2601 = vmatpush1.msra.mxu0 %v2346
        %2602 = vmatprep.subr.mxu0 0.0
        %2603 = vmatpush1.msra.mxu0 %v2345
        %2604 = vmatprep.subr.mxu0 0.0
        %2605 = vmatpush1.msra.mxu0 %v2344
        %2606 = vmatprep.subr.mxu0 0.0
        %2607 = vmatpush1.msra.mxu0 %v2343
        %2608 = vmatprep.subr.mxu0 0.0
        %2609 = vmatpush1.msra.mxu0 %v2342
        %2610 = vmatprep.subr.mxu0 0.0
        %2611 = vmatpush1.msra.mxu0 %v2341
        %2612 = vmatprep.subr.mxu0 0.0
        %2613 = vmatpush1.msra.mxu0 %v2340
        %2614 = vmatprep.subr.mxu0 0.0
        %2615 = vmatpush1.msra.mxu0 %v2339
        %2616 = vmatprep.subr.mxu0 0.0
        %2617 = vmatpush1.msra.mxu0 %v2338
        %2618 = vmatprep.subr.mxu0 0.0
        %2619 = vmatpush1.msra.mxu0 %v2337
        %2620 = vmatprep.subr.mxu0 0.0
        %2621 = vmatpush1.msra.mxu0 %v2336
        %2622 = vmatprep.subr.mxu0 0.0
        %2623 = vmatpush1.msra.mxu0 %v2335
        %2624 = vmatprep.subr.mxu0 0.0
        %2625 = vmatpush1.msra.mxu0 %v2334
        %2626 = vmatprep.subr.mxu0 0.0
        %2627 = vmatpush1.msra.mxu0 %v2333
        %2628 = vmatprep.subr.mxu0 0.0
        %2629 = vmatpush2.msra.mxu0 0.0
        %2630 = vmatprep.subr.mxu0 0.0
        %2631 = vmatpush2.msra.mxu0 0.0
        %2632 = vmatprep.subr.mxu0 0.0
        %2633 = vmatpush2.msra.mxu0 0.0
        %2634 = vmatprep.subr.mxu0 0.0
        %2635 = vmatpush2.msra.mxu0 0.0
        %2636 = vmatprep.subr.mxu0 0.0
        %2637 = vmatpush2.msra.mxu0 0.0
        %2638 = vmatprep.subr.mxu0 0.0
        %2639 = vmatpush2.msra.mxu0 0.0
        %2640 = vmatprep.subr.mxu0 0.0
        %2641 = vmatpush2.msra.mxu0 0.0
        %2642 = vmatprep.subr.mxu0 0.0
        %2643 = vmatpush2.msra.mxu0 0.0
        %2644 = vmatprep.subr.mxu0 0.0
        %2645 = vmatpush2.msra.mxu0 0.0
        %2646 = vmatprep.subr.mxu0 0.0
        %2647 = vmatpush2.msra.mxu0 0.0
        %2648 = vmatprep.subr.mxu0 0.0
        %2649 = vmatpush2.msra.mxu0 0.0
        %2650 = vmatprep.subr.mxu0 0.0
        %2651 = vmatpush2.msra.mxu0 0.0
        %2652 = vmatprep.subr.mxu0 0.0
        %2653 = vmatpush2.msra.mxu0 %v2352
        %2654 = vmatprep.subr.mxu0 0.0
        %2655 = vmatpush2.msra.mxu0 %v2351
        %2656 = vmatprep.subr.mxu0 0.0
        %2657 = vmatpush2.msra.mxu0 %v2350
        %2658 = vmatprep.subr.mxu0 0.0
        %2659 = vmatpush2.msra.mxu0 %v2349
        %2660 = vmatprep.mubr.f32.mxu0 %v2594
        %2661 = vmatmul.mubr.f32.gmra.mxu0 %v2589
        %v2662 = vpop.f32.mrf.mxu0
        %v2663 = vadd.f32 0.0, %v2662
        %v2664 = vpop.f32.mrf.mxu0
        %2665 = vdwg.mxu0
        %2666 = vmatprep.subr.mxu0 0.0
        %2667 = vmatpush1.msra.mxu0 %v2442
        %2668 = vmatprep.subr.mxu0 0.0
        %2669 = vmatpush1.msra.mxu0 %v2441
        %2670 = vmatprep.subr.mxu0 0.0
        %2671 = vmatpush1.msra.mxu0 %v2440
        %2672 = vmatprep.subr.mxu0 0.0
        %2673 = vmatpush1.msra.mxu0 %v2439
        %2674 = vmatprep.subr.mxu0 0.0
        %2675 = vmatpush1.msra.mxu0 %v2438
        %2676 = vmatprep.subr.mxu0 0.0
        %2677 = vmatpush1.msra.mxu0 %v2437
        %2678 = vmatprep.subr.mxu0 0.0
        %2679 = vmatpush1.msra.mxu0 %v2436
        %2680 = vmatprep.subr.mxu0 0.0
        %2681 = vmatpush1.msra.mxu0 %v2435
        %2682 = vmatprep.subr.mxu0 0.0
        %2683 = vmatpush1.msra.mxu0 %v2434
        %2684 = vmatprep.subr.mxu0 0.0
        %2685 = vmatpush1.msra.mxu0 %v2433
        %2686 = vmatprep.subr.mxu0 0.0
        %2687 = vmatpush1.msra.mxu0 %v2432
        %2688 = vmatprep.subr.mxu0 0.0
        %2689 = vmatpush1.msra.mxu0 %v2431
        %2690 = vmatprep.subr.mxu0 0.0
        %2691 = vmatpush1.msra.mxu0 %v2430
        %2692 = vmatprep.subr.mxu0 0.0
        %2693 = vmatpush1.msra.mxu0 %v2429
        %2694 = vmatprep.subr.mxu0 0.0
        %2695 = vmatpush1.msra.mxu0 %v2428
        %2696 = vmatprep.subr.mxu0 0.0
        %2697 = vmatpush1.msra.mxu0 %v2427
        %2698 = vmatprep.subr.mxu0 0.0
        %2699 = vmatpush2.msra.mxu0 0.0
        %2700 = vmatprep.subr.mxu0 0.0
        %2701 = vmatpush2.msra.mxu0 0.0
        %2702 = vmatprep.subr.mxu0 0.0
        %2703 = vmatpush2.msra.mxu0 0.0
        %2704 = vmatprep.subr.mxu0 0.0
        %2705 = vmatpush2.msra.mxu0 0.0
        %2706 = vmatprep.subr.mxu0 0.0
        %2707 = vmatpush2.msra.mxu0 0.0
        %2708 = vmatprep.subr.mxu0 0.0
        %2709 = vmatpush2.msra.mxu0 0.0
        %2710 = vmatprep.subr.mxu0 0.0
        %2711 = vmatpush2.msra.mxu0 0.0
        %2712 = vmatprep.subr.mxu0 0.0
        %2713 = vmatpush2.msra.mxu0 0.0
        %2714 = vmatprep.subr.mxu0 0.0
        %2715 = vmatpush2.msra.mxu0 0.0
        %2716 = vmatprep.subr.mxu0 0.0
        %2717 = vmatpush2.msra.mxu0 0.0
        %2718 = vmatprep.subr.mxu0 0.0
        %2719 = vmatpush2.msra.mxu0 0.0
        %2720 = vmatprep.subr.mxu0 0.0
        %2721 = vmatpush2.msra.mxu0 0.0
        %2722 = vmatprep.subr.mxu0 0.0
        %2723 = vmatpush2.msra.mxu0 %v2446
        %2724 = vmatprep.subr.mxu0 0.0
        %2725 = vmatpush2.msra.mxu0 %v2445
        %2726 = vmatprep.subr.mxu0 0.0
        %2727 = vmatpush2.msra.mxu0 %v2444
        %2728 = vmatprep.subr.mxu0 0.0
        %2729 = vmatpush2.msra.mxu0 %v2443
        %2730 = vmatprep.mubr.f32.mxu0 %v2594
        %2731 = vmatmul.mubr.f32.gmra.mxu0 %v2589
        %v2732 = vpop.f32.mrf.mxu0
        %v2733 = vadd.f32 0.0, %v2732
        %v2734 = vpop.f32.mrf.mxu0
        %2735 = vdwg.mxu0
        %v2736 = vmax.f32 %v2423, %v2514
        %v2737 = vmax.f32 %v2663, %v2733
        %v2738 = vmax.f32 %v2736, %v2737
        %v2739 = vld [vmem:[%s10] sm:$0x1]
        %v2740 = vld [vmem:[%s9] sm:$0xff]
        %v2741 = vld [vmem:[%s9 + $0x8] sm:$0xff]
        %v2742 = vld [vmem:[%s9 + $0x10] sm:$0xff]
        %v2743 = vld [vmem:[%s9 + $0x18] sm:$0xff]
        %v2744 = vld [vmem:[%s9 + $0x20] sm:$0xff]
        %v2745 = vld [vmem:[%s9 + $0x28] sm:$0xff]
        %v2746 = vld [vmem:[%s9 + $0x30] sm:$0xff]
        %v2747 = vld [vmem:[%s9 + $0x38] sm:$0xff]
        %v2748 = vld [vmem:[%s9 + $0x40] sm:$0xff]
        %v2749 = vld [vmem:[%s9 + $0x48] sm:$0xff]
        %vm2750 = vcmask 654336
        %v2752 = vsel %vm2750, %v2738, 0
        %2754 = vmatprep.subr.mxu0 0.0
        %2755 = vmatpush1.msra.mxu0 0.0
        %2756 = vmatprep.subr.mxu0 0.0
        %2757 = vmatpush1.msra.mxu0 0.0
        %2758 = vmatprep.subr.mxu0 0.0
        %2759 = vmatpush1.msra.mxu0 0.0
        %2760 = vmatprep.subr.mxu0 0.0
        %2761 = vmatpush1.msra.mxu0 0.0
        %2762 = vmatprep.subr.mxu0 0.0
        %2763 = vmatpush1.msra.mxu0 0.0
        %2764 = vmatprep.subr.mxu0 0.0
        %2765 = vmatpush1.msra.mxu0 0.0
        %2766 = vmatprep.subr.mxu0 0.0
        %2767 = vmatpush1.msra.mxu0 %v2749
        %2768 = vmatprep.subr.mxu0 0.0
        %2769 = vmatpush1.msra.mxu0 %v2748
        %2770 = vmatprep.subr.mxu0 0.0
        %2771 = vmatpush1.msra.mxu0 %v2747
        %2772 = vmatprep.subr.mxu0 0.0
        %2773 = vmatpush1.msra.mxu0 %v2746
        %2774 = vmatprep.subr.mxu0 0.0
        %2775 = vmatpush1.msra.mxu0 %v2745
        %2776 = vmatprep.subr.mxu0 0.0
        %2777 = vmatpush1.msra.mxu0 %v2744
        %2778 = vmatprep.subr.mxu0 0.0
        %2779 = vmatpush1.msra.mxu0 %v2743
        %2780 = vmatprep.subr.mxu0 0.0
        %2781 = vmatpush1.msra.mxu0 %v2742
        %2782 = vmatprep.subr.mxu0 0.0
        %2783 = vmatpush1.msra.mxu0 %v2741
        %2784 = vmatprep.subr.mxu0 0.0
        %2785 = vmatpush1.msra.mxu0 %v2740
        %2786 = vmatprep.subr.mxu0 0.0
        %2787 = vmatpush2.msra.mxu0 0.0
        %2788 = vmatprep.subr.mxu0 0.0
        %2789 = vmatpush2.msra.mxu0 0.0
        %2790 = vmatprep.subr.mxu0 0.0
        %2791 = vmatpush2.msra.mxu0 0.0
        %2792 = vmatprep.subr.mxu0 0.0
        %2793 = vmatpush2.msra.mxu0 0.0
        %2794 = vmatprep.subr.mxu0 0.0
        %2795 = vmatpush2.msra.mxu0 0.0
        %2796 = vmatprep.subr.mxu0 0.0
        %2797 = vmatpush2.msra.mxu0 0.0
        %2798 = vmatprep.subr.mxu0 0.0
        %2799 = vmatpush2.msra.mxu0 0.0
        %2800 = vmatprep.subr.mxu0 0.0
        %2801 = vmatpush2.msra.mxu0 0.0
        %2802 = vmatprep.subr.mxu0 0.0
        %2803 = vmatpush2.msra.mxu0 0.0
        %2804 = vmatprep.subr.mxu0 0.0
        %2805 = vmatpush2.msra.mxu0 0.0
        %2806 = vmatprep.subr.mxu0 0.0
        %2807 = vmatpush2.msra.mxu0 0.0
        %2808 = vmatprep.subr.mxu0 0.0
        %2809 = vmatpush2.msra.mxu0 0.0
        %2810 = vmatprep.subr.mxu0 0.0
        %2811 = vmatpush2.msra.mxu0 0.0
        %2812 = vmatprep.subr.mxu0 0.0
        %2813 = vmatpush2.msra.mxu0 0.0
        %2814 = vmatprep.subr.mxu0 0.0
        %2815 = vmatpush2.msra.mxu0 0.0
        %2816 = vmatprep.subr.mxu0 0.0
        %2817 = vmatpush2.msra.mxu0 0.0
        %2818 = vmatprep.mubr.f32.mxu0 0.0
        %2819 = vmatmul.mubr.f32.gmra.mxu0 %v2752
        %v2820 = vpop.f32.mrf.mxu0
        %v2821 = vadd.f32 0.0, %v2820
        %v2822 = vpop.f32.mrf.mxu0
        %2823 = vdwg.mxu0
        %v2824 = vadd.f32 %v2739, %v2821
        %s2825 = scalar_lea.vmem %s9, 80
        %v2826 = vld [vmem:[%s2825] sm:$0xff]
        %v2827 = vld [vmem:[%s2825 + $0x8] sm:$0xff]
        %v2828 = vld [vmem:[%s2825 + $0x10] sm:$0xff]
        %v2829 = vld [vmem:[%s2825 + $0x18] sm:$0xff]
        %v2830 = vld [vmem:[%s2825 + $0x20] sm:$0xff]
        %v2831 = vld [vmem:[%s2825 + $0x28] sm:$0xff]
        %v2832 = vld [vmem:[%s2825 + $0x30] sm:$0xff]
        %v2833 = vld [vmem:[%s2825 + $0x38] sm:$0xff]
        %v2834 = vld [vmem:[%s2825 + $0x40] sm:$0xff]
        %v2835 = vld [vmem:[%s2825 + $0x48] sm:$0xff]
        %v2836 = vrot.slane %v2738, 1
        %v2837 = vsel %vm2750, %v2836, 0
        %2839 = vmatprep.subr.mxu0 0.0
        %2840 = vmatpush1.msra.mxu0 0.0
        %2841 = vmatprep.subr.mxu0 0.0
        %2842 = vmatpush1.msra.mxu0 0.0
        %2843 = vmatprep.subr.mxu0 0.0
        %2844 = vmatpush1.msra.mxu0 0.0
        %2845 = vmatprep.subr.mxu0 0.0
        %2846 = vmatpush1.msra.mxu0 0.0
        %2847 = vmatprep.subr.mxu0 0.0
        %2848 = vmatpush1.msra.mxu0 0.0
        %2849 = vmatprep.subr.mxu0 0.0
        %2850 = vmatpush1.msra.mxu0 0.0
        %2851 = vmatprep.subr.mxu0 0.0
        %2852 = vmatpush1.msra.mxu0 %v2835
        %2853 = vmatprep.subr.mxu0 0.0
        %2854 = vmatpush1.msra.mxu0 %v2834
        %2855 = vmatprep.subr.mxu0 0.0
        %2856 = vmatpush1.msra.mxu0 %v2833
        %2857 = vmatprep.subr.mxu0 0.0
        %2858 = vmatpush1.msra.mxu0 %v2832
        %2859 = vmatprep.subr.mxu0 0.0
        %2860 = vmatpush1.msra.mxu0 %v2831
        %2861 = vmatprep.subr.mxu0 0.0
        %2862 = vmatpush1.msra.mxu0 %v2830
        %2863 = vmatprep.subr.mxu0 0.0
        %2864 = vmatpush1.msra.mxu0 %v2829
        %2865 = vmatprep.subr.mxu0 0.0
        %2866 = vmatpush1.msra.mxu0 %v2828
        %2867 = vmatprep.subr.mxu0 0.0
        %2868 = vmatpush1.msra.mxu0 %v2827
        %2869 = vmatprep.subr.mxu0 0.0
        %2870 = vmatpush1.msra.mxu0 %v2826
        %2871 = vmatprep.subr.mxu0 0.0
        %2872 = vmatpush2.msra.mxu0 0.0
        %2873 = vmatprep.subr.mxu0 0.0
        %2874 = vmatpush2.msra.mxu0 0.0
        %2875 = vmatprep.subr.mxu0 0.0
        %2876 = vmatpush2.msra.mxu0 0.0
        %2877 = vmatprep.subr.mxu0 0.0
        %2878 = vmatpush2.msra.mxu0 0.0
        %2879 = vmatprep.subr.mxu0 0.0
        %2880 = vmatpush2.msra.mxu0 0.0
        %2881 = vmatprep.subr.mxu0 0.0
        %2882 = vmatpush2.msra.mxu0 0.0
        %2883 = vmatprep.subr.mxu0 0.0
        %2884 = vmatpush2.msra.mxu0 0.0
        %2885 = vmatprep.subr.mxu0 0.0
        %2886 = vmatpush2.msra.mxu0 0.0
        %2887 = vmatprep.subr.mxu0 0.0
        %2888 = vmatpush2.msra.mxu0 0.0
        %2889 = vmatprep.subr.mxu0 0.0
        %2890 = vmatpush2.msra.mxu0 0.0
        %2891 = vmatprep.subr.mxu0 0.0
        %2892 = vmatpush2.msra.mxu0 0.0
        %2893 = vmatprep.subr.mxu0 0.0
        %2894 = vmatpush2.msra.mxu0 0.0
        %2895 = vmatprep.subr.mxu0 0.0
        %2896 = vmatpush2.msra.mxu0 0.0
        %2897 = vmatprep.subr.mxu0 0.0
        %2898 = vmatpush2.msra.mxu0 0.0
        %2899 = vmatprep.subr.mxu0 0.0
        %2900 = vmatpush2.msra.mxu0 0.0
        %2901 = vmatprep.subr.mxu0 0.0
        %2902 = vmatpush2.msra.mxu0 0.0
        %2903 = vmatprep.mubr.f32.mxu0 0.0
        %2904 = vmatmul.mubr.f32.gmra.mxu0 %v2837
        %v2905 = vpop.f32.mrf.mxu0
        %v2906 = vadd.f32 0.0, %v2905
        %v2907 = vpop.f32.mrf.mxu0
        %2908 = vdwg.mxu0
        %v2909 = vadd.f32 %v2824, %v2906
        %s2910 = scalar_lea.vmem %s9, 160
        %v2911 = vld [vmem:[%s2910] sm:$0xff]
        %v2912 = vld [vmem:[%s2910 + $0x8] sm:$0xff]
        %v2913 = vld [vmem:[%s2910 + $0x10] sm:$0xff]
        %v2914 = vld [vmem:[%s2910 + $0x18] sm:$0xff]
        %v2915 = vld [vmem:[%s2910 + $0x20] sm:$0xff]
        %v2916 = vld [vmem:[%s2910 + $0x28] sm:$0xff]
        %v2917 = vld [vmem:[%s2910 + $0x30] sm:$0xff]
        %v2918 = vld [vmem:[%s2910 + $0x38] sm:$0xff]
        %v2919 = vld [vmem:[%s2910 + $0x40] sm:$0xff]
        %v2920 = vld [vmem:[%s2910 + $0x48] sm:$0xff]
        %v2921 = vrot.slane %v2738, 2
        %v2922 = vsel %vm2750, %v2921, 0
        %2924 = vmatprep.subr.mxu0 0.0
        %2925 = vmatpush1.msra.mxu0 0.0
        %2926 = vmatprep.subr.mxu0 0.0
        %2927 = vmatpush1.msra.mxu0 0.0
        %2928 = vmatprep.subr.mxu0 0.0
        %2929 = vmatpush1.msra.mxu0 0.0
        %2930 = vmatprep.subr.mxu0 0.0
        %2931 = vmatpush1.msra.mxu0 0.0
        %2932 = vmatprep.subr.mxu0 0.0
        %2933 = vmatpush1.msra.mxu0 0.0
        %2934 = vmatprep.subr.mxu0 0.0
        %2935 = vmatpush1.msra.mxu0 0.0
        %2936 = vmatprep.subr.mxu0 0.0
        %2937 = vmatpush1.msra.mxu0 %v2920
        %2938 = vmatprep.subr.mxu0 0.0
        %2939 = vmatpush1.msra.mxu0 %v2919
        %2940 = vmatprep.subr.mxu0 0.0
        %2941 = vmatpush1.msra.mxu0 %v2918
        %2942 = vmatprep.subr.mxu0 0.0
        %2943 = vmatpush1.msra.mxu0 %v2917
        %2944 = vmatprep.subr.mxu0 0.0
        %2945 = vmatpush1.msra.mxu0 %v2916
        %2946 = vmatprep.subr.mxu0 0.0
        %2947 = vmatpush1.msra.mxu0 %v2915
        %2948 = vmatprep.subr.mxu0 0.0
        %2949 = vmatpush1.msra.mxu0 %v2914
        %2950 = vmatprep.subr.mxu0 0.0
        %2951 = vmatpush1.msra.mxu0 %v2913
        %2952 = vmatprep.subr.mxu0 0.0
        %2953 = vmatpush1.msra.mxu0 %v2912
        %2954 = vmatprep.subr.mxu0 0.0
        %2955 = vmatpush1.msra.mxu0 %v2911
        %2956 = vmatprep.subr.mxu0 0.0
        %2957 = vmatpush2.msra.mxu0 0.0
        %2958 = vmatprep.subr.mxu0 0.0
        %2959 = vmatpush2.msra.mxu0 0.0
        %2960 = vmatprep.subr.mxu0 0.0
        %2961 = vmatpush2.msra.mxu0 0.0
        %2962 = vmatprep.subr.mxu0 0.0
        %2963 = vmatpush2.msra.mxu0 0.0
        %2964 = vmatprep.subr.mxu0 0.0
        %2965 = vmatpush2.msra.mxu0 0.0
        %2966 = vmatprep.subr.mxu0 0.0
        %2967 = vmatpush2.msra.mxu0 0.0
        %2968 = vmatprep.subr.mxu0 0.0
        %2969 = vmatpush2.msra.mxu0 0.0
        %2970 = vmatprep.subr.mxu0 0.0
        %2971 = vmatpush2.msra.mxu0 0.0
        %2972 = vmatprep.subr.mxu0 0.0
        %2973 = vmatpush2.msra.mxu0 0.0
        %2974 = vmatprep.subr.mxu0 0.0
        %2975 = vmatpush2.msra.mxu0 0.0
        %2976 = vmatprep.subr.mxu0 0.0
        %2977 = vmatpush2.msra.mxu0 0.0
        %2978 = vmatprep.subr.mxu0 0.0
        %2979 = vmatpush2.msra.mxu0 0.0
        %2980 = vmatprep.subr.mxu0 0.0
        %2981 = vmatpush2.msra.mxu0 0.0
        %2982 = vmatprep.subr.mxu0 0.0
        %2983 = vmatpush2.msra.mxu0 0.0
        %2984 = vmatprep.subr.mxu0 0.0
        %2985 = vmatpush2.msra.mxu0 0.0
        %2986 = vmatprep.subr.mxu0 0.0
        %2987 = vmatpush2.msra.mxu0 0.0
        %2988 = vmatprep.mubr.f32.mxu0 0.0
        %2989 = vmatmul.mubr.f32.gmra.mxu0 %v2922
        %v2990 = vpop.f32.mrf.mxu0
        %v2991 = vadd.f32 0.0, %v2990
        %v2992 = vpop.f32.mrf.mxu0
        %2993 = vdwg.mxu0
        %v2994 = vadd.f32 %v2909, %v2991
        %s2995 = scalar_lea.vmem %s9, 240
        %v2996 = vld [vmem:[%s2995] sm:$0xff]
        %v2997 = vld [vmem:[%s2995 + $0x8] sm:$0xff]
        %v2998 = vld [vmem:[%s2995 + $0x10] sm:$0xff]
        %v2999 = vld [vmem:[%s2995 + $0x18] sm:$0xff]
        %v3000 = vld [vmem:[%s2995 + $0x20] sm:$0xff]
        %v3001 = vld [vmem:[%s2995 + $0x28] sm:$0xff]
        %v3002 = vld [vmem:[%s2995 + $0x30] sm:$0xff]
        %v3003 = vld [vmem:[%s2995 + $0x38] sm:$0xff]
        %v3004 = vld [vmem:[%s2995 + $0x40] sm:$0xff]
        %v3005 = vld [vmem:[%s2995 + $0x48] sm:$0xff]
        %v3006 = vrot.slane %v2738, 3
        %v3007 = vsel %vm2750, %v3006, 0
        %3009 = vmatprep.subr.mxu0 0.0
        %3010 = vmatpush1.msra.mxu0 0.0
        %3011 = vmatprep.subr.mxu0 0.0
        %3012 = vmatpush1.msra.mxu0 0.0
        %3013 = vmatprep.subr.mxu0 0.0
        %3014 = vmatpush1.msra.mxu0 0.0
        %3015 = vmatprep.subr.mxu0 0.0
        %3016 = vmatpush1.msra.mxu0 0.0
        %3017 = vmatprep.subr.mxu0 0.0
        %3018 = vmatpush1.msra.mxu0 0.0
        %3019 = vmatprep.subr.mxu0 0.0
        %3020 = vmatpush1.msra.mxu0 0.0
        %3021 = vmatprep.subr.mxu0 0.0
        %3022 = vmatpush1.msra.mxu0 %v3005
        %3023 = vmatprep.subr.mxu0 0.0
        %3024 = vmatpush1.msra.mxu0 %v3004
        %3025 = vmatprep.subr.mxu0 0.0
        %3026 = vmatpush1.msra.mxu0 %v3003
        %3027 = vmatprep.subr.mxu0 0.0
        %3028 = vmatpush1.msra.mxu0 %v3002
        %3029 = vmatprep.subr.mxu0 0.0
        %3030 = vmatpush1.msra.mxu0 %v3001
        %3031 = vmatprep.subr.mxu0 0.0
        %3032 = vmatpush1.msra.mxu0 %v3000
        %3033 = vmatprep.subr.mxu0 0.0
        %3034 = vmatpush1.msra.mxu0 %v2999
        %3035 = vmatprep.subr.mxu0 0.0
        %3036 = vmatpush1.msra.mxu0 %v2998
        %3037 = vmatprep.subr.mxu0 0.0
        %3038 = vmatpush1.msra.mxu0 %v2997
        %3039 = vmatprep.subr.mxu0 0.0
        %3040 = vmatpush1.msra.mxu0 %v2996
        %3041 = vmatprep.subr.mxu0 0.0
        %3042 = vmatpush2.msra.mxu0 0.0
        %3043 = vmatprep.subr.mxu0 0.0
        %3044 = vmatpush2.msra.mxu0 0.0
        %3045 = vmatprep.subr.mxu0 0.0
        %3046 = vmatpush2.msra.mxu0 0.0
        %3047 = vmatprep.subr.mxu0 0.0
        %3048 = vmatpush2.msra.mxu0 0.0
        %3049 = vmatprep.subr.mxu0 0.0
        %3050 = vmatpush2.msra.mxu0 0.0
        %3051 = vmatprep.subr.mxu0 0.0
        %3052 = vmatpush2.msra.mxu0 0.0
        %3053 = vmatprep.subr.mxu0 0.0
        %3054 = vmatpush2.msra.mxu0 0.0
        %3055 = vmatprep.subr.mxu0 0.0
        %3056 = vmatpush2.msra.mxu0 0.0
        %3057 = vmatprep.subr.mxu0 0.0
        %3058 = vmatpush2.msra.mxu0 0.0
        %3059 = vmatprep.subr.mxu0 0.0
        %3060 = vmatpush2.msra.mxu0 0.0
        %3061 = vmatprep.subr.mxu0 0.0
        %3062 = vmatpush2.msra.mxu0 0.0
        %3063 = vmatprep.subr.mxu0 0.0
        %3064 = vmatpush2.msra.mxu0 0.0
        %3065 = vmatprep.subr.mxu0 0.0
        %3066 = vmatpush2.msra.mxu0 0.0
        %3067 = vmatprep.subr.mxu0 0.0
        %3068 = vmatpush2.msra.mxu0 0.0
        %3069 = vmatprep.subr.mxu0 0.0
        %3070 = vmatpush2.msra.mxu0 0.0
        %3071 = vmatprep.subr.mxu0 0.0
        %3072 = vmatpush2.msra.mxu0 0.0
        %3073 = vmatprep.mubr.f32.mxu0 0.0
        %3074 = vmatmul.mubr.f32.gmra.mxu0 %v3007
        %v3075 = vpop.f32.mrf.mxu0
        %v3076 = vadd.f32 0.0, %v3075
        %v3077 = vpop.f32.mrf.mxu0
        %3078 = vdwg.mxu0
        %v3079 = vadd.f32 %v2994, %v3076
        %s3080 = scalar_lea.vmem %s9, 320
        %v3081 = vld [vmem:[%s3080] sm:$0xff]
        %v3082 = vld [vmem:[%s3080 + $0x8] sm:$0xff]
        %v3083 = vld [vmem:[%s3080 + $0x10] sm:$0xff]
        %v3084 = vld [vmem:[%s3080 + $0x18] sm:$0xff]
        %v3085 = vld [vmem:[%s3080 + $0x20] sm:$0xff]
        %v3086 = vld [vmem:[%s3080 + $0x28] sm:$0xff]
        %v3087 = vld [vmem:[%s3080 + $0x30] sm:$0xff]
        %v3088 = vld [vmem:[%s3080 + $0x38] sm:$0xff]
        %v3089 = vld [vmem:[%s3080 + $0x40] sm:$0xff]
        %v3090 = vld [vmem:[%s3080 + $0x48] sm:$0xff]
        %v3091 = vrot.slane %v2738, 4
        %v3092 = vsel %vm2750, %v3091, 0
        %3094 = vmatprep.subr.mxu0 0.0
        %3095 = vmatpush1.msra.mxu0 0.0
        %3096 = vmatprep.subr.mxu0 0.0
        %3097 = vmatpush1.msra.mxu0 0.0
        %3098 = vmatprep.subr.mxu0 0.0
        %3099 = vmatpush1.msra.mxu0 0.0
        %3100 = vmatprep.subr.mxu0 0.0
        %3101 = vmatpush1.msra.mxu0 0.0
        %3102 = vmatprep.subr.mxu0 0.0
        %3103 = vmatpush1.msra.mxu0 0.0
        %3104 = vmatprep.subr.mxu0 0.0
        %3105 = vmatpush1.msra.mxu0 0.0
        %3106 = vmatprep.subr.mxu0 0.0
        %3107 = vmatpush1.msra.mxu0 %v3090
        %3108 = vmatprep.subr.mxu0 0.0
        %3109 = vmatpush1.msra.mxu0 %v3089
        %3110 = vmatprep.subr.mxu0 0.0
        %3111 = vmatpush1.msra.mxu0 %v3088
        %3112 = vmatprep.subr.mxu0 0.0
        %3113 = vmatpush1.msra.mxu0 %v3087
        %3114 = vmatprep.subr.mxu0 0.0
        %3115 = vmatpush1.msra.mxu0 %v3086
        %3116 = vmatprep.subr.mxu0 0.0
        %3117 = vmatpush1.msra.mxu0 %v3085
        %3118 = vmatprep.subr.mxu0 0.0
        %3119 = vmatpush1.msra.mxu0 %v3084
        %3120 = vmatprep.subr.mxu0 0.0
        %3121 = vmatpush1.msra.mxu0 %v3083
        %3122 = vmatprep.subr.mxu0 0.0
        %3123 = vmatpush1.msra.mxu0 %v3082
        %3124 = vmatprep.subr.mxu0 0.0
        %3125 = vmatpush1.msra.mxu0 %v3081
        %3126 = vmatprep.subr.mxu0 0.0
        %3127 = vmatpush2.msra.mxu0 0.0
        %3128 = vmatprep.subr.mxu0 0.0
        %3129 = vmatpush2.msra.mxu0 0.0
        %3130 = vmatprep.subr.mxu0 0.0
        %3131 = vmatpush2.msra.mxu0 0.0
        %3132 = vmatprep.subr.mxu0 0.0
        %3133 = vmatpush2.msra.mxu0 0.0
        %3134 = vmatprep.subr.mxu0 0.0
        %3135 = vmatpush2.msra.mxu0 0.0
        %3136 = vmatprep.subr.mxu0 0.0
        %3137 = vmatpush2.msra.mxu0 0.0
        %3138 = vmatprep.subr.mxu0 0.0
        %3139 = vmatpush2.msra.mxu0 0.0
        %3140 = vmatprep.subr.mxu0 0.0
        %3141 = vmatpush2.msra.mxu0 0.0
        %3142 = vmatprep.subr.mxu0 0.0
        %3143 = vmatpush2.msra.mxu0 0.0
        %3144 = vmatprep.subr.mxu0 0.0
        %3145 = vmatpush2.msra.mxu0 0.0
        %3146 = vmatprep.subr.mxu0 0.0
        %3147 = vmatpush2.msra.mxu0 0.0
        %3148 = vmatprep.subr.mxu0 0.0
        %3149 = vmatpush2.msra.mxu0 0.0
        %3150 = vmatprep.subr.mxu0 0.0
        %3151 = vmatpush2.msra.mxu0 0.0
        %3152 = vmatprep.subr.mxu0 0.0
        %3153 = vmatpush2.msra.mxu0 0.0
        %3154 = vmatprep.subr.mxu0 0.0
        %3155 = vmatpush2.msra.mxu0 0.0
        %3156 = vmatprep.subr.mxu0 0.0
        %3157 = vmatpush2.msra.mxu0 0.0
        %3158 = vmatprep.mubr.f32.mxu0 0.0
        %3159 = vmatmul.mubr.f32.gmra.mxu0 %v3092
        %v3160 = vpop.f32.mrf.mxu0
        %v3161 = vadd.f32 0.0, %v3160
        %v3162 = vpop.f32.mrf.mxu0
        %3163 = vdwg.mxu0
        %v3164 = vadd.f32 %v3079, %v3161
        %v3165 = vmax.f32 %v3164, 0.0
        %v3166 = vld [vmem:[%s11] sm:$0xff]
        %v3167 = vld [vmem:[%s11 + $0x8] sm:$0xff]
        %v3168 = vld [vmem:[%s11 + $0x10] sm:$0xff]
        %v3169 = vld [vmem:[%s11 + $0x18] sm:$0xff]
        %v3170 = vld [vmem:[%s11 + $0x20] sm:$0xff]
        %v3171 = vld [vmem:[%s11 + $0x28] sm:$0xff]
        %v3172 = vld [vmem:[%s11 + $0x30] sm:$0xff]
        %v3173 = vld [vmem:[%s11 + $0x38] sm:$0xff]
        %v3174 = vld [vmem:[%s11 + $0x40] sm:$0xff]
        %v3175 = vld [vmem:[%s11 + $0x48] sm:$0xff]
        %v3176 = vld [vmem:[%s11 + $0x50] sm:$0xff]
        %v3177 = vld [vmem:[%s11 + $0x58] sm:$0xff]
        %v3178 = vld [vmem:[%s11 + $0x60] sm:$0xff]
        %v3179 = vld [vmem:[%s11 + $0x68] sm:$0xff]
        %v3180 = vld [vmem:[%s11 + $0x70] sm:$0xff]
        %v3181 = vld [vmem:[%s12] sm:$0x1]
        %vm3182 = vcmask 982016
        %v3184 = vsel %vm3182, %v3165, 0
        %3186 = vmatprep.subr.mxu0 0.0
        %3187 = vmatpush1.msra.mxu0 0.0
        %3188 = vmatprep.subr.mxu0 0.0
        %3189 = vmatpush1.msra.mxu0 %v3180
        %3190 = vmatprep.subr.mxu0 0.0
        %3191 = vmatpush1.msra.mxu0 %v3179
        %3192 = vmatprep.subr.mxu0 0.0
        %3193 = vmatpush1.msra.mxu0 %v3178
        %3194 = vmatprep.subr.mxu0 0.0
        %3195 = vmatpush1.msra.mxu0 %v3177
        %3196 = vmatprep.subr.mxu0 0.0
        %3197 = vmatpush1.msra.mxu0 %v3176
        %3198 = vmatprep.subr.mxu0 0.0
        %3199 = vmatpush1.msra.mxu0 %v3175
        %3200 = vmatprep.subr.mxu0 0.0
        %3201 = vmatpush1.msra.mxu0 %v3174
        %3202 = vmatprep.subr.mxu0 0.0
        %3203 = vmatpush1.msra.mxu0 %v3173
        %3204 = vmatprep.subr.mxu0 0.0
        %3205 = vmatpush1.msra.mxu0 %v3172
        %3206 = vmatprep.subr.mxu0 0.0
        %3207 = vmatpush1.msra.mxu0 %v3171
        %3208 = vmatprep.subr.mxu0 0.0
        %3209 = vmatpush1.msra.mxu0 %v3170
        %3210 = vmatprep.subr.mxu0 0.0
        %3211 = vmatpush1.msra.mxu0 %v3169
        %3212 = vmatprep.subr.mxu0 0.0
        %3213 = vmatpush1.msra.mxu0 %v3168
        %3214 = vmatprep.subr.mxu0 0.0
        %3215 = vmatpush1.msra.mxu0 %v3167
        %3216 = vmatprep.subr.mxu0 0.0
        %3217 = vmatpush1.msra.mxu0 %v3166
        %3218 = vmatprep.subr.mxu0 0.0
        %3219 = vmatpush2.msra.mxu0 0.0
        %3220 = vmatprep.subr.mxu0 0.0
        %3221 = vmatpush2.msra.mxu0 0.0
        %3222 = vmatprep.subr.mxu0 0.0
        %3223 = vmatpush2.msra.mxu0 0.0
        %3224 = vmatprep.subr.mxu0 0.0
        %3225 = vmatpush2.msra.mxu0 0.0
        %3226 = vmatprep.subr.mxu0 0.0
        %3227 = vmatpush2.msra.mxu0 0.0
        %3228 = vmatprep.subr.mxu0 0.0
        %3229 = vmatpush2.msra.mxu0 0.0
        %3230 = vmatprep.subr.mxu0 0.0
        %3231 = vmatpush2.msra.mxu0 0.0
        %3232 = vmatprep.subr.mxu0 0.0
        %3233 = vmatpush2.msra.mxu0 0.0
        %3234 = vmatprep.subr.mxu0 0.0
        %3235 = vmatpush2.msra.mxu0 0.0
        %3236 = vmatprep.subr.mxu0 0.0
        %3237 = vmatpush2.msra.mxu0 0.0
        %3238 = vmatprep.subr.mxu0 0.0
        %3239 = vmatpush2.msra.mxu0 0.0
        %3240 = vmatprep.subr.mxu0 0.0
        %3241 = vmatpush2.msra.mxu0 0.0
        %3242 = vmatprep.subr.mxu0 0.0
        %3243 = vmatpush2.msra.mxu0 0.0
        %3244 = vmatprep.subr.mxu0 0.0
        %3245 = vmatpush2.msra.mxu0 0.0
        %3246 = vmatprep.subr.mxu0 0.0
        %3247 = vmatpush2.msra.mxu0 0.0
        %3248 = vmatprep.subr.mxu0 0.0
        %3249 = vmatpush2.msra.mxu0 0.0
        %3250 = vmatprep.mubr.f32.mxu0 0.0
        %3251 = vmatmul.mubr.f32.gmra.mxu0 %v3184
        %v3252 = vpop.f32.mrf.mxu0
        %v3253 = vadd.f32 %v3181, %v3252
        %v3254 = vpop.f32.mrf.mxu0
        %3255 = vdwg.mxu0
        %v3256 = vmax.f32 %v3253, 0.0
        %v3257 = vld [vmem:[%s13] sm:$0xff]
        %v3258 = vld [vmem:[%s13 + $0x8] sm:$0xff]
        %v3259 = vld [vmem:[%s13 + $0x10] sm:$0xff]
        %v3260 = vld [vmem:[%s13 + $0x18] sm:$0xff]
        %v3261 = vld [vmem:[%s13 + $0x20] sm:$0xff]
        %v3262 = vld [vmem:[%s13 + $0x28] sm:$0xff]
        %v3263 = vld [vmem:[%s13 + $0x30] sm:$0xff]
        %v3264 = vld [vmem:[%s13 + $0x38] sm:$0xff]
        %v3265 = vld [vmem:[%s13 + $0x40] sm:$0xff]
        %v3266 = vld [vmem:[%s13 + $0x48] sm:$0xff]
        %v3267 = vld [vmem:[%s13 + $0x50] sm:$0xf]
        %v3268 = vld [vmem:[%s14] sm:$0x1]
        %v3270 = vsel %vm1704, %v3256, 0
        %v3273 = vsel %vm973, %v3267, 0
        %3275 = vmatprep.subr.mxu0 0.0
        %3276 = vmatpush1.msra.mxu0 0.0
        %3277 = vmatprep.subr.mxu0 0.0
        %3278 = vmatpush1.msra.mxu0 0.0
        %3279 = vmatprep.subr.mxu0 0.0
        %3280 = vmatpush1.msra.mxu0 0.0
        %3281 = vmatprep.subr.mxu0 0.0
        %3282 = vmatpush1.msra.mxu0 0.0
        %3283 = vmatprep.subr.mxu0 0.0
        %3284 = vmatpush1.msra.mxu0 0.0
        %3285 = vmatprep.subr.mxu0 0.0
        %3286 = vmatpush1.msra.mxu0 %v3273
        %3287 = vmatprep.subr.mxu0 0.0
        %3288 = vmatpush1.msra.mxu0 %v3266
        %3289 = vmatprep.subr.mxu0 0.0
        %3290 = vmatpush1.msra.mxu0 %v3265
        %3291 = vmatprep.subr.mxu0 0.0
        %3292 = vmatpush1.msra.mxu0 %v3264
        %3293 = vmatprep.subr.mxu0 0.0
        %3294 = vmatpush1.msra.mxu0 %v3263
        %3295 = vmatprep.subr.mxu0 0.0
        %3296 = vmatpush1.msra.mxu0 %v3262
        %3297 = vmatprep.subr.mxu0 0.0
        %3298 = vmatpush1.msra.mxu0 %v3261
        %3299 = vmatprep.subr.mxu0 0.0
        %3300 = vmatpush1.msra.mxu0 %v3260
        %3301 = vmatprep.subr.mxu0 0.0
        %3302 = vmatpush1.msra.mxu0 %v3259
        %3303 = vmatprep.subr.mxu0 0.0
        %3304 = vmatpush1.msra.mxu0 %v3258
        %3305 = vmatprep.subr.mxu0 0.0
        %3306 = vmatpush1.msra.mxu0 %v3257
        %3307 = vmatprep.subr.mxu0 0.0
        %3308 = vmatpush2.msra.mxu0 0.0
        %3309 = vmatprep.subr.mxu0 0.0
        %3310 = vmatpush2.msra.mxu0 0.0
        %3311 = vmatprep.subr.mxu0 0.0
        %3312 = vmatpush2.msra.mxu0 0.0
        %3313 = vmatprep.subr.mxu0 0.0
        %3314 = vmatpush2.msra.mxu0 0.0
        %3315 = vmatprep.subr.mxu0 0.0
        %3316 = vmatpush2.msra.mxu0 0.0
        %3317 = vmatprep.subr.mxu0 0.0
        %3318 = vmatpush2.msra.mxu0 0.0
        %3319 = vmatprep.subr.mxu0 0.0
        %3320 = vmatpush2.msra.mxu0 0.0
        %3321 = vmatprep.subr.mxu0 0.0
        %3322 = vmatpush2.msra.mxu0 0.0
        %3323 = vmatprep.subr.mxu0 0.0
        %3324 = vmatpush2.msra.mxu0 0.0
        %3325 = vmatprep.subr.mxu0 0.0
        %3326 = vmatpush2.msra.mxu0 0.0
        %3327 = vmatprep.subr.mxu0 0.0
        %3328 = vmatpush2.msra.mxu0 0.0
        %3329 = vmatprep.subr.mxu0 0.0
        %3330 = vmatpush2.msra.mxu0 0.0
        %3331 = vmatprep.subr.mxu0 0.0
        %3332 = vmatpush2.msra.mxu0 0.0
        %3333 = vmatprep.subr.mxu0 0.0
        %3334 = vmatpush2.msra.mxu0 0.0
        %3335 = vmatprep.subr.mxu0 0.0
        %3336 = vmatpush2.msra.mxu0 0.0
        %3337 = vmatprep.subr.mxu0 0.0
        %3338 = vmatpush2.msra.mxu0 0.0
        %3339 = vmatprep.mubr.f32.mxu0 0.0
        %3340 = vmatmul.mubr.f32.gmra.mxu0 %v3270
        %v3341 = vpop.f32.mrf.mxu0
        %v3342 = vadd.f32 %v3268, %v3341
        %v3343 = vpop.f32.mrf.mxu0
        %3344 = vdwg.mxu0
        %vm3345 = vcmask 73728
        %3346 = vst.msk [vmem:[%s486] sm:$0x1] %vm3345, %v3342
        %s3347 = sand.u32 %s357, 1
        %s3348 = scalar_lea.sflag [#allocation3], %s3347
        %s3349 = sand.u32 %s357, 1
        %s3350 = scalar_lea.vmem [#allocation2], %s3349
        // Predicated region
        $region81: #{lenet_forward.1} parent=79 // pred_check
          %p3351 = pneg %p367
        $region82: #{lenet_forward.1} parent=79 // pred_check_branch
          %3353 = sbr.rel (%p3351) target = $region84
        $region83: #{lenet_forward.1} parent=79 // pred_region
          %s3355 = ssub.s32 16, 16
          %3356 = vsyncadd %s3348, %s3355
          %s3357 = smul.addr %s29, 16
          %s3358 = scalar_lea.hbm %s15, %s3357
          %s3360 = sshll.u32 %s3350, 4
          %s3361 = int_to_ptr.vmem [resolvable:$true] %s3360
          %3363 = dma.vmem_to_hbm [thread:$0]  %s3361, 16, %s3358, %s3348
        $region84: #{lenet_forward.1} parent=79 // pred_fallthru
          _
      $region80: #{lenet_forward.1} parent=5 // pred_fallthru
        _
      %p3364 = scmp.le.s32.totalorder 2, %s24
      // Predicated region
      $region85: #{lenet_forward.1} parent=5 // pred_check
        %p3365 = pneg %p3364
      $region86: #{lenet_forward.1} parent=5 // pred_check_branch
        %3367 = sbr.rel (%p3365) target = $region88
      $region87: #{lenet_forward.1} parent=5 // pred_region
        %s3368 = ssub.s32 %s24, 2
        // Predicated region
        $region89: #{lenet_forward.1} parent=87 // pred_check
          %p3369 = pneg %p373
        $region90: #{lenet_forward.1} parent=87 // pred_check_branch
          %3371 = sbr.rel (%p3369) target = $region92
        $region91: #{lenet_forward.1} parent=87 // pred_region
          %s3372 = sand.u32 %s358, 1
          %s3373 = scalar_lea.sflag [#allocation3], %s3372
          %s3374 = sand.u32 %s358, 1
          %s3375 = scalar_lea.vmem [#allocation2], %s3374
          %3376 = dma.done %s3373, 16
        $region92: #{lenet_forward.1} parent=87 // pred_fallthru
          _
      $region88: #{lenet_forward.1} parent=5 // pred_fallthru
        _
    $region6: #{lenet_forward.1} parent=1 // loop_footer
      %s28 = sadd.s32 1, %s24
    $region7: #{lenet_forward.1} parent=1 // loop_footer_branch
      %23 = sbr.rel target = $region3
    $region8: #{lenet_forward.1} parent=1 // loop_exit
      _
    %3377 = vsyncpa [#allocation3], 1
    %s3378 = scalar_lea.sflag [#allocation3], 1
    %3379 = vsyncpa %s3378, 1

</llo_original>
